<compile_context>
chip_gen: v5e
topology: v5e:2x2
jax: 0.10.0
libtpu: 0.0.40
codegen_flags: <defaults>
</compile_context>

<pallas_src>
import math

import jax
import jax.numpy as jnp
import numpy as np
from jax.experimental import pallas as pl
from jax.experimental.pallas import tpu as pltpu


def _choose_q_tiling(S, target=256):
    """Pick (TQ, S_pad): prefer a divisor of S; otherwise pad the query axis."""
    if S <= target:
        return S, S
    for t in (target, 256, 128, 64, 32, 16, 8):
        if t <= target and t % 8 == 0 and S % t == 0:
            return t, S
    TQ = max(8, (min(target, 128) // 8) * 8)
    S_pad = ((S + TQ - 1) // TQ) * TQ
    return TQ, S_pad


def _default_vmem_limit():
    """Generation-aware VMEM limit: headroom on v7x (64 MiB physical), use
    more of the 128 MiB on v5e/v6e."""
    try:
        cap = getattr(pltpu.get_tpu_info(), "vmem_capacity_bytes", None)
        if cap:
            return int(max(32 * 2 ** 20, min(cap - 16 * 2 ** 20, 100 * 2 ** 20)))
    except Exception:
        pass
    return 64 * 2 ** 20


def _make_mha_kernel(S, H, dk, scale, emit_attn, compute_dtype, approx_recip):
    D = H * dk
    cd = compute_dtype

    def kernel(q_ref, k_ref, v_ref, wq_ref, wk_ref, wv_ref, wo_ref, *rest):
        if emit_attn:
            out_ref, attn_ref, kproj_ref, vproj_ref = rest
        else:
            out_ref, kproj_ref, vproj_ref = rest

        qi = pl.program_id(1)

        # ---- K/V projections: one lane-dense (S,D)x(D,D) GEMM each, computed
        # only at the first q-tile of each batch element.  K is cached
        # transposed per head ((dk,S)) so scores are a plain matmul with a
        # lane-dense S output; V is cached as (S,dk) per head. ----
        @pl.when(qi == 0)
        def _():
            kp = jnp.dot(k_ref[0].astype(cd), wk_ref[...].astype(cd),
                         preferred_element_type=jnp.float32)             # (S, D)
            vp = jnp.dot(v_ref[0].astype(cd), wv_ref[...].astype(cd),
                         preferred_element_type=jnp.float32)             # (S, D)
            for h in range(H):
                sl = slice(h * dk, (h + 1) * dk)
                kproj_ref[h] = kp[:, sl].T.astype(cd)                    # (dk, S)
                vproj_ref[h] = vp[:, sl].astype(cd)                      # (S, dk)

        # ---- Q projection for this q-tile: ONE lane-dense (TQ,D)x(D,D) GEMM;
        # softmax scale folded in here (O(TQ*D), not O(H*TQ*S)). ----
        qp = jnp.dot(q_ref[0].astype(cd), wq_ref[...].astype(cd),
                     preferred_element_type=jnp.float32) * scale         # (TQ, D)

        # ---- Head loop: live f32 state is (TQ,S) per head; each head's
        # context fills its own static column range (no XLU transpose). ----
        ctx_cols = []
        for h in range(H):
            q_h = qp[:, h * dk:(h + 1) * dk].astype(cd)                  # (TQ, dk)
            scores = jnp.dot(q_h, kproj_ref[h],
                             preferred_element_type=jnp.float32)         # (TQ, S)
            m = jnp.max(scores, axis=-1, keepdims=True)
            e = jnp.exp(scores - m)
            denom = jnp.sum(e, axis=-1, keepdims=True)
            attn = e * pl.reciprocal(denom, approx=approx_recip)
            if emit_attn:
                attn_ref[0, h] = attn.astype(attn_ref.dtype)
            ctx_cols.append(jnp.dot(attn.astype(cd), vproj_ref[h],
                                    preferred_element_type=jnp.float32))  # (TQ, dk)
        ctx2d = jnp.concatenate(ctx_cols, axis=-1)                        # (TQ, D)

        # ---- Fused output projection: single (TQ,D)x(D,D) GEMM. ----
        out = jnp.dot(ctx2d.astype(cd), wo_ref[...].astype(cd),
                      preferred_element_type=jnp.float32)                 # (TQ, D)
        out_ref[0] = out.astype(out_ref.dtype)

    return kernel


def multi_head_attention(q, k, v, w_q, w_k, w_v, w_o, num_heads, *,
                         q_block=256, return_attention=True, mxu_dtype=None,
                         attn_dtype=None, approx_reciprocal=False,
                         vmem_limit_bytes=None):
    """Pallas TPU implementation of the PyTorch MultiHeadAttention.forward.

    q, k, v: (B, S, d_model);  w_q/w_k/w_v/w_o: (d_model, d_model).
    Returns (output, attention_weights) when return_attention=True (matching
    the PyTorch module), else just output (the fast, memory-light path).
    Set mxu_dtype=jnp.bfloat16 and/or attn_dtype=jnp.bfloat16 for v6e/v7x
    throughput; defaults keep full f32 parity with the reference.
    """
    B, S, D = q.shape
    H = num_heads
    dk = D // H
    scale = 1.0 / math.sqrt(dk)
    cd = jnp.dtype(mxu_dtype) if mxu_dtype is not None else q.dtype
    attn_store_dtype = jnp.dtype(attn_dtype) if attn_dtype is not None else q.dtype

    TQ, S_pad = _choose_q_tiling(S, q_block)
    n_q = S_pad // TQ
    q_in = q if S_pad == S else jnp.pad(q, ((0, 0), (0, S_pad - S), (0, 0)))

    if vmem_limit_bytes is None:
        vmem_limit_bytes = _default_vmem_limit()

    kernel = _make_mha_kernel(S=S, H=H, dk=dk, scale=scale,
                              emit_attn=return_attention, compute_dtype=cd,
                              approx_recip=approx_reciprocal)

    itemsize = q.dtype.itemsize
    bytes_accessed = (3 * B * S * D + 4 * D * D + B * S * D) * itemsize
    if return_attention:
        bytes_accessed += B * H * S_pad * S * jnp.dtype(attn_store_dtype).itemsize
    cost = pl.CostEstimate(
        flops=2 * B * (4 * S * D * D + 2 * H * S * S * dk),
        transcendentals=B * H * S_pad * S,
        bytes_accessed=int(bytes_accessed),
    )

    def run(single_buffer_resident):
        def spec(shape, index_map, resident=False):
            # Constant-index blocks (weights, full-S K/V) are never re-fetched:
            # keep a single VMEM buffer for them instead of double-buffering.
            if resident and single_buffer_resident and hasattr(pl, "Buffered"):
                return pl.BlockSpec(shape, index_map,
                                    pipeline_mode=pl.Buffered(1))
            return pl.BlockSpec(shape, index_map)

        q_spec = spec((1, TQ, D), lambda b, qi: (b, qi, 0))
        kv_spec = spec((1, S, D), lambda b, qi: (b, 0, 0), resident=True)
        w_spec = spec((D, D), lambda b, qi: (0, 0), resident=True)

        out_shapes = [jax.ShapeDtypeStruct((B, S_pad, D), q.dtype)]
        out_specs = [pl.BlockSpec((1, TQ, D), lambda b, qi: (b, qi, 0))]
        if return_attention:
            out_shapes.append(
                jax.ShapeDtypeStruct((B, H, S_pad, S), attn_store_dtype))
            out_specs.append(
                pl.BlockSpec((1, H, TQ, S), lambda b, qi: (b, 0, qi, 0)))

        return pl.pallas_call(
            kernel,
            out_shape=tuple(out_shapes),
            grid_spec=pltpu.PrefetchScalarGridSpec(
                num_scalar_prefetch=0,
                grid=(B, n_q),
                in_specs=[q_spec, kv_spec, kv_spec,
                          w_spec, w_spec, w_spec, w_spec],
                out_specs=tuple(out_specs),
                scratch_shapes=[pltpu.VMEM((H, dk, S), cd),   # cached K^T per head
                                pltpu.VMEM((H, S, dk), cd)],  # cached V per head
            ),
            compiler_params=pltpu.CompilerParams(
                # B axis shards across TensorCores; the q-tile axis must stay
                # "arbitrary" because the K/V scratch is filled at qi == 0.
                dimension_semantics=("parallel", "arbitrary"),
                vmem_limit_bytes=vmem_limit_bytes),
            cost_estimate=cost,
        )(q_in, k, v, w_q, w_k, w_v, w_o)

    try:
        results = run(True)
    except Exception:
        # Fallback for JAX versions where pipeline_mode=pl.Buffered(1) is not
        # supported on pallas_call BlockSpecs.
        results = run(False)

    if return_attention:
        out, attn = results
        if S_pad != S:
            out, attn = out[:, :S], attn[:, :, :S]
        return out, attn
    out = results[0]
    return out[:, :S] if S_pad != S else out


def _reference(q, k, v, w_q, w_k, w_v, w_o, num_heads):
    """Pure-JAX reference mirroring the PyTorch forward (eval mode)."""
    B, S, D = q.shape
    H = num_heads
    dk = D // H
    qp = (q @ w_q).reshape(B, S, H, dk).transpose(0, 2, 1, 3)
    kp = (k @ w_k).reshape(B, S, H, dk).transpose(0, 2, 1, 3)
    vp = (v @ w_v).reshape(B, S, H, dk).transpose(0, 2, 1, 3)
    scores = jnp.einsum('bhsd,bhtd->bhst', qp, kp) / math.sqrt(dk)
    attn = jax.nn.softmax(scores, axis=-1)
    ctx = jnp.einsum('bhst,bhtd->bhsd', attn, vp)
    out = ctx.transpose(0, 2, 1, 3).reshape(B, S, D)
    return out @ w_o, attn


if __name__ == "__main__":
    # Small deterministic configuration.
    B, S, d_model, num_heads = 2, 8, 32, 4

    key = jax.random.PRNGKey(0)
    kq, kk, kv, kwq, kwk, kwv, kwo = jax.random.split(key, 7)

    q = jax.random.normal(kq, (B, S, d_model), dtype=jnp.float32)
    k = jax.random.normal(kk, (B, S, d_model), dtype=jnp.float32)
    v = jax.random.normal(kv, (B, S, d_model), dtype=jnp.float32)

    # Deterministic parameter init (Xavier-like scaling).
    scale_w = 1.0 / math.sqrt(d_model)
    w_q = jax.random.normal(kwq, (d_model, d_model), dtype=jnp.float32) * scale_w
    w_k = jax.random.normal(kwk, (d_model, d_model), dtype=jnp.float32) * scale_w
    w_v = jax.random.normal(kwv, (d_model, d_model), dtype=jnp.float32) * scale_w
    w_o = jax.random.normal(kwo, (d_model, d_model), dtype=jnp.float32) * scale_w

    # Default path: matches the PyTorch module (output, attention_weights).
    out, attn = multi_head_attention(q, k, v, w_q, w_k, w_v, w_o, num_heads)
    out = jax.block_until_ready(out)
    attn = jax.block_until_ready(attn)

    # Fast path: no O(S^2) attention writeback.
    out_only = multi_head_attention(q, k, v, w_q, w_k, w_v, w_o, num_heads,
                                    return_attention=False)
    out_only = jax.block_until_ready(out_only)

    ref_out, ref_attn = _reference(q, k, v, w_q, w_k, w_v, w_o, num_heads)
    assert out.shape == (B, S, d_model)
    assert attn.shape == (B, num_heads, S, S)
    np.testing.assert_allclose(np.asarray(out), np.asarray(ref_out),
                               rtol=2e-5, atol=2e-5)
    np.testing.assert_allclose(np.asarray(attn), np.asarray(ref_attn),
                               rtol=2e-5, atol=2e-5)
    np.testing.assert_allclose(np.asarray(out_only), np.asarray(ref_out),
                               rtol=2e-5, atol=2e-5)

    print("KERNEL_OK")
</pallas_src>

<mosaic_0001>
module attributes {stable_mosaic.version = 11 : i64} {
  func.func @kernel(%arg0: i32, %arg1: i32, %arg2: memref<1x8x32xf32, #tpu.memory_space<vmem>>, %arg3: memref<1x8x32xf32, #tpu.memory_space<vmem>>, %arg4: memref<1x8x32xf32, #tpu.memory_space<vmem>>, %arg5: memref<32x32xf32, #tpu.memory_space<vmem>>, %arg6: memref<32x32xf32, #tpu.memory_space<vmem>>, %arg7: memref<32x32xf32, #tpu.memory_space<vmem>>, %arg8: memref<32x32xf32, #tpu.memory_space<vmem>>, %arg9: memref<1x8x32xf32, #tpu.memory_space<vmem>>, %arg10: memref<1x4x8x8xf32, #tpu.memory_space<vmem>>, %arg11: memref<4x8x8xf32, #tpu.memory_space<vmem>>, %arg12: memref<4x8x8xf32, #tpu.memory_space<vmem>>) attributes {dimension_semantics = [#tpu.dimension_semantics<parallel>, #tpu.dimension_semantics<arbitrary>], iteration_bounds = array<i64: 2, 1>, scalar_prefetch = 0 : i64, scratch_operands = 2 : i64, tpu.core_type = #tpu.core_type<tc>, window_params = [{transform_indices = @transform_0, window_bounds = array<i64: 1, 8, 32>}, {pipeline_mode = #tpu.pipeline_mode<synchronous>, transform_indices = @transform_1, window_bounds = array<i64: 1, 8, 32>}, {pipeline_mode = #tpu.pipeline_mode<synchronous>, transform_indices = @transform_2, window_bounds = array<i64: 1, 8, 32>}, {pipeline_mode = #tpu.pipeline_mode<synchronous>, transform_indices = @transform_3, window_bounds = array<i64: 32, 32>}, {pipeline_mode = #tpu.pipeline_mode<synchronous>, transform_indices = @transform_4, window_bounds = array<i64: 32, 32>}, {pipeline_mode = #tpu.pipeline_mode<synchronous>, transform_indices = @transform_5, window_bounds = array<i64: 32, 32>}, {pipeline_mode = #tpu.pipeline_mode<synchronous>, transform_indices = @transform_6, window_bounds = array<i64: 32, 32>}, {transform_indices = @transform_7, window_bounds = array<i64: 1, 8, 32>}, {transform_indices = @transform_8, window_bounds = array<i64: 1, 4, 8, 8>}]} {
    %c0_i32 = arith.constant 0 : i32
    %0 = arith.cmpi eq, %arg1, %c0_i32 : i32
    %1 = arith.extui %0 : i1 to i32
    %c0_i32_0 = arith.constant 0 : i32
    %2 = arith.cmpi ne, %1, %c0_i32_0 : i32
    scf.if %2 {
      %c0_65 = arith.constant 0 : index
      %c0_66 = arith.constant 0 : index
      %c0_67 = arith.constant 0 : index
      %95 = vector.load %arg3[%c0_65, %c0_66, %c0_67] : memref<1x8x32xf32, #tpu.memory_space<vmem>>, vector<1x8x32xf32>
      %96 = vector.shape_cast %95 : vector<1x8x32xf32> to vector<8x32xf32>
      %c0_68 = arith.constant 0 : index
      %c0_69 = arith.constant 0 : index
      %97 = vector.load %arg6[%c0_68, %c0_69] : memref<32x32xf32, #tpu.memory_space<vmem>>, vector<32x32xf32>
      %cst_70 = arith.constant dense<0.000000e+00> : vector<8x32xf32>
      %98 = tpu.matmul %96, %97, %cst_70 {dimension_numbers = #tpu.dot_dimension_numbers<[1], [0], [0], [1], [0, 0, 1, 1], [], []>} : vector<8x32xf32>, vector<32x32xf32>, vector<8x32xf32> -> vector<8x32xf32>
      %c0_71 = arith.constant 0 : index
      %c0_72 = arith.constant 0 : index
      %c0_73 = arith.constant 0 : index
      %99 = vector.load %arg4[%c0_71, %c0_72, %c0_73] : memref<1x8x32xf32, #tpu.memory_space<vmem>>, vector<1x8x32xf32>
      %100 = vector.shape_cast %99 : vector<1x8x32xf32> to vector<8x32xf32>
      %c0_74 = arith.constant 0 : index
      %c0_75 = arith.constant 0 : index
      %101 = vector.load %arg7[%c0_74, %c0_75] : memref<32x32xf32, #tpu.memory_space<vmem>>, vector<32x32xf32>
      %cst_76 = arith.constant dense<0.000000e+00> : vector<8x32xf32>
      %102 = tpu.matmul %100, %101, %cst_76 {dimension_numbers = #tpu.dot_dimension_numbers<[1], [0], [0], [1], [0, 0, 1, 1], [], []>} : vector<8x32xf32>, vector<32x32xf32>, vector<8x32xf32> -> vector<8x32xf32>
      %103 = vector.extract_strided_slice %98 {offsets = [0, 0], sizes = [8, 8], strides = [1, 1]} : vector<8x32xf32> to vector<8x8xf32>
      %104 = tpu.transpose %103, [1, 0] : vector<8x8xf32> -> vector<8x8xf32>
      %c0_77 = arith.constant 0 : index
      %c0_78 = arith.constant 0 : index
      %c0_79 = arith.constant 0 : index
      %105 = vector.load %arg11[%c0_77, %c0_78, %c0_79] : memref<4x8x8xf32, #tpu.memory_space<vmem>>, vector<1x8x8xf32>
      %106 = vector.shape_cast %105 : vector<1x8x8xf32> to vector<8x8xf32>
      %107 = vector.shape_cast %104 : vector<8x8xf32> to vector<1x8x8xf32>
      tpu.vector_store %arg11[%c0_77, %c0_78, %c0_79], %107 {strides = array<i32>} : memref<4x8x8xf32, #tpu.memory_space<vmem>>, vector<1x8x8xf32>,
      %108 = vector.extract_strided_slice %102 {offsets = [0, 0], sizes = [8, 8], strides = [1, 1]} : vector<8x32xf32> to vector<8x8xf32>
      %c0_80 = arith.constant 0 : index
      %c0_81 = arith.constant 0 : index
      %c0_82 = arith.constant 0 : index
      %109 = vector.load %arg12[%c0_80, %c0_81, %c0_82] : memref<4x8x8xf32, #tpu.memory_space<vmem>>, vector<1x8x8xf32>
      %110 = vector.shape_cast %109 : vector<1x8x8xf32> to vector<8x8xf32>
      %111 = vector.shape_cast %108 : vector<8x8xf32> to vector<1x8x8xf32>
      tpu.vector_store %arg12[%c0_80, %c0_81, %c0_82], %111 {strides = array<i32>} : memref<4x8x8xf32, #tpu.memory_space<vmem>>, vector<1x8x8xf32>,
      %112 = vector.extract_strided_slice %98 {offsets = [0, 8], sizes = [8, 8], strides = [1, 1]} : vector<8x32xf32> to vector<8x8xf32>
      %113 = tpu.transpose %112, [1, 0] : vector<8x8xf32> -> vector<8x8xf32>
      %c1_83 = arith.constant 1 : index
      %c0_84 = arith.constant 0 : index
      %c0_85 = arith.constant 0 : index
      %114 = vector.load %arg11[%c1_83, %c0_84, %c0_85] : memref<4x8x8xf32, #tpu.memory_space<vmem>>, vector<1x8x8xf32>
      %115 = vector.shape_cast %114 : vector<1x8x8xf32> to vector<8x8xf32>
      %116 = vector.shape_cast %113 : vector<8x8xf32> to vector<1x8x8xf32>
      tpu.vector_store %arg11[%c1_83, %c0_84, %c0_85], %116 {strides = array<i32>} : memref<4x8x8xf32, #tpu.memory_space<vmem>>, vector<1x8x8xf32>,
      %117 = vector.extract_strided_slice %102 {offsets = [0, 8], sizes = [8, 8], strides = [1, 1]} : vector<8x32xf32> to vector<8x8xf32>
      %c1_86 = arith.constant 1 : index
      %c0_87 = arith.constant 0 : index
      %c0_88 = arith.constant 0 : index
      %118 = vector.load %arg12[%c1_86, %c0_87, %c0_88] : memref<4x8x8xf32, #tpu.memory_space<vmem>>, vector<1x8x8xf32>
      %119 = vector.shape_cast %118 : vector<1x8x8xf32> to vector<8x8xf32>
      %120 = vector.shape_cast %117 : vector<8x8xf32> to vector<1x8x8xf32>
      tpu.vector_store %arg12[%c1_86, %c0_87, %c0_88], %120 {strides = array<i32>} : memref<4x8x8xf32, #tpu.memory_space<vmem>>, vector<1x8x8xf32>,
      %121 = vector.extract_strided_slice %98 {offsets = [0, 16], sizes = [8, 8], strides = [1, 1]} : vector<8x32xf32> to vector<8x8xf32>
      %122 = tpu.transpose %121, [1, 0] : vector<8x8xf32> -> vector<8x8xf32>
      %c2_89 = arith.constant 2 : index
      %c0_90 = arith.constant 0 : index
      %c0_91 = arith.constant 0 : index
      %123 = vector.load %arg11[%c2_89, %c0_90, %c0_91] : memref<4x8x8xf32, #tpu.memory_space<vmem>>, vector<1x8x8xf32>
      %124 = vector.shape_cast %123 : vector<1x8x8xf32> to vector<8x8xf32>
      %125 = vector.shape_cast %122 : vector<8x8xf32> to vector<1x8x8xf32>
      tpu.vector_store %arg11[%c2_89, %c0_90, %c0_91], %125 {strides = array<i32>} : memref<4x8x8xf32, #tpu.memory_space<vmem>>, vector<1x8x8xf32>,
      %126 = vector.extract_strided_slice %102 {offsets = [0, 16], sizes = [8, 8], strides = [1, 1]} : vector<8x32xf32> to vector<8x8xf32>
      %c2_92 = arith.constant 2 : index
      %c0_93 = arith.constant 0 : index
      %c0_94 = arith.constant 0 : index
      %127 = vector.load %arg12[%c2_92, %c0_93, %c0_94] : memref<4x8x8xf32, #tpu.memory_space<vmem>>, vector<1x8x8xf32>
      %128 = vector.shape_cast %127 : vector<1x8x8xf32> to vector<8x8xf32>
      %129 = vector.shape_cast %126 : vector<8x8xf32> to vector<1x8x8xf32>
      tpu.vector_store %arg12[%c2_92, %c0_93, %c0_94], %129 {strides = array<i32>} : memref<4x8x8xf32, #tpu.memory_space<vmem>>, vector<1x8x8xf32>,
      %130 = vector.extract_strided_slice %98 {offsets = [0, 24], sizes = [8, 8], strides = [1, 1]} : vector<8x32xf32> to vector<8x8xf32>
      %131 = tpu.transpose %130, [1, 0] : vector<8x8xf32> -> vector<8x8xf32>
      %c3_95 = arith.constant 3 : index
      %c0_96 = arith.constant 0 : index
      %c0_97 = arith.constant 0 : index
      %132 = vector.load %arg11[%c3_95, %c0_96, %c0_97] : memref<4x8x8xf32, #tpu.memory_space<vmem>>, vector<1x8x8xf32>
      %133 = vector.shape_cast %132 : vector<1x8x8xf32> to vector<8x8xf32>
      %134 = vector.shape_cast %131 : vector<8x8xf32> to vector<1x8x8xf32>
      tpu.vector_store %arg11[%c3_95, %c0_96, %c0_97], %134 {strides = array<i32>} : memref<4x8x8xf32, #tpu.memory_space<vmem>>, vector<1x8x8xf32>,
      %135 = vector.extract_strided_slice %102 {offsets = [0, 24], sizes = [8, 8], strides = [1, 1]} : vector<8x32xf32> to vector<8x8xf32>
      %c3_98 = arith.constant 3 : index
      %c0_99 = arith.constant 0 : index
      %c0_100 = arith.constant 0 : index
      %136 = vector.load %arg12[%c3_98, %c0_99, %c0_100] : memref<4x8x8xf32, #tpu.memory_space<vmem>>, vector<1x8x8xf32>
      %137 = vector.shape_cast %136 : vector<1x8x8xf32> to vector<8x8xf32>
      %138 = vector.shape_cast %135 : vector<8x8xf32> to vector<1x8x8xf32>
      tpu.vector_store %arg12[%c3_98, %c0_99, %c0_100], %138 {strides = array<i32>} : memref<4x8x8xf32, #tpu.memory_space<vmem>>, vector<1x8x8xf32>,
    } else {
    }
    %c0 = arith.constant 0 : index
    %c0_1 = arith.constant 0 : index
    %c0_2 = arith.constant 0 : index
    %3 = vector.load %arg2[%c0, %c0_1, %c0_2] : memref<1x8x32xf32, #tpu.memory_space<vmem>>, vector<1x8x32xf32>
    %4 = vector.shape_cast %3 : vector<1x8x32xf32> to vector<8x32xf32>
    %c0_3 = arith.constant 0 : index
    %c0_4 = arith.constant 0 : index
    %5 = vector.load %arg5[%c0_3, %c0_4] : memref<32x32xf32, #tpu.memory_space<vmem>>, vector<32x32xf32>
    %cst = arith.constant dense<0.000000e+00> : vector<8x32xf32>
    %6 = tpu.matmul %4, %5, %cst {dimension_numbers = #tpu.dot_dimension_numbers<[1], [0], [0], [1], [0, 0, 1, 1], [], []>} : vector<8x32xf32>, vector<32x32xf32>, vector<8x32xf32> -> vector<8x32xf32>
    %cst_5 = arith.constant 0.353553385 : f32
    %7 = vector.broadcast %cst_5 : f32 to vector<8x32xf32>
    %8 = arith.mulf %6, %7 : vector<8x32xf32>
    %9 = vector.extract_strided_slice %8 {offsets = [0, 0], sizes = [8, 8], strides = [1, 1]} : vector<8x32xf32> to vector<8x8xf32>
    %c0_6 = arith.constant 0 : index
    %c0_7 = arith.constant 0 : index
    %c0_8 = arith.constant 0 : index
    %10 = vector.load %arg11[%c0_6, %c0_7, %c0_8] : memref<4x8x8xf32, #tpu.memory_space<vmem>>, vector<1x8x8xf32>
    %11 = vector.shape_cast %10 : vector<1x8x8xf32> to vector<8x8xf32>
    %cst_9 = arith.constant dense<0.000000e+00> : vector<8x8xf32>
    %12 = tpu.matmul %9, %11, %cst_9 {dimension_numbers = #tpu.dot_dimension_numbers<[1], [0], [0], [1], [0, 0, 1, 1], [], []>} : vector<8x8xf32>, vector<8x8xf32>, vector<8x8xf32> -> vector<8x8xf32>
    %cst_10 = arith.constant dense<0xFF800000> : vector<8xf32>
    %13 = vector.multi_reduction <maximumf>, %12, %cst_10 [1] : vector<8x8xf32> to vector<8xf32>
    %14 = vector.shape_cast %13 : vector<8xf32> to vector<8x1xf32>
    %15 = vector.broadcast %14 : vector<8x1xf32> to vector<8x8xf32>
    %16 = arith.subf %12, %15 : vector<8x8xf32>
    %17 = math.exp %16 : vector<8x8xf32>
    %cst_11 = arith.constant dense<0.000000e+00> : vector<8xf32>
    %18 = vector.multi_reduction <add>, %17, %cst_11 [1] : vector<8x8xf32> to vector<8xf32>
    %19 = vector.shape_cast %18 : vector<8xf32> to vector<8x1xf32>
    %20 = tpu.reciprocal %19 : vector<8x1xf32> -> vector<8x1xf32>
    %21 = vector.broadcast %20 : vector<8x1xf32> to vector<8x8xf32>
    %22 = arith.mulf %17, %21 : vector<8x8xf32>
    %c0_12 = arith.constant 0 : index
    %c0_13 = arith.constant 0 : index
    %c0_14 = arith.constant 0 : index
    %c0_15 = arith.constant 0 : index
    %23 = vector.load %arg10[%c0_12, %c0_13, %c0_14, %c0_15] : memref<1x4x8x8xf32, #tpu.memory_space<vmem>>, vector<1x1x8x8xf32>
    %24 = vector.shape_cast %23 : vector<1x1x8x8xf32> to vector<8x8xf32>
    %25 = vector.shape_cast %22 : vector<8x8xf32> to vector<1x1x8x8xf32>
    tpu.vector_store %arg10[%c0_12, %c0_13, %c0_14, %c0_15], %25 {strides = array<i32>} : memref<1x4x8x8xf32, #tpu.memory_space<vmem>>, vector<1x1x8x8xf32>,
    %c0_16 = arith.constant 0 : index
    %c0_17 = arith.constant 0 : index
    %c0_18 = arith.constant 0 : index
    %26 = vector.load %arg12[%c0_16, %c0_17, %c0_18] : memref<4x8x8xf32, #tpu.memory_space<vmem>>, vector<1x8x8xf32>
    %27 = vector.shape_cast %26 : vector<1x8x8xf32> to vector<8x8xf32>
    %cst_19 = arith.constant dense<0.000000e+00> : vector<8x8xf32>
    %28 = tpu.matmul %22, %27, %cst_19 {dimension_numbers = #tpu.dot_dimension_numbers<[1], [0], [0], [1], [0, 0, 1, 1], [], []>} : vector<8x8xf32>, vector<8x8xf32>, vector<8x8xf32> -> vector<8x8xf32>
    %29 = vector.extract_strided_slice %8 {offsets = [0, 8], sizes = [8, 8], strides = [1, 1]} : vector<8x32xf32> to vector<8x8xf32>
    %c1 = arith.constant 1 : index
    %c0_20 = arith.constant 0 : index
    %c0_21 = arith.constant 0 : index
    %30 = vector.load %arg11[%c1, %c0_20, %c0_21] : memref<4x8x8xf32, #tpu.memory_space<vmem>>, vector<1x8x8xf32>
    %31 = vector.shape_cast %30 : vector<1x8x8xf32> to vector<8x8xf32>
    %cst_22 = arith.constant dense<0.000000e+00> : vector<8x8xf32>
    %32 = tpu.matmul %29, %31, %cst_22 {dimension_numbers = #tpu.dot_dimension_numbers<[1], [0], [0], [1], [0, 0, 1, 1], [], []>} : vector<8x8xf32>, vector<8x8xf32>, vector<8x8xf32> -> vector<8x8xf32>
    %cst_23 = arith.constant dense<0xFF800000> : vector<8xf32>
    %33 = vector.multi_reduction <maximumf>, %32, %cst_23 [1] : vector<8x8xf32> to vector<8xf32>
    %34 = vector.shape_cast %33 : vector<8xf32> to vector<8x1xf32>
    %35 = vector.broadcast %34 : vector<8x1xf32> to vector<8x8xf32>
    %36 = arith.subf %32, %35 : vector<8x8xf32>
    %37 = math.exp %36 : vector<8x8xf32>
    %cst_24 = arith.constant dense<0.000000e+00> : vector<8xf32>
    %38 = vector.multi_reduction <add>, %37, %cst_24 [1] : vector<8x8xf32> to vector<8xf32>
    %39 = vector.shape_cast %38 : vector<8xf32> to vector<8x1xf32>
    %40 = tpu.reciprocal %39 : vector<8x1xf32> -> vector<8x1xf32>
    %41 = vector.broadcast %40 : vector<8x1xf32> to vector<8x8xf32>
    %42 = arith.mulf %37, %41 : vector<8x8xf32>
    %c0_25 = arith.constant 0 : index
    %c1_26 = arith.constant 1 : index
    %c0_27 = arith.constant 0 : index
    %c0_28 = arith.constant 0 : index
    %43 = vector.load %arg10[%c0_25, %c1_26, %c0_27, %c0_28] : memref<1x4x8x8xf32, #tpu.memory_space<vmem>>, vector<1x1x8x8xf32>
    %44 = vector.shape_cast %43 : vector<1x1x8x8xf32> to vector<8x8xf32>
    %45 = vector.shape_cast %42 : vector<8x8xf32> to vector<1x1x8x8xf32>
    tpu.vector_store %arg10[%c0_25, %c1_26, %c0_27, %c0_28], %45 {strides = array<i32>} : memref<1x4x8x8xf32, #tpu.memory_space<vmem>>, vector<1x1x8x8xf32>,
    %c1_29 = arith.constant 1 : index
    %c0_30 = arith.constant 0 : index
    %c0_31 = arith.constant 0 : index
    %46 = vector.load %arg12[%c1_29, %c0_30, %c0_31] : memref<4x8x8xf32, #tpu.memory_space<vmem>>, vector<1x8x8xf32>
    %47 = vector.shape_cast %46 : vector<1x8x8xf32> to vector<8x8xf32>
    %cst_32 = arith.constant dense<0.000000e+00> : vector<8x8xf32>
    %48 = tpu.matmul %42, %47, %cst_32 {dimension_numbers = #tpu.dot_dimension_numbers<[1], [0], [0], [1], [0, 0, 1, 1], [], []>} : vector<8x8xf32>, vector<8x8xf32>, vector<8x8xf32> -> vector<8x8xf32>
    %49 = vector.extract_strided_slice %8 {offsets = [0, 16], sizes = [8, 8], strides = [1, 1]} : vector<8x32xf32> to vector<8x8xf32>
    %c2 = arith.constant 2 : index
    %c0_33 = arith.constant 0 : index
    %c0_34 = arith.constant 0 : index
    %50 = vector.load %arg11[%c2, %c0_33, %c0_34] : memref<4x8x8xf32, #tpu.memory_space<vmem>>, vector<1x8x8xf32>
    %51 = vector.shape_cast %50 : vector<1x8x8xf32> to vector<8x8xf32>
    %cst_35 = arith.constant dense<0.000000e+00> : vector<8x8xf32>
    %52 = tpu.matmul %49, %51, %cst_35 {dimension_numbers = #tpu.dot_dimension_numbers<[1], [0], [0], [1], [0, 0, 1, 1], [], []>} : vector<8x8xf32>, vector<8x8xf32>, vector<8x8xf32> -> vector<8x8xf32>
    %cst_36 = arith.constant dense<0xFF800000> : vector<8xf32>
    %53 = vector.multi_reduction <maximumf>, %52, %cst_36 [1] : vector<8x8xf32> to vector<8xf32>
    %54 = vector.shape_cast %53 : vector<8xf32> to vector<8x1xf32>
    %55 = vector.broadcast %54 : vector<8x1xf32> to vector<8x8xf32>
    %56 = arith.subf %52, %55 : vector<8x8xf32>
    %57 = math.exp %56 : vector<8x8xf32>
    %cst_37 = arith.constant dense<0.000000e+00> : vector<8xf32>
    %58 = vector.multi_reduction <add>, %57, %cst_37 [1] : vector<8x8xf32> to vector<8xf32>
    %59 = vector.shape_cast %58 : vector<8xf32> to vector<8x1xf32>
    %60 = tpu.reciprocal %59 : vector<8x1xf32> -> vector<8x1xf32>
    %61 = vector.broadcast %60 : vector<8x1xf32> to vector<8x8xf32>
    %62 = arith.mulf %57, %61 : vector<8x8xf32>
    %c0_38 = arith.constant 0 : index
    %c2_39 = arith.constant 2 : index
    %c0_40 = arith.constant 0 : index
    %c0_41 = arith.constant 0 : index
    %63 = vector.load %arg10[%c0_38, %c2_39, %c0_40, %c0_41] : memref<1x4x8x8xf32, #tpu.memory_space<vmem>>, vector<1x1x8x8xf32>
    %64 = vector.shape_cast %63 : vector<1x1x8x8xf32> to vector<8x8xf32>
    %65 = vector.shape_cast %62 : vector<8x8xf32> to vector<1x1x8x8xf32>
    tpu.vector_store %arg10[%c0_38, %c2_39, %c0_40, %c0_41], %65 {strides = array<i32>} : memref<1x4x8x8xf32, #tpu.memory_space<vmem>>, vector<1x1x8x8xf32>,
    %c2_42 = arith.constant 2 : index
    %c0_43 = arith.constant 0 : index
    %c0_44 = arith.constant 0 : index
    %66 = vector.load %arg12[%c2_42, %c0_43, %c0_44] : memref<4x8x8xf32, #tpu.memory_space<vmem>>, vector<1x8x8xf32>
    %67 = vector.shape_cast %66 : vector<1x8x8xf32> to vector<8x8xf32>
    %cst_45 = arith.constant dense<0.000000e+00> : vector<8x8xf32>
    %68 = tpu.matmul %62, %67, %cst_45 {dimension_numbers = #tpu.dot_dimension_numbers<[1], [0], [0], [1], [0, 0, 1, 1], [], []>} : vector<8x8xf32>, vector<8x8xf32>, vector<8x8xf32> -> vector<8x8xf32>
    %69 = vector.extract_strided_slice %8 {offsets = [0, 24], sizes = [8, 8], strides = [1, 1]} : vector<8x32xf32> to vector<8x8xf32>
    %c3 = arith.constant 3 : index
    %c0_46 = arith.constant 0 : index
    %c0_47 = arith.constant 0 : index
    %70 = vector.load %arg11[%c3, %c0_46, %c0_47] : memref<4x8x8xf32, #tpu.memory_space<vmem>>, vector<1x8x8xf32>
    %71 = vector.shape_cast %70 : vector<1x8x8xf32> to vector<8x8xf32>
    %cst_48 = arith.constant dense<0.000000e+00> : vector<8x8xf32>
    %72 = tpu.matmul %69, %71, %cst_48 {dimension_numbers = #tpu.dot_dimension_numbers<[1], [0], [0], [1], [0, 0, 1, 1], [], []>} : vector<8x8xf32>, vector<8x8xf32>, vector<8x8xf32> -> vector<8x8xf32>
    %cst_49 = arith.constant dense<0xFF800000> : vector<8xf32>
    %73 = vector.multi_reduction <maximumf>, %72, %cst_49 [1] : vector<8x8xf32> to vector<8xf32>
    %74 = vector.shape_cast %73 : vector<8xf32> to vector<8x1xf32>
    %75 = vector.broadcast %74 : vector<8x1xf32> to vector<8x8xf32>
    %76 = arith.subf %72, %75 : vector<8x8xf32>
    %77 = math.exp %76 : vector<8x8xf32>
    %cst_50 = arith.constant dense<0.000000e+00> : vector<8xf32>
    %78 = vector.multi_reduction <add>, %77, %cst_50 [1] : vector<8x8xf32> to vector<8xf32>
    %79 = vector.shape_cast %78 : vector<8xf32> to vector<8x1xf32>
    %80 = tpu.reciprocal %79 : vector<8x1xf32> -> vector<8x1xf32>
    %81 = vector.broadcast %80 : vector<8x1xf32> to vector<8x8xf32>
    %82 = arith.mulf %77, %81 : vector<8x8xf32>
    %c0_51 = arith.constant 0 : index
    %c3_52 = arith.constant 3 : index
    %c0_53 = arith.constant 0 : index
    %c0_54 = arith.constant 0 : index
    %83 = vector.load %arg10[%c0_51, %c3_52, %c0_53, %c0_54] : memref<1x4x8x8xf32, #tpu.memory_space<vmem>>, vector<1x1x8x8xf32>
    %84 = vector.shape_cast %83 : vector<1x1x8x8xf32> to vector<8x8xf32>
    %85 = vector.shape_cast %82 : vector<8x8xf32> to vector<1x1x8x8xf32>
    tpu.vector_store %arg10[%c0_51, %c3_52, %c0_53, %c0_54], %85 {strides = array<i32>} : memref<1x4x8x8xf32, #tpu.memory_space<vmem>>, vector<1x1x8x8xf32>,
    %c3_55 = arith.constant 3 : index
    %c0_56 = arith.constant 0 : index
    %c0_57 = arith.constant 0 : index
    %86 = vector.load %arg12[%c3_55, %c0_56, %c0_57] : memref<4x8x8xf32, #tpu.memory_space<vmem>>, vector<1x8x8xf32>
    %87 = vector.shape_cast %86 : vector<1x8x8xf32> to vector<8x8xf32>
    %cst_58 = arith.constant dense<0.000000e+00> : vector<8x8xf32>
    %88 = tpu.matmul %82, %87, %cst_58 {dimension_numbers = #tpu.dot_dimension_numbers<[1], [0], [0], [1], [0, 0, 1, 1], [], []>} : vector<8x8xf32>, vector<8x8xf32>, vector<8x8xf32> -> vector<8x8xf32>
    %89 = tpu.concatenate %28, %48, %68, %88 in 1 : vector<8x8xf32>, vector<8x8xf32>, vector<8x8xf32>, vector<8x8xf32> -> vector<8x32xf32>
    %c0_59 = arith.constant 0 : index
    %c0_60 = arith.constant 0 : index
    %90 = vector.load %arg8[%c0_59, %c0_60] : memref<32x32xf32, #tpu.memory_space<vmem>>, vector<32x32xf32>
    %cst_61 = arith.constant dense<0.000000e+00> : vector<8x32xf32>
    %91 = tpu.matmul %89, %90, %cst_61 {dimension_numbers = #tpu.dot_dimension_numbers<[1], [0], [0], [1], [0, 0, 1, 1], [], []>} : vector<8x32xf32>, vector<32x32xf32>, vector<8x32xf32> -> vector<8x32xf32>
    %c0_62 = arith.constant 0 : index
    %c0_63 = arith.constant 0 : index
    %c0_64 = arith.constant 0 : index
    %92 = vector.load %arg9[%c0_62, %c0_63, %c0_64] : memref<1x8x32xf32, #tpu.memory_space<vmem>>, vector<1x8x32xf32>
    %93 = vector.shape_cast %92 : vector<1x8x32xf32> to vector<8x32xf32>
    %94 = vector.shape_cast %91 : vector<8x32xf32> to vector<1x8x32xf32>
    tpu.vector_store %arg9[%c0_62, %c0_63, %c0_64], %94 {strides = array<i32>} : memref<1x8x32xf32, #tpu.memory_space<vmem>>, vector<1x8x32xf32>,
    return
  }
  func.func @transform_0(%arg0: i32, %arg1: i32) -> (i32, i32, i32) {
    %c0_i32 = arith.constant 0 : i32
    %c0_i32_0 = arith.constant 0 : i32
    return %arg0, %arg1, %c0_i32 : i32, i32, i32
  }
  func.func @transform_1(%arg0: i32, %arg1: i32) -> (i32, i32, i32) {
    %c0_i32 = arith.constant 0 : i32
    %c0_i32_0 = arith.constant 0 : i32
    %c0_i32_1 = arith.constant 0 : i32
    return %arg0, %c0_i32, %c0_i32_0 : i32, i32, i32
  }
  func.func @transform_2(%arg0: i32, %arg1: i32) -> (i32, i32, i32) {
    %c0_i32 = arith.constant 0 : i32
    %c0_i32_0 = arith.constant 0 : i32
    %c0_i32_1 = arith.constant 0 : i32
    return %arg0, %c0_i32, %c0_i32_0 : i32, i32, i32
  }
  func.func @transform_3(%arg0: i32, %arg1: i32) -> (i32, i32) {
    %c0_i32 = arith.constant 0 : i32
    %c0_i32_0 = arith.constant 0 : i32
    %c0_i32_1 = arith.constant 0 : i32
    return %c0_i32, %c0_i32_0 : i32, i32
  }
  func.func @transform_4(%arg0: i32, %arg1: i32) -> (i32, i32) {
    %c0_i32 = arith.constant 0 : i32
    %c0_i32_0 = arith.constant 0 : i32
    %c0_i32_1 = arith.constant 0 : i32
    return %c0_i32, %c0_i32_0 : i32, i32
  }
  func.func @transform_5(%arg0: i32, %arg1: i32) -> (i32, i32) {
    %c0_i32 = arith.constant 0 : i32
    %c0_i32_0 = arith.constant 0 : i32
    %c0_i32_1 = arith.constant 0 : i32
    return %c0_i32, %c0_i32_0 : i32, i32
  }
  func.func @transform_6(%arg0: i32, %arg1: i32) -> (i32, i32) {
    %c0_i32 = arith.constant 0 : i32
    %c0_i32_0 = arith.constant 0 : i32
    %c0_i32_1 = arith.constant 0 : i32
    return %c0_i32, %c0_i32_0 : i32, i32
  }
  func.func @transform_7(%arg0: i32, %arg1: i32) -> (i32, i32, i32) {
    %c0_i32 = arith.constant 0 : i32
    %c0_i32_0 = arith.constant 0 : i32
    return %arg0, %arg1, %c0_i32 : i32, i32, i32
  }
  func.func @transform_8(%arg0: i32, %arg1: i32) -> (i32, i32, i32, i32) {
    %c0_i32 = arith.constant 0 : i32
    %c0_i32_0 = arith.constant 0 : i32
    %c0_i32_1 = arith.constant 0 : i32
    return %arg0, %c0_i32, %arg1, %c0_i32_0 : i32, i32, i32, i32
  }
}

module attributes {stable_mosaic.version = 11 : i64} {
  func.func @kernel(%arg0: i32, %arg1: i32, %arg2: memref<1x8x32xf32, #tpu.memory_space<vmem>>, %arg3: memref<1x8x32xf32, #tpu.memory_space<vmem>>, %arg4: memref<1x8x32xf32, #tpu.memory_space<vmem>>, %arg5: memref<32x32xf32, #tpu.memory_space<vmem>>, %arg6: memref<32x32xf32, #tpu.memory_space<vmem>>, %arg7: memref<32x32xf32, #tpu.memory_space<vmem>>, %arg8: memref<32x32xf32, #tpu.memory_space<vmem>>, %arg9: memref<1x8x32xf32, #tpu.memory_space<vmem>>, %arg10: memref<1x4x8x8xf32, #tpu.memory_space<vmem>>, %arg11: memref<4x8x8xf32, #tpu.memory_space<vmem>>, %arg12: memref<4x8x8xf32, #tpu.memory_space<vmem>>) attributes {dimension_semantics = [#tpu.dimension_semantics<parallel>, #tpu.dimension_semantics<arbitrary>], iteration_bounds = array<i64: 2, 1>, scalar_prefetch = 0 : i64, scratch_operands = 2 : i64, tpu.core_type = #tpu.core_type<tc>, window_params = [{transform_indices = @transform_0, window_bounds = array<i64: 1, 8, 32>}, {transform_indices = @transform_1, window_bounds = array<i64: 1, 8, 32>}, {transform_indices = @transform_2, window_bounds = array<i64: 1, 8, 32>}, {pipeline_mode = #tpu.pipeline_mode<synchronous>, transform_indices = @transform_3, window_bounds = array<i64: 32, 32>}, {pipeline_mode = #tpu.pipeline_mode<synchronous>, transform_indices = @transform_4, window_bounds = array<i64: 32, 32>}, {pipeline_mode = #tpu.pipeline_mode<synchronous>, transform_indices = @transform_5, window_bounds = array<i64: 32, 32>}, {pipeline_mode = #tpu.pipeline_mode<synchronous>, transform_indices = @transform_6, window_bounds = array<i64: 32, 32>}, {transform_indices = @transform_7, window_bounds = array<i64: 1, 8, 32>}, {transform_indices = @transform_8, window_bounds = array<i64: 1, 4, 8, 8>}]} {
    %c0_i32 = arith.constant 0 : i32
    %0 = arith.cmpi eq, %arg1, %c0_i32 : i32
    %1 = arith.extui %0 : i1 to i32
    %c0_i32_0 = arith.constant 0 : i32
    %2 = arith.cmpi ne, %1, %c0_i32_0 : i32
    scf.if %2 {
      %c0_65 = arith.constant 0 : index
      %c0_66 = arith.constant 0 : index
      %c0_67 = arith.constant 0 : index
      %95 = vector.load %arg3[%c0_65, %c0_66, %c0_67] : memref<1x8x32xf32, #tpu.memory_space<vmem>>, vector<1x8x32xf32>
      %96 = vector.shape_cast %95 : vector<1x8x32xf32> to vector<8x32xf32>
      %c0_68 = arith.constant 0 : index
      %c0_69 = arith.constant 0 : index
      %97 = vector.load %arg6[%c0_68, %c0_69] : memref<32x32xf32, #tpu.memory_space<vmem>>, vector<32x32xf32>
      %cst_70 = arith.constant dense<0.000000e+00> : vector<8x32xf32>
      %98 = tpu.matmul %96, %97, %cst_70 {dimension_numbers = #tpu.dot_dimension_numbers<[1], [0], [0], [1], [0, 0, 1, 1], [], []>} : vector<8x32xf32>, vector<32x32xf32>, vector<8x32xf32> -> vector<8x32xf32>
      %c0_71 = arith.constant 0 : index
      %c0_72 = arith.constant 0 : index
      %c0_73 = arith.constant 0 : index
      %99 = vector.load %arg4[%c0_71, %c0_72, %c0_73] : memref<1x8x32xf32, #tpu.memory_space<vmem>>, vector<1x8x32xf32>
      %100 = vector.shape_cast %99 : vector<1x8x32xf32> to vector<8x32xf32>
      %c0_74 = arith.constant 0 : index
      %c0_75 = arith.constant 0 : index
      %101 = vector.load %arg7[%c0_74, %c0_75] : memref<32x32xf32, #tpu.memory_space<vmem>>, vector<32x32xf32>
      %cst_76 = arith.constant dense<0.000000e+00> : vector<8x32xf32>
      %102 = tpu.matmul %100, %101, %cst_76 {dimension_numbers = #tpu.dot_dimension_numbers<[1], [0], [0], [1], [0, 0, 1, 1], [], []>} : vector<8x32xf32>, vector<32x32xf32>, vector<8x32xf32> -> vector<8x32xf32>
      %103 = vector.extract_strided_slice %98 {offsets = [0, 0], sizes = [8, 8], strides = [1, 1]} : vector<8x32xf32> to vector<8x8xf32>
      %104 = tpu.transpose %103, [1, 0] : vector<8x8xf32> -> vector<8x8xf32>
      %c0_77 = arith.constant 0 : index
      %c0_78 = arith.constant 0 : index
      %c0_79 = arith.constant 0 : index
      %105 = vector.load %arg11[%c0_77, %c0_78, %c0_79] : memref<4x8x8xf32, #tpu.memory_space<vmem>>, vector<1x8x8xf32>
      %106 = vector.shape_cast %105 : vector<1x8x8xf32> to vector<8x8xf32>
      %107 = vector.shape_cast %104 : vector<8x8xf32> to vector<1x8x8xf32>
      tpu.vector_store %arg11[%c0_77, %c0_78, %c0_79], %107 {strides = array<i32>} : memref<4x8x8xf32, #tpu.memory_space<vmem>>, vector<1x8x8xf32>,
      %108 = vector.extract_strided_slice %102 {offsets = [0, 0], sizes = [8, 8], strides = [1, 1]} : vector<8x32xf32> to vector<8x8xf32>
      %c0_80 = arith.constant 0 : index
      %c0_81 = arith.constant 0 : index
      %c0_82 = arith.constant 0 : index
      %109 = vector.load %arg12[%c0_80, %c0_81, %c0_82] : memref<4x8x8xf32, #tpu.memory_space<vmem>>, vector<1x8x8xf32>
      %110 = vector.shape_cast %109 : vector<1x8x8xf32> to vector<8x8xf32>
      %111 = vector.shape_cast %108 : vector<8x8xf32> to vector<1x8x8xf32>
      tpu.vector_store %arg12[%c0_80, %c0_81, %c0_82], %111 {strides = array<i32>} : memref<4x8x8xf32, #tpu.memory_space<vmem>>, vector<1x8x8xf32>,
      %112 = vector.extract_strided_slice %98 {offsets = [0, 8], sizes = [8, 8], strides = [1, 1]} : vector<8x32xf32> to vector<8x8xf32>
      %113 = tpu.transpose %112, [1, 0] : vector<8x8xf32> -> vector<8x8xf32>
      %c1_83 = arith.constant 1 : index
      %c0_84 = arith.constant 0 : index
      %c0_85 = arith.constant 0 : index
      %114 = vector.load %arg11[%c1_83, %c0_84, %c0_85] : memref<4x8x8xf32, #tpu.memory_space<vmem>>, vector<1x8x8xf32>
      %115 = vector.shape_cast %114 : vector<1x8x8xf32> to vector<8x8xf32>
      %116 = vector.shape_cast %113 : vector<8x8xf32> to vector<1x8x8xf32>
      tpu.vector_store %arg11[%c1_83, %c0_84, %c0_85], %116 {strides = array<i32>} : memref<4x8x8xf32, #tpu.memory_space<vmem>>, vector<1x8x8xf32>,
      %117 = vector.extract_strided_slice %102 {offsets = [0, 8], sizes = [8, 8], strides = [1, 1]} : vector<8x32xf32> to vector<8x8xf32>
      %c1_86 = arith.constant 1 : index
      %c0_87 = arith.constant 0 : index
      %c0_88 = arith.constant 0 : index
      %118 = vector.load %arg12[%c1_86, %c0_87, %c0_88] : memref<4x8x8xf32, #tpu.memory_space<vmem>>, vector<1x8x8xf32>
      %119 = vector.shape_cast %118 : vector<1x8x8xf32> to vector<8x8xf32>
      %120 = vector.shape_cast %117 : vector<8x8xf32> to vector<1x8x8xf32>
      tpu.vector_store %arg12[%c1_86, %c0_87, %c0_88], %120 {strides = array<i32>} : memref<4x8x8xf32, #tpu.memory_space<vmem>>, vector<1x8x8xf32>,
      %121 = vector.extract_strided_slice %98 {offsets = [0, 16], sizes = [8, 8], strides = [1, 1]} : vector<8x32xf32> to vector<8x8xf32>
      %122 = tpu.transpose %121, [1, 0] : vector<8x8xf32> -> vector<8x8xf32>
      %c2_89 = arith.constant 2 : index
      %c0_90 = arith.constant 0 : index
      %c0_91 = arith.constant 0 : index
      %123 = vector.load %arg11[%c2_89, %c0_90, %c0_91] : memref<4x8x8xf32, #tpu.memory_space<vmem>>, vector<1x8x8xf32>
      %124 = vector.shape_cast %123 : vector<1x8x8xf32> to vector<8x8xf32>
      %125 = vector.shape_cast %122 : vector<8x8xf32> to vector<1x8x8xf32>
      tpu.vector_store %arg11[%c2_89, %c0_90, %c0_91], %125 {strides = array<i32>} : memref<4x8x8xf32, #tpu.memory_space<vmem>>, vector<1x8x8xf32>,
      %126 = vector.extract_strided_slice %102 {offsets = [0, 16], sizes = [8, 8], strides = [1, 1]} : vector<8x32xf32> to vector<8x8xf32>
      %c2_92 = arith.constant 2 : index
      %c0_93 = arith.constant 0 : index
      %c0_94 = arith.constant 0 : index
      %127 = vector.load %arg12[%c2_92, %c0_93, %c0_94] : memref<4x8x8xf32, #tpu.memory_space<vmem>>, vector<1x8x8xf32>
      %128 = vector.shape_cast %127 : vector<1x8x8xf32> to vector<8x8xf32>
      %129 = vector.shape_cast %126 : vector<8x8xf32> to vector<1x8x8xf32>
      tpu.vector_store %arg12[%c2_92, %c0_93, %c0_94], %129 {strides = array<i32>} : memref<4x8x8xf32, #tpu.memory_space<vmem>>, vector<1x8x8xf32>,
      %130 = vector.extract_strided_slice %98 {offsets = [0, 24], sizes = [8, 8], strides = [1, 1]} : vector<8x32xf32> to vector<8x8xf32>
      %131 = tpu.transpose %130, [1, 0] : vector<8x8xf32> -> vector<8x8xf32>
      %c3_95 = arith.constant 3 : index
      %c0_96 = arith.constant 0 : index
      %c0_97 = arith.constant 0 : index
      %132 = vector.load %arg11[%c3_95, %c0_96, %c0_97] : memref<4x8x8xf32, #tpu.memory_space<vmem>>, vector<1x8x8xf32>
      %133 = vector.shape_cast %132 : vector<1x8x8xf32> to vector<8x8xf32>
      %134 = vector.shape_cast %131 : vector<8x8xf32> to vector<1x8x8xf32>
      tpu.vector_store %arg11[%c3_95, %c0_96, %c0_97], %134 {strides = array<i32>} : memref<4x8x8xf32, #tpu.memory_space<vmem>>, vector<1x8x8xf32>,
      %135 = vector.extract_strided_slice %102 {offsets = [0, 24], sizes = [8, 8], strides = [1, 1]} : vector<8x32xf32> to vector<8x8xf32>
      %c3_98 = arith.constant 3 : index
      %c0_99 = arith.constant 0 : index
      %c0_100 = arith.constant 0 : index
      %136 = vector.load %arg12[%c3_98, %c0_99, %c0_100] : memref<4x8x8xf32, #tpu.memory_space<vmem>>, vector<1x8x8xf32>
      %137 = vector.shape_cast %136 : vector<1x8x8xf32> to vector<8x8xf32>
      %138 = vector.shape_cast %135 : vector<8x8xf32> to vector<1x8x8xf32>
      tpu.vector_store %arg12[%c3_98, %c0_99, %c0_100], %138 {strides = array<i32>} : memref<4x8x8xf32, #tpu.memory_space<vmem>>, vector<1x8x8xf32>,
    } else {
    }
    %c0 = arith.constant 0 : index
    %c0_1 = arith.constant 0 : index
    %c0_2 = arith.constant 0 : index
    %3 = vector.load %arg2[%c0, %c0_1, %c0_2] : memref<1x8x32xf32, #tpu.memory_space<vmem>>, vector<1x8x32xf32>
    %4 = vector.shape_cast %3 : vector<1x8x32xf32> to vector<8x32xf32>
    %c0_3 = arith.constant 0 : index
    %c0_4 = arith.constant 0 : index
    %5 = vector.load %arg5[%c0_3, %c0_4] : memref<32x32xf32, #tpu.memory_space<vmem>>, vector<32x32xf32>
    %cst = arith.constant dense<0.000000e+00> : vector<8x32xf32>
    %6 = tpu.matmul %4, %5, %cst {dimension_numbers = #tpu.dot_dimension_numbers<[1], [0], [0], [1], [0, 0, 1, 1], [], []>} : vector<8x32xf32>, vector<32x32xf32>, vector<8x32xf32> -> vector<8x32xf32>
    %cst_5 = arith.constant 0.353553385 : f32
    %7 = vector.broadcast %cst_5 : f32 to vector<8x32xf32>
    %8 = arith.mulf %6, %7 : vector<8x32xf32>
    %9 = vector.extract_strided_slice %8 {offsets = [0, 0], sizes = [8, 8], strides = [1, 1]} : vector<8x32xf32> to vector<8x8xf32>
    %c0_6 = arith.constant 0 : index
    %c0_7 = arith.constant 0 : index
    %c0_8 = arith.constant 0 : index
    %10 = vector.load %arg11[%c0_6, %c0_7, %c0_8] : memref<4x8x8xf32, #tpu.memory_space<vmem>>, vector<1x8x8xf32>
    %11 = vector.shape_cast %10 : vector<1x8x8xf32> to vector<8x8xf32>
    %cst_9 = arith.constant dense<0.000000e+00> : vector<8x8xf32>
    %12 = tpu.matmul %9, %11, %cst_9 {dimension_numbers = #tpu.dot_dimension_numbers<[1], [0], [0], [1], [0, 0, 1, 1], [], []>} : vector<8x8xf32>, vector<8x8xf32>, vector<8x8xf32> -> vector<8x8xf32>
    %cst_10 = arith.constant dense<0xFF800000> : vector<8xf32>
    %13 = vector.multi_reduction <maximumf>, %12, %cst_10 [1] : vector<8x8xf32> to vector<8xf32>
    %14 = vector.shape_cast %13 : vector<8xf32> to vector<8x1xf32>
    %15 = vector.broadcast %14 : vector<8x1xf32> to vector<8x8xf32>
    %16 = arith.subf %12, %15 : vector<8x8xf32>
    %17 = math.exp %16 : vector<8x8xf32>
    %cst_11 = arith.constant dense<0.000000e+00> : vector<8xf32>
    %18 = vector.multi_reduction <add>, %17, %cst_11 [1] : vector<8x8xf32> to vector<8xf32>
    %19 = vector.shape_cast %18 : vector<8xf32> to vector<8x1xf32>
    %20 = tpu.reciprocal %19 : vector<8x1xf32> -> vector<8x1xf32>
    %21 = vector.broadcast %20 : vector<8x1xf32> to vector<8x8xf32>
    %22 = arith.mulf %17, %21 : vector<8x8xf32>
    %c0_12 = arith.constant 0 : index
    %c0_13 = arith.constant 0 : index
    %c0_14 = arith.constant 0 : index
    %c0_15 = arith.constant 0 : index
    %23 = vector.load %arg10[%c0_12, %c0_13, %c0_14, %c0_15] : memref<1x4x8x8xf32, #tpu.memory_space<vmem>>, vector<1x1x8x8xf32>
    %24 = vector.shape_cast %23 : vector<1x1x8x8xf32> to vector<8x8xf32>
    %25 = vector.shape_cast %22 : vector<8x8xf32> to vector<1x1x8x8xf32>
    tpu.vector_store %arg10[%c0_12, %c0_13, %c0_14, %c0_15], %25 {strides = array<i32>} : memref<1x4x8x8xf32, #tpu.memory_space<vmem>>, vector<1x1x8x8xf32>,
    %c0_16 = arith.constant 0 : index
    %c0_17 = arith.constant 0 : index
    %c0_18 = arith.constant 0 : index
    %26 = vector.load %arg12[%c0_16, %c0_17, %c0_18] : memref<4x8x8xf32, #tpu.memory_space<vmem>>, vector<1x8x8xf32>
    %27 = vector.shape_cast %26 : vector<1x8x8xf32> to vector<8x8xf32>
    %cst_19 = arith.constant dense<0.000000e+00> : vector<8x8xf32>
    %28 = tpu.matmul %22, %27, %cst_19 {dimension_numbers = #tpu.dot_dimension_numbers<[1], [0], [0], [1], [0, 0, 1, 1], [], []>} : vector<8x8xf32>, vector<8x8xf32>, vector<8x8xf32> -> vector<8x8xf32>
    %29 = vector.extract_strided_slice %8 {offsets = [0, 8], sizes = [8, 8], strides = [1, 1]} : vector<8x32xf32> to vector<8x8xf32>
    %c1 = arith.constant 1 : index
    %c0_20 = arith.constant 0 : index
    %c0_21 = arith.constant 0 : index
    %30 = vector.load %arg11[%c1, %c0_20, %c0_21] : memref<4x8x8xf32, #tpu.memory_space<vmem>>, vector<1x8x8xf32>
    %31 = vector.shape_cast %30 : vector<1x8x8xf32> to vector<8x8xf32>
    %cst_22 = arith.constant dense<0.000000e+00> : vector<8x8xf32>
    %32 = tpu.matmul %29, %31, %cst_22 {dimension_numbers = #tpu.dot_dimension_numbers<[1], [0], [0], [1], [0, 0, 1, 1], [], []>} : vector<8x8xf32>, vector<8x8xf32>, vector<8x8xf32> -> vector<8x8xf32>
    %cst_23 = arith.constant dense<0xFF800000> : vector<8xf32>
    %33 = vector.multi_reduction <maximumf>, %32, %cst_23 [1] : vector<8x8xf32> to vector<8xf32>
    %34 = vector.shape_cast %33 : vector<8xf32> to vector<8x1xf32>
    %35 = vector.broadcast %34 : vector<8x1xf32> to vector<8x8xf32>
    %36 = arith.subf %32, %35 : vector<8x8xf32>
    %37 = math.exp %36 : vector<8x8xf32>
    %cst_24 = arith.constant dense<0.000000e+00> : vector<8xf32>
    %38 = vector.multi_reduction <add>, %37, %cst_24 [1] : vector<8x8xf32> to vector<8xf32>
    %39 = vector.shape_cast %38 : vector<8xf32> to vector<8x1xf32>
    %40 = tpu.reciprocal %39 : vector<8x1xf32> -> vector<8x1xf32>
    %41 = vector.broadcast %40 : vector<8x1xf32> to vector<8x8xf32>
    %42 = arith.mulf %37, %41 : vector<8x8xf32>
    %c0_25 = arith.constant 0 : index
    %c1_26 = arith.constant 1 : index
    %c0_27 = arith.constant 0 : index
    %c0_28 = arith.constant 0 : index
    %43 = vector.load %arg10[%c0_25, %c1_26, %c0_27, %c0_28] : memref<1x4x8x8xf32, #tpu.memory_space<vmem>>, vector<1x1x8x8xf32>
    %44 = vector.shape_cast %43 : vector<1x1x8x8xf32> to vector<8x8xf32>
    %45 = vector.shape_cast %42 : vector<8x8xf32> to vector<1x1x8x8xf32>
    tpu.vector_store %arg10[%c0_25, %c1_26, %c0_27, %c0_28], %45 {strides = array<i32>} : memref<1x4x8x8xf32, #tpu.memory_space<vmem>>, vector<1x1x8x8xf32>,
    %c1_29 = arith.constant 1 : index
    %c0_30 = arith.constant 0 : index
    %c0_31 = arith.constant 0 : index
    %46 = vector.load %arg12[%c1_29, %c0_30, %c0_31] : memref<4x8x8xf32, #tpu.memory_space<vmem>>, vector<1x8x8xf32>
    %47 = vector.shape_cast %46 : vector<1x8x8xf32> to vector<8x8xf32>
    %cst_32 = arith.constant dense<0.000000e+00> : vector<8x8xf32>
    %48 = tpu.matmul %42, %47, %cst_32 {dimension_numbers = #tpu.dot_dimension_numbers<[1], [0], [0], [1], [0, 0, 1, 1], [], []>} : vector<8x8xf32>, vector<8x8xf32>, vector<8x8xf32> -> vector<8x8xf32>
    %49 = vector.extract_strided_slice %8 {offsets = [0, 16], sizes = [8, 8], strides = [1, 1]} : vector<8x32xf32> to vector<8x8xf32>
    %c2 = arith.constant 2 : index
    %c0_33 = arith.constant 0 : index
    %c0_34 = arith.constant 0 : index
    %50 = vector.load %arg11[%c2, %c0_33, %c0_34] : memref<4x8x8xf32, #tpu.memory_space<vmem>>, vector<1x8x8xf32>
    %51 = vector.shape_cast %50 : vector<1x8x8xf32> to vector<8x8xf32>
    %cst_35 = arith.constant dense<0.000000e+00> : vector<8x8xf32>
    %52 = tpu.matmul %49, %51, %cst_35 {dimension_numbers = #tpu.dot_dimension_numbers<[1], [0], [0], [1], [0, 0, 1, 1], [], []>} : vector<8x8xf32>, vector<8x8xf32>, vector<8x8xf32> -> vector<8x8xf32>
    %cst_36 = arith.constant dense<0xFF800000> : vector<8xf32>
    %53 = vector.multi_reduction <maximumf>, %52, %cst_36 [1] : vector<8x8xf32> to vector<8xf32>
    %54 = vector.shape_cast %53 : vector<8xf32> to vector<8x1xf32>
    %55 = vector.broadcast %54 : vector<8x1xf32> to vector<8x8xf32>
    %56 = arith.subf %52, %55 : vector<8x8xf32>
    %57 = math.exp %56 : vector<8x8xf32>
    %cst_37 = arith.constant dense<0.000000e+00> : vector<8xf32>
    %58 = vector.multi_reduction <add>, %57, %cst_37 [1] : vector<8x8xf32> to vector<8xf32>
    %59 = vector.shape_cast %58 : vector<8xf32> to vector<8x1xf32>
    %60 = tpu.reciprocal %59 : vector<8x1xf32> -> vector<8x1xf32>
    %61 = vector.broadcast %60 : vector<8x1xf32> to vector<8x8xf32>
    %62 = arith.mulf %57, %61 : vector<8x8xf32>
    %c0_38 = arith.constant 0 : index
    %c2_39 = arith.constant 2 : index
    %c0_40 = arith.constant 0 : index
    %c0_41 = arith.constant 0 : index
    %63 = vector.load %arg10[%c0_38, %c2_39, %c0_40, %c0_41] : memref<1x4x8x8xf32, #tpu.memory_space<vmem>>, vector<1x1x8x8xf32>
    %64 = vector.shape_cast %63 : vector<1x1x8x8xf32> to vector<8x8xf32>
    %65 = vector.shape_cast %62 : vector<8x8xf32> to vector<1x1x8x8xf32>
    tpu.vector_store %arg10[%c0_38, %c2_39, %c0_40, %c0_41], %65 {strides = array<i32>} : memref<1x4x8x8xf32, #tpu.memory_space<vmem>>, vector<1x1x8x8xf32>,
    %c2_42 = arith.constant 2 : index
    %c0_43 = arith.constant 0 : index
    %c0_44 = arith.constant 0 : index
    %66 = vector.load %arg12[%c2_42, %c0_43, %c0_44] : memref<4x8x8xf32, #tpu.memory_space<vmem>>, vector<1x8x8xf32>
    %67 = vector.shape_cast %66 : vector<1x8x8xf32> to vector<8x8xf32>
    %cst_45 = arith.constant dense<0.000000e+00> : vector<8x8xf32>
    %68 = tpu.matmul %62, %67, %cst_45 {dimension_numbers = #tpu.dot_dimension_numbers<[1], [0], [0], [1], [0, 0, 1, 1], [], []>} : vector<8x8xf32>, vector<8x8xf32>, vector<8x8xf32> -> vector<8x8xf32>
    %69 = vector.extract_strided_slice %8 {offsets = [0, 24], sizes = [8, 8], strides = [1, 1]} : vector<8x32xf32> to vector<8x8xf32>
    %c3 = arith.constant 3 : index
    %c0_46 = arith.constant 0 : index
    %c0_47 = arith.constant 0 : index
    %70 = vector.load %arg11[%c3, %c0_46, %c0_47] : memref<4x8x8xf32, #tpu.memory_space<vmem>>, vector<1x8x8xf32>
    %71 = vector.shape_cast %70 : vector<1x8x8xf32> to vector<8x8xf32>
    %cst_48 = arith.constant dense<0.000000e+00> : vector<8x8xf32>
    %72 = tpu.matmul %69, %71, %cst_48 {dimension_numbers = #tpu.dot_dimension_numbers<[1], [0], [0], [1], [0, 0, 1, 1], [], []>} : vector<8x8xf32>, vector<8x8xf32>, vector<8x8xf32> -> vector<8x8xf32>
    %cst_49 = arith.constant dense<0xFF800000> : vector<8xf32>
    %73 = vector.multi_reduction <maximumf>, %72, %cst_49 [1] : vector<8x8xf32> to vector<8xf32>
    %74 = vector.shape_cast %73 : vector<8xf32> to vector<8x1xf32>
    %75 = vector.broadcast %74 : vector<8x1xf32> to vector<8x8xf32>
    %76 = arith.subf %72, %75 : vector<8x8xf32>
    %77 = math.exp %76 : vector<8x8xf32>
    %cst_50 = arith.constant dense<0.000000e+00> : vector<8xf32>
    %78 = vector.multi_reduction <add>, %77, %cst_50 [1] : vector<8x8xf32> to vector<8xf32>
    %79 = vector.shape_cast %78 : vector<8xf32> to vector<8x1xf32>
    %80 = tpu.reciprocal %79 : vector<8x1xf32> -> vector<8x1xf32>
    %81 = vector.broadcast %80 : vector<8x1xf32> to vector<8x8xf32>
    %82 = arith.mulf %77, %81 : vector<8x8xf32>
    %c0_51 = arith.constant 0 : index
    %c3_52 = arith.constant 3 : index
    %c0_53 = arith.constant 0 : index
    %c0_54 = arith.constant 0 : index
    %83 = vector.load %arg10[%c0_51, %c3_52, %c0_53, %c0_54] : memref<1x4x8x8xf32, #tpu.memory_space<vmem>>, vector<1x1x8x8xf32>
    %84 = vector.shape_cast %83 : vector<1x1x8x8xf32> to vector<8x8xf32>
    %85 = vector.shape_cast %82 : vector<8x8xf32> to vector<1x1x8x8xf32>
    tpu.vector_store %arg10[%c0_51, %c3_52, %c0_53, %c0_54], %85 {strides = array<i32>} : memref<1x4x8x8xf32, #tpu.memory_space<vmem>>, vector<1x1x8x8xf32>,
    %c3_55 = arith.constant 3 : index
    %c0_56 = arith.constant 0 : index
    %c0_57 = arith.constant 0 : index
    %86 = vector.load %arg12[%c3_55, %c0_56, %c0_57] : memref<4x8x8xf32, #tpu.memory_space<vmem>>, vector<1x8x8xf32>
    %87 = vector.shape_cast %86 : vector<1x8x8xf32> to vector<8x8xf32>
    %cst_58 = arith.constant dense<0.000000e+00> : vector<8x8xf32>
    %88 = tpu.matmul %82, %87, %cst_58 {dimension_numbers = #tpu.dot_dimension_numbers<[1], [0], [0], [1], [0, 0, 1, 1], [], []>} : vector<8x8xf32>, vector<8x8xf32>, vector<8x8xf32> -> vector<8x8xf32>
    %89 = tpu.concatenate %28, %48, %68, %88 in 1 : vector<8x8xf32>, vector<8x8xf32>, vector<8x8xf32>, vector<8x8xf32> -> vector<8x32xf32>
    %c0_59 = arith.constant 0 : index
    %c0_60 = arith.constant 0 : index
    %90 = vector.load %arg8[%c0_59, %c0_60] : memref<32x32xf32, #tpu.memory_space<vmem>>, vector<32x32xf32>
    %cst_61 = arith.constant dense<0.000000e+00> : vector<8x32xf32>
    %91 = tpu.matmul %89, %90, %cst_61 {dimension_numbers = #tpu.dot_dimension_numbers<[1], [0], [0], [1], [0, 0, 1, 1], [], []>} : vector<8x32xf32>, vector<32x32xf32>, vector<8x32xf32> -> vector<8x32xf32>
    %c0_62 = arith.constant 0 : index
    %c0_63 = arith.constant 0 : index
    %c0_64 = arith.constant 0 : index
    %92 = vector.load %arg9[%c0_62, %c0_63, %c0_64] : memref<1x8x32xf32, #tpu.memory_space<vmem>>, vector<1x8x32xf32>
    %93 = vector.shape_cast %92 : vector<1x8x32xf32> to vector<8x32xf32>
    %94 = vector.shape_cast %91 : vector<8x32xf32> to vector<1x8x32xf32>
    tpu.vector_store %arg9[%c0_62, %c0_63, %c0_64], %94 {strides = array<i32>} : memref<1x8x32xf32, #tpu.memory_space<vmem>>, vector<1x8x32xf32>,
    return
  }
  func.func @transform_0(%arg0: i32, %arg1: i32) -> (i32, i32, i32) {
    %c0_i32 = arith.constant 0 : i32
    %c0_i32_0 = arith.constant 0 : i32
    return %arg0, %arg1, %c0_i32 : i32, i32, i32
  }
  func.func @transform_1(%arg0: i32, %arg1: i32) -> (i32, i32, i32) {
    %c0_i32 = arith.constant 0 : i32
    %c0_i32_0 = arith.constant 0 : i32
    %c0_i32_1 = arith.constant 0 : i32
    return %arg0, %c0_i32, %c0_i32_0 : i32, i32, i32
  }
  func.func @transform_2(%arg0: i32, %arg1: i32) -> (i32, i32, i32) {
    %c0_i32 = arith.constant 0 : i32
    %c0_i32_0 = arith.constant 0 : i32
    %c0_i32_1 = arith.constant 0 : i32
    return %arg0, %c0_i32, %c0_i32_0 : i32, i32, i32
  }
  func.func @transform_3(%arg0: i32, %arg1: i32) -> (i32, i32) {
    %c0_i32 = arith.constant 0 : i32
    %c0_i32_0 = arith.constant 0 : i32
    %c0_i32_1 = arith.constant 0 : i32
    return %c0_i32, %c0_i32_0 : i32, i32
  }
  func.func @transform_4(%arg0: i32, %arg1: i32) -> (i32, i32) {
    %c0_i32 = arith.constant 0 : i32
    %c0_i32_0 = arith.constant 0 : i32
    %c0_i32_1 = arith.constant 0 : i32
    return %c0_i32, %c0_i32_0 : i32, i32
  }
  func.func @transform_5(%arg0: i32, %arg1: i32) -> (i32, i32) {
    %c0_i32 = arith.constant 0 : i32
    %c0_i32_0 = arith.constant 0 : i32
    %c0_i32_1 = arith.constant 0 : i32
    return %c0_i32, %c0_i32_0 : i32, i32
  }
  func.func @transform_6(%arg0: i32, %arg1: i32) -> (i32, i32) {
    %c0_i32 = arith.constant 0 : i32
    %c0_i32_0 = arith.constant 0 : i32
    %c0_i32_1 = arith.constant 0 : i32
    return %c0_i32, %c0_i32_0 : i32, i32
  }
  func.func @transform_7(%arg0: i32, %arg1: i32) -> (i32, i32, i32) {
    %c0_i32 = arith.constant 0 : i32
    %c0_i32_0 = arith.constant 0 : i32
    return %arg0, %arg1, %c0_i32 : i32, i32, i32
  }
  func.func @transform_8(%arg0: i32, %arg1: i32) -> (i32, i32, i32, i32) {
    %c0_i32 = arith.constant 0 : i32
    %c0_i32_0 = arith.constant 0 : i32
    %c0_i32_1 = arith.constant 0 : i32
    return %arg0, %c0_i32, %arg1, %c0_i32_0 : i32, i32, i32, i32
  }
}

</mosaic_0001>

<llo_original>
// kernel: tpu_custom_call.1
$region0: #{tpu_custom_call.1}
  #allocation0 [shape = 'u32[]', space=smem, size = 0x4, offset = 0x4, fixed_abs, tag = 'smem constant byte address 0x4 - core index']
  #allocation1 [shape = 'u32[72,128]{1,0:T(1,128)}', space=vmem, size = 0x9000, scoped, tag = 'internal scratch']
  #allocation2 [shape = 'f32[4,8,8]{2,1,0:T(8,128)}', space=vmem, size = 0x4000, scoped, tag = 'scratch operand']
  #allocation3 [shape = 'f32[4,8,8]{2,1,0:T(8,128)}', space=vmem, size = 0x4000, scoped, tag = 'scratch operand']
  %s0 = inlined_call_operand.hbm [shape: f32[2,8,32], index: 0, kind: input, shape index: {}]
  %s1 = inlined_call_operand.hbm [shape: f32[2,8,32], index: 1, kind: input, shape index: {}]
  %s2 = inlined_call_operand.hbm [shape: f32[2,8,32], index: 2, kind: input, shape index: {}]
  %s3 = inlined_call_operand.hbm [shape: f32[32,32], index: 3, kind: input, shape index: {}]
  %s4 = inlined_call_operand.hbm [shape: f32[32,32], index: 4, kind: input, shape index: {}]
  %s5 = inlined_call_operand.hbm [shape: f32[32,32], index: 5, kind: input, shape index: {}]
  %s6 = inlined_call_operand.hbm [shape: f32[32,32], index: 6, kind: input, shape index: {}]
  %s7 = inlined_call_operand.hbm [shape: f32[2,8,32], index: 7, kind: output, shape index: {0}]
  %s8 = inlined_call_operand.hbm [shape: f32[2,4,8,8], index: 8, kind: output, shape index: {1}]
  %9 = xla_tuple %s7, %s8
  %s10 = sld [smem:[#allocation0]]
  $region101: #{tpu_custom_call.1} parent=0
    _
  %s12 = ssub.s32 1, %s10
  %s13 = scalar_select 0, %s12, %s10
  $region1: #{tpu_custom_call.1} parent=0
    #allocation4 [shape = 'u8[8192]{0}', space=vmem, size = 0x2000, scoped, tag = 'input window, operand 0']
    #allocation5 [shape = 's32[2]{0}', space=sflag, size = 0x8, scoped, tag = 'scoped memory for tpu_custom_call.1']
    #allocation6 [shape = 's32[2]{0}', space=sflag, size = 0x8, scoped, tag = 'scoped memory for tpu_custom_call.1']
    #allocation7 [shape = 'u8[4096]{0}', space=vmem, size = 0x1000, scoped, tag = 'input window, operand 1, single buffered']
    #allocation8 [shape = 's32[1]{0}', space=sflag, size = 0x4, scoped, tag = 'scoped memory for tpu_custom_call.1']
    #allocation9 [shape = 'u8[4096]{0}', space=vmem, size = 0x1000, scoped, tag = 'input window, operand 2, single buffered']
    #allocation10 [shape = 'u8[16384]{0}', space=vmem, size = 0x4000, scoped, tag = 'input window, operand 3, single buffered']
    #allocation11 [shape = 's32[1]{0}', space=sflag, size = 0x4, scoped, tag = 'scoped memory for tpu_custom_call.1']
    #allocation12 [shape = 'u8[16384]{0}', space=vmem, size = 0x4000, scoped, tag = 'input window, operand 4, single buffered']
    #allocation13 [shape = 'u8[16384]{0}', space=vmem, size = 0x4000, scoped, tag = 'input window, operand 5, single buffered']
    #allocation14 [shape = 's32[1]{0}', space=sflag, size = 0x4, scoped, tag = 'scoped memory for tpu_custom_call.1']
    #allocation15 [shape = 'u8[16384]{0}', space=vmem, size = 0x4000, scoped, tag = 'input window, operand 6, single buffered']
    #allocation16 [shape = 'u8[8192]{0}', space=vmem, size = 0x2000, scoped, tag = 'output window, operand 0']
    #allocation17 [shape = 'u8[32768]{0}', space=vmem, size = 0x8000, scoped, tag = 'output window, operand 1']
    #allocation18 [shape = 's32[2]{0}', space=sflag, size = 0x8, scoped, tag = 'scoped memory for tpu_custom_call.1']
    %14 = vsyncpa [#allocation5], 0
    %s15 = scalar_lea.sflag [#allocation5], 1
    %16 = vsyncpa %s15, 0
    %17 = vsyncpa [#allocation8], 0
    %18 = vsyncpa [#allocation11], 0
    %19 = vsyncpa [#allocation14], 0
    %20 = vsyncpa [#allocation6], 0
    %s21 = scalar_lea.sflag [#allocation6], 1
    %22 = vsyncpa %s21, 0
    %23 = vsyncpa [#allocation18], 0
    %s24 = scalar_lea.sflag [#allocation18], 1
    %25 = vsyncpa %s24, 0
    loop: start=0, step=1, limit=4
    $region2: #{tpu_custom_call.1} parent=1 // loop_pre_header
      _
    $region3: #{tpu_custom_call.1} parent=1 // loop_header
      %s27 = sphi 0, %s31
      %p28 = scmp.ge.s32.totalorder %s27, 4
      %s34 = sphi 0, %s46
      %s35 = sphi 0, %s42
      %s36 = sphi 0, %s34
      %s37 = sphi 0, %s35
      %s38 = sphi 0, %s36
      %s39 = sphi 0, %s37
      %s51 = sphi 0, %s53
      %s54 = sphi 0, %s51
      %s55 = sphi 0, %s54
      %s71 = sphi 0, %s55
      %s77 = sphi 0, %s79
      %s80 = sphi 0, %s77
      %s81 = sphi 0, %s80
      %s97 = sphi 0, %s81
      %s103 = sphi 0, %s105
      %s106 = sphi 0, %s103
      %s107 = sphi 0, %s106
      %s123 = sphi 0, %s107
      %s127 = sphi 0, %s127
      %s129 = sphi 0, %s127
      %s130 = sphi 0, %s129
      %s144 = sphi 0, %s130
      %s148 = sphi 0, %s148
      %s150 = sphi 0, %s148
      %s151 = sphi 0, %s150
      %s165 = sphi 0, %s151
      %s169 = sphi 0, %s169
      %s171 = sphi 0, %s169
      %s172 = sphi 0, %s171
      %s186 = sphi 0, %s172
      %s190 = sphi 0, %s190
      %s192 = sphi 0, %s190
      %s193 = sphi 0, %s192
      %s207 = sphi 0, %s193
      %s215 = sphi 0, %s217
      %s218 = sphi 0, %s215
      %s219 = sphi 0, %s218
      %s235 = sphi 0, %s219
      %s243 = sphi 0, %s245
      %s246 = sphi 0, %s243
      %s247 = sphi 0, %s246
      %s263 = sphi 0, %s247
    $region4: #{tpu_custom_call.1} parent=1 // loop_header_branch
      %30 = sbr.rel (%p28) target = $region8
    $region5: #{tpu_custom_call.1} parent=1 // loop_body
      %s32 = ssub.s32 %s27, 1
      %s33 = ssub.s32 %s27, 2
      %s40 = sadd.s32 1, %s35
      %p41 = scmp.ge.s32.totalorder %s40, 1
      %s42 = scalar_select %p41, 0, %s40
      %s43 = sadd.s32 1, %s34
      %s44 = scalar_select %p41, %s43, %s34
      %p45 = scmp.ge.s32.totalorder %s44, 2
      %s46 = scalar_select %p45, 0, %s44
      %s47 = ssub.s32 %s34, %s46
      %s48 = ssub.s32 %s35, %s42
      %s49 = sor.u32 %s47, %s48
      %p50 = scmp.eq.s32.totalorder %s49, 0
      %s52 = sadd.s32 %s51, 1
      %s53 = scalar_select %p50, %s51, %s52
      %p56 = pneg %p50
      %p57 = scmp.eq.s32.totalorder %s27, 1
      %p58 = por %p56, %p57
      %p59 = scmp.ne.s32.totalorder %s51, %s54
      %p60 = scmp.eq.s32.totalorder %s27, 0
      %p61 = por %p59, %p60
      %p62 = scmp.ne.s32.totalorder %s51, %s54
      %p63 = scmp.eq.s32.totalorder %s32, 1
      %p64 = por %p62, %p63
      %p65 = scmp.ne.s32.totalorder %s54, %s55
      %p66 = scmp.eq.s32.totalorder %s32, 0
      %p67 = por %p65, %p66
      %p68 = scmp.ne.s32.totalorder %s54, %s55
      %p69 = scmp.eq.s32.totalorder %s33, 1
      %p70 = por %p68, %p69
      %p72 = scmp.ne.s32.totalorder %s55, %s71
      %p73 = scmp.eq.s32.totalorder %s33, 0
      %p74 = por %p72, %p73
      %s75 = ssub.s32 %s34, %s46
      %p76 = scmp.eq.s32.totalorder %s75, 0
      %s78 = sadd.s32 %s77, 1
      %s79 = scalar_select %p76, %s77, %s78
      %p82 = pneg %p76
      %p83 = scmp.eq.s32.totalorder %s27, 1
      %p84 = por %p82, %p83
      %p85 = scmp.ne.s32.totalorder %s77, %s80
      %p86 = scmp.eq.s32.totalorder %s27, 0
      %p87 = por %p85, %p86
      %p88 = scmp.ne.s32.totalorder %s77, %s80
      %p89 = scmp.eq.s32.totalorder %s32, 1
      %p90 = por %p88, %p89
      %p91 = scmp.ne.s32.totalorder %s80, %s81
      %p92 = scmp.eq.s32.totalorder %s32, 0
      %p93 = por %p91, %p92
      %p94 = scmp.ne.s32.totalorder %s80, %s81
      %p95 = scmp.eq.s32.totalorder %s33, 1
      %p96 = por %p94, %p95
      %p98 = scmp.ne.s32.totalorder %s81, %s97
      %p99 = scmp.eq.s32.totalorder %s33, 0
      %p100 = por %p98, %p99
      %s101 = ssub.s32 %s34, %s46
      %p102 = scmp.eq.s32.totalorder %s101, 0
      %s104 = sadd.s32 %s103, 1
      %s105 = scalar_select %p102, %s103, %s104
      %p108 = pneg %p102
      %p109 = scmp.eq.s32.totalorder %s27, 1
      %p110 = por %p108, %p109
      %p111 = scmp.ne.s32.totalorder %s103, %s106
      %p112 = scmp.eq.s32.totalorder %s27, 0
      %p113 = por %p111, %p112
      %p114 = scmp.ne.s32.totalorder %s103, %s106
      %p115 = scmp.eq.s32.totalorder %s32, 1
      %p116 = por %p114, %p115
      %p117 = scmp.ne.s32.totalorder %s106, %s107
      %p118 = scmp.eq.s32.totalorder %s32, 0
      %p119 = por %p117, %p118
      %p120 = scmp.ne.s32.totalorder %s106, %s107
      %p121 = scmp.eq.s32.totalorder %s33, 1
      %p122 = por %p120, %p121
      %p124 = scmp.ne.s32.totalorder %s107, %s123
      %p125 = scmp.eq.s32.totalorder %s33, 0
      %p126 = por %p124, %p125
      %s128 = sadd.s32 %s127, 1
      %p131 = scmp.eq.s32.totalorder %s27, 1
      %p132 = scmp.ne.s32.totalorder %s127, %s129
      %p133 = scmp.eq.s32.totalorder %s27, 0
      %p134 = por %p132, %p133
      %p135 = scmp.ne.s32.totalorder %s127, %s129
      %p136 = scmp.eq.s32.totalorder %s32, 1
      %p137 = por %p135, %p136
      %p138 = scmp.ne.s32.totalorder %s129, %s130
      %p139 = scmp.eq.s32.totalorder %s32, 0
      %p140 = por %p138, %p139
      %p141 = scmp.ne.s32.totalorder %s129, %s130
      %p142 = scmp.eq.s32.totalorder %s33, 1
      %p143 = por %p141, %p142
      %p145 = scmp.ne.s32.totalorder %s130, %s144
      %p146 = scmp.eq.s32.totalorder %s33, 0
      %p147 = por %p145, %p146
      %s149 = sadd.s32 %s148, 1
      %p152 = scmp.eq.s32.totalorder %s27, 1
      %p153 = scmp.ne.s32.totalorder %s148, %s150
      %p154 = scmp.eq.s32.totalorder %s27, 0
      %p155 = por %p153, %p154
      %p156 = scmp.ne.s32.totalorder %s148, %s150
      %p157 = scmp.eq.s32.totalorder %s32, 1
      %p158 = por %p156, %p157
      %p159 = scmp.ne.s32.totalorder %s150, %s151
      %p160 = scmp.eq.s32.totalorder %s32, 0
      %p161 = por %p159, %p160
      %p162 = scmp.ne.s32.totalorder %s150, %s151
      %p163 = scmp.eq.s32.totalorder %s33, 1
      %p164 = por %p162, %p163
      %p166 = scmp.ne.s32.totalorder %s151, %s165
      %p167 = scmp.eq.s32.totalorder %s33, 0
      %p168 = por %p166, %p167
      %s170 = sadd.s32 %s169, 1
      %p173 = scmp.eq.s32.totalorder %s27, 1
      %p174 = scmp.ne.s32.totalorder %s169, %s171
      %p175 = scmp.eq.s32.totalorder %s27, 0
      %p176 = por %p174, %p175
      %p177 = scmp.ne.s32.totalorder %s169, %s171
      %p178 = scmp.eq.s32.totalorder %s32, 1
      %p179 = por %p177, %p178
      %p180 = scmp.ne.s32.totalorder %s171, %s172
      %p181 = scmp.eq.s32.totalorder %s32, 0
      %p182 = por %p180, %p181
      %p183 = scmp.ne.s32.totalorder %s171, %s172
      %p184 = scmp.eq.s32.totalorder %s33, 1
      %p185 = por %p183, %p184
      %p187 = scmp.ne.s32.totalorder %s172, %s186
      %p188 = scmp.eq.s32.totalorder %s33, 0
      %p189 = por %p187, %p188
      %s191 = sadd.s32 %s190, 1
      %p194 = scmp.eq.s32.totalorder %s27, 1
      %p195 = scmp.ne.s32.totalorder %s190, %s192
      %p196 = scmp.eq.s32.totalorder %s27, 0
      %p197 = por %p195, %p196
      %p198 = scmp.ne.s32.totalorder %s190, %s192
      %p199 = scmp.eq.s32.totalorder %s32, 1
      %p200 = por %p198, %p199
      %p201 = scmp.ne.s32.totalorder %s192, %s193
      %p202 = scmp.eq.s32.totalorder %s32, 0
      %p203 = por %p201, %p202
      %p204 = scmp.ne.s32.totalorder %s192, %s193
      %p205 = scmp.eq.s32.totalorder %s33, 1
      %p206 = por %p204, %p205
      %p208 = scmp.ne.s32.totalorder %s193, %s207
      %p209 = scmp.eq.s32.totalorder %s33, 0
      %p210 = por %p208, %p209
      %s211 = ssub.s32 %s34, %s46
      %s212 = ssub.s32 %s35, %s42
      %s213 = sor.u32 %s211, %s212
      %p214 = scmp.eq.s32.totalorder %s213, 0
      %s216 = sadd.s32 %s215, 1
      %s217 = scalar_select %p214, %s215, %s216
      %p220 = pneg %p214
      %p221 = scmp.eq.s32.totalorder %s27, 1
      %p222 = por %p220, %p221
      %p223 = scmp.ne.s32.totalorder %s215, %s218
      %p224 = scmp.eq.s32.totalorder %s27, 0
      %p225 = por %p223, %p224
      %p226 = scmp.ne.s32.totalorder %s215, %s218
      %p227 = scmp.eq.s32.totalorder %s32, 1
      %p228 = por %p226, %p227
      %p229 = scmp.ne.s32.totalorder %s218, %s219
      %p230 = scmp.eq.s32.totalorder %s32, 0
      %p231 = por %p229, %p230
      %p232 = scmp.ne.s32.totalorder %s218, %s219
      %p233 = scmp.eq.s32.totalorder %s33, 1
      %p234 = por %p232, %p233
      %p236 = scmp.ne.s32.totalorder %s219, %s235
      %p237 = scmp.eq.s32.totalorder %s33, 0
      %p238 = por %p236, %p237
      %s239 = ssub.s32 %s34, %s46
      %s240 = ssub.s32 %s35, %s42
      %s241 = sor.u32 %s239, %s240
      %p242 = scmp.eq.s32.totalorder %s241, 0
      %s244 = sadd.s32 %s243, 1
      %s245 = scalar_select %p242, %s243, %s244
      %p248 = pneg %p242
      %p249 = scmp.eq.s32.totalorder %s27, 1
      %p250 = por %p248, %p249
      %p251 = scmp.ne.s32.totalorder %s243, %s246
      %p252 = scmp.eq.s32.totalorder %s27, 0
      %p253 = por %p251, %p252
      %p254 = scmp.ne.s32.totalorder %s243, %s246
      %p255 = scmp.eq.s32.totalorder %s32, 1
      %p256 = por %p254, %p255
      %p257 = scmp.ne.s32.totalorder %s246, %s247
      %p258 = scmp.eq.s32.totalorder %s32, 0
      %p259 = por %p257, %p258
      %p260 = scmp.ne.s32.totalorder %s246, %s247
      %p261 = scmp.eq.s32.totalorder %s33, 1
      %p262 = por %p260, %p261
      %p264 = scmp.ne.s32.totalorder %s247, %s263
      %p265 = scmp.eq.s32.totalorder %s33, 0
      %p266 = por %p264, %p265
      %p267 = scmp.le.s32.totalorder 1, %s27
      %p268 = scmp.lt.s32.totalorder %s27, 3
      %p269 = pnand %p267, %p268
      %p270 = pneg %p269
      // Predicated region
      $region9: #{tpu_custom_call.1} parent=5 // pred_check
        _
      $region10: #{tpu_custom_call.1} parent=5 // pred_check_branch
        %272 = sbr.rel (%p269) target = $region12
      $region11: #{tpu_custom_call.1} parent=5 // pred_region
        %s273 = ssub.s32 %s27, 1
        // Predicated region
        $region13: #{tpu_custom_call.1} parent=11 // pred_check
          %p274 = pneg %p93
        $region14: #{tpu_custom_call.1} parent=11 // pred_check_branch
          %276 = sbr.rel (%p274) target = $region16
        $region15: #{tpu_custom_call.1} parent=11 // pred_region
          %278 = vsyncadd [#allocation8], 0
          %s279 = smul.addr %s36, 8
          %s280 = scalar_lea.hbm %s1, %s279
          %s282 = sshll.u32 %s280, 4
          %s283 = int_to_ptr.hbm [resolvable:$true] %s282
          %s284 = sshll.u32 [#allocation7], 4
          %s285 = int_to_ptr.vmem [resolvable:$true] %s284
          %287 = dma.hbm_to_vmem [thread:$0]  %s283, 128, %s285, [#allocation8]
        $region16: #{tpu_custom_call.1} parent=11 // pred_fallthru
          _
        // Predicated region
        $region17: #{tpu_custom_call.1} parent=11 // pred_check
          %p288 = pneg %p119
        $region18: #{tpu_custom_call.1} parent=11 // pred_check_branch
          %290 = sbr.rel (%p288) target = $region20
        $region19: #{tpu_custom_call.1} parent=11 // pred_region
          %292 = vsyncadd [#allocation8], 0
          %s293 = smul.addr %s36, 8
          %s294 = scalar_lea.hbm %s2, %s293
          %s296 = sshll.u32 %s294, 4
          %s297 = int_to_ptr.hbm [resolvable:$true] %s296
          %s298 = sshll.u32 [#allocation9], 4
          %s299 = int_to_ptr.vmem [resolvable:$true] %s298
          %301 = dma.hbm_to_vmem [thread:$0]  %s297, 128, %s299, [#allocation8]
        $region20: #{tpu_custom_call.1} parent=11 // pred_fallthru
          _
        // Predicated region
        $region21: #{tpu_custom_call.1} parent=11 // pred_check
          %p302 = pneg %p140
        $region22: #{tpu_custom_call.1} parent=11 // pred_check_branch
          %304 = sbr.rel (%p302) target = $region24
        $region23: #{tpu_custom_call.1} parent=11 // pred_region
          %306 = vsyncadd [#allocation11], 0
          %s307 = sshll.u32 %s3, 4
          %s308 = int_to_ptr.hbm [resolvable:$true] %s307
          %s309 = sshll.u32 [#allocation10], 4
          %s310 = int_to_ptr.vmem [resolvable:$true] %s309
          %315 = dma.hbm_to_vmem [thread:$0]  %s308, 512, %s310, [#allocation11], 128, 128, 8
        $region24: #{tpu_custom_call.1} parent=11 // pred_fallthru
          _
        // Predicated region
        $region25: #{tpu_custom_call.1} parent=11 // pred_check
          %p316 = pneg %p161
        $region26: #{tpu_custom_call.1} parent=11 // pred_check_branch
          %318 = sbr.rel (%p316) target = $region28
        $region27: #{tpu_custom_call.1} parent=11 // pred_region
          %320 = vsyncadd [#allocation11], 0
          %s321 = sshll.u32 %s4, 4
          %s322 = int_to_ptr.hbm [resolvable:$true] %s321
          %s323 = sshll.u32 [#allocation12], 4
          %s324 = int_to_ptr.vmem [resolvable:$true] %s323
          %329 = dma.hbm_to_vmem [thread:$0]  %s322, 512, %s324, [#allocation11], 128, 128, 8
        $region28: #{tpu_custom_call.1} parent=11 // pred_fallthru
          _
        // Predicated region
        $region29: #{tpu_custom_call.1} parent=11 // pred_check
          %p330 = pneg %p182
        $region30: #{tpu_custom_call.1} parent=11 // pred_check_branch
          %332 = sbr.rel (%p330) target = $region32
        $region31: #{tpu_custom_call.1} parent=11 // pred_region
          %334 = vsyncadd [#allocation14], 0
          %s335 = sshll.u32 %s5, 4
          %s336 = int_to_ptr.hbm [resolvable:$true] %s335
          %s337 = sshll.u32 [#allocation13], 4
          %s338 = int_to_ptr.vmem [resolvable:$true] %s337
          %343 = dma.hbm_to_vmem [thread:$0]  %s336, 512, %s338, [#allocation14], 128, 128, 8
        $region32: #{tpu_custom_call.1} parent=11 // pred_fallthru
          _
        // Predicated region
        $region33: #{tpu_custom_call.1} parent=11 // pred_check
          %p344 = pneg %p203
        $region34: #{tpu_custom_call.1} parent=11 // pred_check_branch
          %346 = sbr.rel (%p344) target = $region36
        $region35: #{tpu_custom_call.1} parent=11 // pred_region
          %348 = vsyncadd [#allocation14], 0
          %s349 = sshll.u32 %s6, 4
          %s350 = int_to_ptr.hbm [resolvable:$true] %s349
          %s351 = sshll.u32 [#allocation15], 4
          %s352 = int_to_ptr.vmem [resolvable:$true] %s351
          %357 = dma.hbm_to_vmem [thread:$0]  %s350, 512, %s352, [#allocation14], 128, 128, 8
        $region36: #{tpu_custom_call.1} parent=11 // pred_fallthru
          _
      $region12: #{tpu_custom_call.1} parent=5 // pred_fallthru
        _
      %p358 = scmp.lt.s32.totalorder %s27, 2
      // Predicated region
      $region37: #{tpu_custom_call.1} parent=5 // pred_check
        %p359 = pneg %p358
      $region38: #{tpu_custom_call.1} parent=5 // pred_check_branch
        %361 = sbr.rel (%p359) target = $region40
      $region39: #{tpu_custom_call.1} parent=5 // pred_region
        // Predicated region
        $region41: #{tpu_custom_call.1} parent=39 // pred_check
          %p362 = pneg %p61
        $region42: #{tpu_custom_call.1} parent=39 // pred_check_branch
          %364 = sbr.rel (%p362) target = $region44
        $region43: #{tpu_custom_call.1} parent=39 // pred_region
          %s365 = sand.u32 %s51, 1
          %s366 = scalar_lea.sflag [#allocation5], %s365
          %s367 = sand.u32 %s51, 1
          %s368 = smul.addr %s367, 8
          %s369 = scalar_lea.vmem [#allocation4], %s368
          %371 = vsyncadd %s366, 0
          %s372 = sadd.s32 %s35, %s34
          %s373 = smul.addr %s372, 8
          %s374 = scalar_lea.hbm %s0, %s373
          %s376 = sshll.u32 %s374, 4
          %s377 = int_to_ptr.hbm [resolvable:$true] %s376
          %s378 = sshll.u32 %s369, 4
          %s379 = int_to_ptr.vmem [resolvable:$true] %s378
          %381 = dma.hbm_to_vmem [thread:$0]  %s377, 128, %s379, %s366
        $region44: #{tpu_custom_call.1} parent=39 // pred_fallthru
          _
      $region40: #{tpu_custom_call.1} parent=5 // pred_fallthru
        _
      %p382 = scmp.le.s32.totalorder 1, %s27
      %p383 = scmp.lt.s32.totalorder %s27, 3
      %p384 = pnand %p382, %p383
      %p385 = pneg %p384
      // Predicated region
      $region45: #{tpu_custom_call.1} parent=5 // pred_check
        _
      $region46: #{tpu_custom_call.1} parent=5 // pred_check_branch
        %387 = sbr.rel (%p384) target = $region48
      $region47: #{tpu_custom_call.1} parent=5 // pred_region
        %s388 = ssub.s32 %s27, 1
        %s389 = sand.u32 %s54, 1
        %s390 = scalar_lea.sflag [#allocation5], %s389
        %s391 = sand.u32 %s54, 1
        %s392 = smul.addr %s391, 8
        %s393 = scalar_lea.vmem [#allocation4], %s392
        // Predicated region
        $region49: #{tpu_custom_call.1} parent=47 // pred_check
          %p394 = pneg %p67
        $region50: #{tpu_custom_call.1} parent=47 // pred_check_branch
          %396 = sbr.rel (%p394) target = $region52
        $region51: #{tpu_custom_call.1} parent=47 // pred_region
          %398 = dma.done %s390, 128
        $region52: #{tpu_custom_call.1} parent=47 // pred_fallthru
          _
        // Predicated region
        $region53: #{tpu_custom_call.1} parent=47 // pred_check
          %p399 = pneg %p93
        $region54: #{tpu_custom_call.1} parent=47 // pred_check_branch
          %401 = sbr.rel (%p399) target = $region56
        $region55: #{tpu_custom_call.1} parent=47 // pred_region
          %403 = dma.done [#allocation8], 128
        $region56: #{tpu_custom_call.1} parent=47 // pred_fallthru
          _
        // Predicated region
        $region57: #{tpu_custom_call.1} parent=47 // pred_check
          %p404 = pneg %p119
        $region58: #{tpu_custom_call.1} parent=47 // pred_check_branch
          %406 = sbr.rel (%p404) target = $region60
        $region59: #{tpu_custom_call.1} parent=47 // pred_region
          %408 = dma.done [#allocation8], 128
        $region60: #{tpu_custom_call.1} parent=47 // pred_fallthru
          _
        // Predicated region
        $region61: #{tpu_custom_call.1} parent=47 // pred_check
          %p409 = pneg %p140
        $region62: #{tpu_custom_call.1} parent=47 // pred_check_branch
          %411 = sbr.rel (%p409) target = $region64
        $region63: #{tpu_custom_call.1} parent=47 // pred_region
          %413 = dma.done [#allocation11], 512
        $region64: #{tpu_custom_call.1} parent=47 // pred_fallthru
          _
        // Predicated region
        $region65: #{tpu_custom_call.1} parent=47 // pred_check
          %p414 = pneg %p161
        $region66: #{tpu_custom_call.1} parent=47 // pred_check_branch
          %416 = sbr.rel (%p414) target = $region68
        $region67: #{tpu_custom_call.1} parent=47 // pred_region
          %418 = dma.done [#allocation11], 512
        $region68: #{tpu_custom_call.1} parent=47 // pred_fallthru
          _
        // Predicated region
        $region69: #{tpu_custom_call.1} parent=47 // pred_check
          %p419 = pneg %p182
        $region70: #{tpu_custom_call.1} parent=47 // pred_check_branch
          %421 = sbr.rel (%p419) target = $region72
        $region71: #{tpu_custom_call.1} parent=47 // pred_region
          %423 = dma.done [#allocation14], 512
        $region72: #{tpu_custom_call.1} parent=47 // pred_fallthru
          _
        // Predicated region
        $region73: #{tpu_custom_call.1} parent=47 // pred_check
          %p424 = pneg %p203
        $region74: #{tpu_custom_call.1} parent=47 // pred_check_branch
          %426 = sbr.rel (%p424) target = $region76
        $region75: #{tpu_custom_call.1} parent=47 // pred_region
          %428 = dma.done [#allocation14], 512
        $region76: #{tpu_custom_call.1} parent=47 // pred_fallthru
          _
        %s429 = sand.u32 %s54, 1
        %s430 = scalar_lea.sflag [#allocation5], %s429
        %s431 = sand.u32 %s54, 1
        %s432 = smul.addr %s431, 8
        %s433 = scalar_lea.vmem [#allocation4], %s432
        %p434 = pneg %p67
        %p435 = pneg %p64
        %p436 = pneg %p93
        %p437 = pneg %p90
        %p438 = pneg %p119
        %p439 = pneg %p116
        %p440 = pneg %p140
        %p441 = pneg %p137
        %p442 = pneg %p161
        %p443 = pneg %p158
        %p444 = pneg %p182
        %p445 = pneg %p179
        %p446 = pneg %p203
        %p447 = pneg %p200
        %p448 = pneg %p231
        %p449 = pneg %p228
        %s450 = sand.u32 %s218, 1
        %s451 = scalar_lea.sflag [#allocation6], %s450
        %s452 = sand.u32 %s218, 1
        %s453 = smul.addr %s452, 8
        %s454 = scalar_lea.vmem [#allocation16], %s453
        %p455 = pneg %p259
        %p456 = pneg %p256
        %s457 = sand.u32 %s246, 1
        %s458 = scalar_lea.sflag [#allocation18], %s457
        %s459 = sand.u32 %s246, 1
        %s460 = smul.addr %s459, 32
        %s461 = scalar_lea.vmem [#allocation17], %s460
        %p462 = scmp.eq.s32.totalorder %s37, 0
        // Predicated region
        $region77: #{tpu_custom_call.1} parent=47 // pred_check
          %p463 = pneg %p462
        $region78: #{tpu_custom_call.1} parent=47 // pred_check_branch
          %465 = sbr.rel (%p463) target = $region80
        $region79: #{tpu_custom_call.1} parent=47 // pred_region
          %v466 = vld [vmem:[#allocation7] sm:$0xff]
          %v467 = vld [vmem:[#allocation12] sm:$0xff]
          %v468 = vld [vmem:[#allocation12 + $0x8] sm:$0xff]
          %v469 = vld [vmem:[#allocation12 + $0x10] sm:$0xff]
          %v470 = vld [vmem:[#allocation12 + $0x18] sm:$0xff]
          %vm471 = vcmask 261120
          %v473 = vsel %vm471, %v466, 0
          %475 = vmatpush.msra.mxu0 0.0
          %476 = vmatpush.msra.mxu0 0.0
          %477 = vmatpush.msra.mxu0 0.0
          %478 = vmatpush.msra.mxu0 0.0
          %479 = vmatpush.msra.mxu0 0.0
          %480 = vmatpush.msra.mxu0 0.0
          %481 = vmatpush.msra.mxu0 0.0
          %482 = vmatpush.msra.mxu0 0.0
          %483 = vmatpush.msra.mxu0 0.0
          %484 = vmatpush.msra.mxu0 0.0
          %485 = vmatpush.msra.mxu0 0.0
          %486 = vmatpush.msra.mxu0 0.0
          %487 = vmatpush.msra.mxu0 %v470
          %488 = vmatpush.msra.mxu0 %v469
          %489 = vmatpush.msra.mxu0 %v468
          %490 = vmatpush.msra.mxu0 %v467
          %491 = vmatmul.f32.gmra.mxu0 %v473
          %v492 = vpop.f32.mrf.mxu0
          %v493 = vadd.f32 0.0, %v492
          %494 = vdwg.mxu0
          %v495 = vld [vmem:[#allocation9] sm:$0xff]
          %v496 = vld [vmem:[#allocation13] sm:$0xff]
          %v497 = vld [vmem:[#allocation13 + $0x8] sm:$0xff]
          %v498 = vld [vmem:[#allocation13 + $0x10] sm:$0xff]
          %v499 = vld [vmem:[#allocation13 + $0x18] sm:$0xff]
          %v501 = vsel %vm471, %v495, 0
          %503 = vmatpush.msra.mxu0 0.0
          %504 = vmatpush.msra.mxu0 0.0
          %505 = vmatpush.msra.mxu0 0.0
          %506 = vmatpush.msra.mxu0 0.0
          %507 = vmatpush.msra.mxu0 0.0
          %508 = vmatpush.msra.mxu0 0.0
          %509 = vmatpush.msra.mxu0 0.0
          %510 = vmatpush.msra.mxu0 0.0
          %511 = vmatpush.msra.mxu0 0.0
          %512 = vmatpush.msra.mxu0 0.0
          %513 = vmatpush.msra.mxu0 0.0
          %514 = vmatpush.msra.mxu0 0.0
          %515 = vmatpush.msra.mxu0 %v499
          %516 = vmatpush.msra.mxu0 %v498
          %517 = vmatpush.msra.mxu0 %v497
          %518 = vmatpush.msra.mxu0 %v496
          %519 = vmatmul.f32.gmra.mxu0 %v501
          %v520 = vpop.f32.mrf.mxu0
          %v521 = vadd.f32 0.0, %v520
          %522 = vdwg.mxu0
          %523 = vxpose.xlu0.b32.start [1/16] %v493, 128
          %524 = vxpose.xlu0.b32.cont [2/16] 0.0, 128
          %525 = vxpose.xlu0.b32.cont [3/16] 0.0, 128
          %526 = vxpose.xlu0.b32.cont [4/16] 0.0, 128
          %527 = vxpose.xlu0.b32.cont [5/16] 0.0, 128
          %528 = vxpose.xlu0.b32.cont [6/16] 0.0, 128
          %529 = vxpose.xlu0.b32.cont [7/16] 0.0, 128
          %530 = vxpose.xlu0.b32.cont [8/16] 0.0, 128
          %531 = vxpose.xlu0.b32.cont [9/16] 0.0, 128
          %532 = vxpose.xlu0.b32.cont [10/16] 0.0, 128
          %533 = vxpose.xlu0.b32.cont [11/16] 0.0, 128
          %534 = vxpose.xlu0.b32.cont [12/16] 0.0, 128
          %535 = vxpose.xlu0.b32.cont [13/16] 0.0, 128
          %536 = vxpose.xlu0.b32.cont [14/16] 0.0, 128
          %537 = vxpose.xlu0.b32.cont [15/16] 0.0, 128
          %538 = vxpose.xlu0.b32.end [16/16] 0.0, 128
          %v539 = vpop.trf.xlu0
          %v540 = vpop.trf.xlu0
          %v541 = vpop.trf.xlu0
          %v542 = vpop.trf.xlu0
          %v543 = vpop.trf.xlu0
          %v544 = vpop.trf.xlu0
          %v545 = vpop.trf.xlu0
          %v546 = vpop.trf.xlu0
          %v547 = vpop.trf.xlu0
          %v548 = vpop.trf.xlu0
          %v549 = vpop.trf.xlu0
          %v550 = vpop.trf.xlu0
          %v551 = vpop.trf.xlu0
          %v552 = vpop.trf.xlu0
          %v553 = vpop.trf.xlu0
          %v554 = vpop.trf.xlu0
          %vm555 = vcmask 64512
          %556 = vst.msk [vmem:[#allocation2] sm:$0xff] %vm555, %v539
          %557 = vst.msk [vmem:[#allocation3] sm:$0xff] %vm555, %v521
          %559 = vrot.lane.b32.xlu0 %v493, 120
          %v560 = vpop.permute.xlu0 %559
          %562 = vxpose.xlu0.b32.start [1/16] %v560, 128
          %563 = vxpose.xlu0.b32.cont [2/16] 0.0, 128
          %564 = vxpose.xlu0.b32.cont [3/16] 0.0, 128
          %565 = vxpose.xlu0.b32.cont [4/16] 0.0, 128
          %566 = vxpose.xlu0.b32.cont [5/16] 0.0, 128
          %567 = vxpose.xlu0.b32.cont [6/16] 0.0, 128
          %568 = vxpose.xlu0.b32.cont [7/16] 0.0, 128
          %569 = vxpose.xlu0.b32.cont [8/16] 0.0, 128
          %570 = vxpose.xlu0.b32.cont [9/16] 0.0, 128
          %571 = vxpose.xlu0.b32.cont [10/16] 0.0, 128
          %572 = vxpose.xlu0.b32.cont [11/16] 0.0, 128
          %573 = vxpose.xlu0.b32.cont [12/16] 0.0, 128
          %574 = vxpose.xlu0.b32.cont [13/16] 0.0, 128
          %575 = vxpose.xlu0.b32.cont [14/16] 0.0, 128
          %576 = vxpose.xlu0.b32.cont [15/16] 0.0, 128
          %577 = vxpose.xlu0.b32.end [16/16] 0.0, 128
          %v578 = vpop.trf.xlu0
          %v579 = vpop.trf.xlu0
          %v580 = vpop.trf.xlu0
          %v581 = vpop.trf.xlu0
          %v582 = vpop.trf.xlu0
          %v583 = vpop.trf.xlu0
          %v584 = vpop.trf.xlu0
          %v585 = vpop.trf.xlu0
          %v586 = vpop.trf.xlu0
          %v587 = vpop.trf.xlu0
          %v588 = vpop.trf.xlu0
          %v589 = vpop.trf.xlu0
          %v590 = vpop.trf.xlu0
          %v591 = vpop.trf.xlu0
          %v592 = vpop.trf.xlu0
          %v593 = vpop.trf.xlu0
          %s594 = scalar_lea.vmem [#allocation2], 8
          %595 = vst.msk [vmem:[%s594] sm:$0xff] %vm555, %v578
          %597 = vrot.lane.b32.xlu0 %v521, 120
          %v598 = vpop.permute.xlu0 %597
          %s600 = scalar_lea.vmem [#allocation3], 8
          %601 = vst.msk [vmem:[%s600] sm:$0xff] %vm555, %v598
          %602 = vrot.lane.b32.xlu0 %v493, 112
          %v603 = vpop.permute.xlu0 %602
          %605 = vxpose.xlu0.b32.start [1/16] %v603, 128
          %606 = vxpose.xlu0.b32.cont [2/16] 0.0, 128
          %607 = vxpose.xlu0.b32.cont [3/16] 0.0, 128
          %608 = vxpose.xlu0.b32.cont [4/16] 0.0, 128
          %609 = vxpose.xlu0.b32.cont [5/16] 0.0, 128
          %610 = vxpose.xlu0.b32.cont [6/16] 0.0, 128
          %611 = vxpose.xlu0.b32.cont [7/16] 0.0, 128
          %612 = vxpose.xlu0.b32.cont [8/16] 0.0, 128
          %613 = vxpose.xlu0.b32.cont [9/16] 0.0, 128
          %614 = vxpose.xlu0.b32.cont [10/16] 0.0, 128
          %615 = vxpose.xlu0.b32.cont [11/16] 0.0, 128
          %616 = vxpose.xlu0.b32.cont [12/16] 0.0, 128
          %617 = vxpose.xlu0.b32.cont [13/16] 0.0, 128
          %618 = vxpose.xlu0.b32.cont [14/16] 0.0, 128
          %619 = vxpose.xlu0.b32.cont [15/16] 0.0, 128
          %620 = vxpose.xlu0.b32.end [16/16] 0.0, 128
          %v621 = vpop.trf.xlu0
          %v622 = vpop.trf.xlu0
          %v623 = vpop.trf.xlu0
          %v624 = vpop.trf.xlu0
          %v625 = vpop.trf.xlu0
          %v626 = vpop.trf.xlu0
          %v627 = vpop.trf.xlu0
          %v628 = vpop.trf.xlu0
          %v629 = vpop.trf.xlu0
          %v630 = vpop.trf.xlu0
          %v631 = vpop.trf.xlu0
          %v632 = vpop.trf.xlu0
          %v633 = vpop.trf.xlu0
          %v634 = vpop.trf.xlu0
          %v635 = vpop.trf.xlu0
          %v636 = vpop.trf.xlu0
          %s637 = scalar_lea.vmem [#allocation2], 16
          %638 = vst.msk [vmem:[%s637] sm:$0xff] %vm555, %v621
          %639 = vrot.lane.b32.xlu0 %v521, 112
          %v640 = vpop.permute.xlu0 %639
          %s642 = scalar_lea.vmem [#allocation3], 16
          %643 = vst.msk [vmem:[%s642] sm:$0xff] %vm555, %v640
          %644 = vrot.lane.b32.xlu0 %v493, 104
          %v645 = vpop.permute.xlu0 %644
          %647 = vxpose.xlu0.b32.start [1/16] %v645, 128
          %648 = vxpose.xlu0.b32.cont [2/16] 0.0, 128
          %649 = vxpose.xlu0.b32.cont [3/16] 0.0, 128
          %650 = vxpose.xlu0.b32.cont [4/16] 0.0, 128
          %651 = vxpose.xlu0.b32.cont [5/16] 0.0, 128
          %652 = vxpose.xlu0.b32.cont [6/16] 0.0, 128
          %653 = vxpose.xlu0.b32.cont [7/16] 0.0, 128
          %654 = vxpose.xlu0.b32.cont [8/16] 0.0, 128
          %655 = vxpose.xlu0.b32.cont [9/16] 0.0, 128
          %656 = vxpose.xlu0.b32.cont [10/16] 0.0, 128
          %657 = vxpose.xlu0.b32.cont [11/16] 0.0, 128
          %658 = vxpose.xlu0.b32.cont [12/16] 0.0, 128
          %659 = vxpose.xlu0.b32.cont [13/16] 0.0, 128
          %660 = vxpose.xlu0.b32.cont [14/16] 0.0, 128
          %661 = vxpose.xlu0.b32.cont [15/16] 0.0, 128
          %662 = vxpose.xlu0.b32.end [16/16] 0.0, 128
          %v663 = vpop.trf.xlu0
          %v664 = vpop.trf.xlu0
          %v665 = vpop.trf.xlu0
          %v666 = vpop.trf.xlu0
          %v667 = vpop.trf.xlu0
          %v668 = vpop.trf.xlu0
          %v669 = vpop.trf.xlu0
          %v670 = vpop.trf.xlu0
          %v671 = vpop.trf.xlu0
          %v672 = vpop.trf.xlu0
          %v673 = vpop.trf.xlu0
          %v674 = vpop.trf.xlu0
          %v675 = vpop.trf.xlu0
          %v676 = vpop.trf.xlu0
          %v677 = vpop.trf.xlu0
          %v678 = vpop.trf.xlu0
          %s679 = scalar_lea.vmem [#allocation2], 24
          %680 = vst.msk [vmem:[%s679] sm:$0xff] %vm555, %v663
          %681 = vrot.lane.b32.xlu0 %v521, 104
          %v682 = vpop.permute.xlu0 %681
          %s684 = scalar_lea.vmem [#allocation3], 24
          %685 = vst.msk [vmem:[%s684] sm:$0xff] %vm555, %v682
        $region80: #{tpu_custom_call.1} parent=47 // pred_fallthru
          _
        %v686 = vld [vmem:[%s393] sm:$0xff]
        %v687 = vld [vmem:[#allocation10] sm:$0xff]
        %v688 = vld [vmem:[#allocation10 + $0x8] sm:$0xff]
        %v689 = vld [vmem:[#allocation10 + $0x10] sm:$0xff]
        %v690 = vld [vmem:[#allocation10 + $0x18] sm:$0xff]
        %vm691 = vcmask 261120
        %v693 = vsel %vm691, %v686, 0
        %695 = vmatpush.msra.mxu0 0.0
        %696 = vmatpush.msra.mxu0 0.0
        %697 = vmatpush.msra.mxu0 0.0
        %698 = vmatpush.msra.mxu0 0.0
        %699 = vmatpush.msra.mxu0 0.0
        %700 = vmatpush.msra.mxu0 0.0
        %701 = vmatpush.msra.mxu0 0.0
        %702 = vmatpush.msra.mxu0 0.0
        %703 = vmatpush.msra.mxu0 0.0
        %704 = vmatpush.msra.mxu0 0.0
        %705 = vmatpush.msra.mxu0 0.0
        %706 = vmatpush.msra.mxu0 0.0
        %707 = vmatpush.msra.mxu0 %v690
        %708 = vmatpush.msra.mxu0 %v689
        %709 = vmatpush.msra.mxu0 %v688
        %710 = vmatpush.msra.mxu0 %v687
        %711 = vmatmul.f32.gmra.mxu0 %v693
        %v712 = vpop.f32.mrf.mxu0
        %v713 = vadd.f32 0.0, %v712
        %714 = vdwg.mxu0
        %v715 = vmul.f32 %v713, 0.35355338
        %v716 = vld [vmem:[#allocation2] sm:$0xff]
        %vm717 = vcmask 64512
        %v719 = vsel %vm717, %v715, 0
        %721 = vmatpush.msra.mxu0 0.0
        %722 = vmatpush.msra.mxu0 0.0
        %723 = vmatpush.msra.mxu0 0.0
        %724 = vmatpush.msra.mxu0 0.0
        %725 = vmatpush.msra.mxu0 0.0
        %726 = vmatpush.msra.mxu0 0.0
        %727 = vmatpush.msra.mxu0 0.0
        %728 = vmatpush.msra.mxu0 0.0
        %729 = vmatpush.msra.mxu0 0.0
        %730 = vmatpush.msra.mxu0 0.0
        %731 = vmatpush.msra.mxu0 0.0
        %732 = vmatpush.msra.mxu0 0.0
        %733 = vmatpush.msra.mxu0 0.0
        %734 = vmatpush.msra.mxu0 0.0
        %735 = vmatpush.msra.mxu0 0.0
        %736 = vmatpush.msra.mxu0 %v716
        %737 = vmatmul.f32.gmra.mxu0 %v719
        %v738 = vpop.f32.mrf.mxu0
        %v739 = vadd.f32 0.0, %v738
        %740 = vdwg.mxu0
        %v741 = vsel %vm717, %v739, -inf
        %742 = vmax.xlane.f32.xlu0 %v741
        %v743 = vpop.xlane.xlu0 %742
        %v744 = vsub.f32 %v739, %v743
        %v745 = vmul.f32 %v744, 1.442695
        %v746 = vpow.pop %v745
        %v747 = vsel %vm717, %v746, 0.0
        %748 = vadd.xlane.f32.xlu0 %v747
        %v749 = vpop.xlane.xlu0 %748
        %v750 = vrcp.pop %v749
        %v751 = vmul.f32 %v749, %v750
        %v752 = vsub.f32 1.0, %v751
        %v753 = vmul.f32 %v750, %v752
        %v754 = vadd.f32 %v750, %v753
        %vm755 = vweird.f32 %v749
        %vm756 = vweird.f32 %v750
        %vm757 = vmor %vm755, %vm756
        %v758 = vsel %vm757, %v750, %v754
        %v759 = vand.u32 2147483647, %v749
        %vm760 = vcmp.eq.f32.partialorder %v759, 8.507059e+37
        %v761 = vand.u32 %v749, 2147483648
        %v762 = vor.u32 1.1754944e-38, %v761
        %v763 = vsel %vm760, %v762, %v758
        %v764 = vmul.f32 %v746, %v763
        %765 = vst.msk [vmem:[%s461] sm:$0xff] %vm717, %v764
        %v766 = vld [vmem:[#allocation3] sm:$0xff]
        %v768 = vsel %vm717, %v764, 0
        %770 = vmatpush.msra.mxu0 0.0
        %771 = vmatpush.msra.mxu0 0.0
        %772 = vmatpush.msra.mxu0 0.0
        %773 = vmatpush.msra.mxu0 0.0
        %774 = vmatpush.msra.mxu0 0.0
        %775 = vmatpush.msra.mxu0 0.0
        %776 = vmatpush.msra.mxu0 0.0
        %777 = vmatpush.msra.mxu0 0.0
        %778 = vmatpush.msra.mxu0 0.0
        %779 = vmatpush.msra.mxu0 0.0
        %780 = vmatpush.msra.mxu0 0.0
        %781 = vmatpush.msra.mxu0 0.0
        %782 = vmatpush.msra.mxu0 0.0
        %783 = vmatpush.msra.mxu0 0.0
        %784 = vmatpush.msra.mxu0 0.0
        %785 = vmatpush.msra.mxu0 %v766
        %786 = vmatmul.f32.gmra.mxu0 %v768
        %v787 = vpop.f32.mrf.mxu0
        %v788 = vadd.f32 0.0, %v787
        %789 = vdwg.mxu0
        %s790 = scalar_lea.vmem [#allocation2], 8
        %v791 = vld [vmem:[%s790] sm:$0xff]
        %792 = vrot.lane.b32.xlu0 %v715, 120
        %v793 = vpop.permute.xlu0 %792
        %v794 = vsel %vm717, %v793, 0
        %796 = vmatpush.msra.mxu0 0.0
        %797 = vmatpush.msra.mxu0 0.0
        %798 = vmatpush.msra.mxu0 0.0
        %799 = vmatpush.msra.mxu0 0.0
        %800 = vmatpush.msra.mxu0 0.0
        %801 = vmatpush.msra.mxu0 0.0
        %802 = vmatpush.msra.mxu0 0.0
        %803 = vmatpush.msra.mxu0 0.0
        %804 = vmatpush.msra.mxu0 0.0
        %805 = vmatpush.msra.mxu0 0.0
        %806 = vmatpush.msra.mxu0 0.0
        %807 = vmatpush.msra.mxu0 0.0
        %808 = vmatpush.msra.mxu0 0.0
        %809 = vmatpush.msra.mxu0 0.0
        %810 = vmatpush.msra.mxu0 0.0
        %811 = vmatpush.msra.mxu0 %v791
        %812 = vmatmul.f32.gmra.mxu0 %v794
        %v813 = vpop.f32.mrf.mxu0
        %v814 = vadd.f32 0.0, %v813
        %815 = vdwg.mxu0
        %v816 = vsel %vm717, %v814, -inf
        %817 = vmax.xlane.f32.xlu0 %v816
        %v818 = vpop.xlane.xlu0 %817
        %v819 = vsub.f32 %v814, %v818
        %v820 = vmul.f32 %v819, 1.442695
        %v821 = vpow.pop %v820
        %v822 = vsel %vm717, %v821, 0.0
        %823 = vadd.xlane.f32.xlu0 %v822
        %v824 = vpop.xlane.xlu0 %823
        %v825 = vrcp.pop %v824
        %v826 = vmul.f32 %v824, %v825
        %v827 = vsub.f32 1.0, %v826
        %v828 = vmul.f32 %v825, %v827
        %v829 = vadd.f32 %v825, %v828
        %vm830 = vweird.f32 %v824
        %vm831 = vweird.f32 %v825
        %vm832 = vmor %vm830, %vm831
        %v833 = vsel %vm832, %v825, %v829
        %v834 = vand.u32 2147483647, %v824
        %vm835 = vcmp.eq.f32.partialorder %v834, 8.507059e+37
        %v836 = vand.u32 %v824, 2147483648
        %v837 = vor.u32 1.1754944e-38, %v836
        %v838 = vsel %vm835, %v837, %v833
        %v839 = vmul.f32 %v821, %v838
        %s840 = scalar_lea.vmem %s461, 8 [#allocation17]
        %841 = vst.msk [vmem:[%s840] sm:$0xff] %vm717, %v839
        %s842 = scalar_lea.vmem [#allocation3], 8
        %v843 = vld [vmem:[%s842] sm:$0xff]
        %v845 = vsel %vm717, %v839, 0
        %847 = vmatpush.msra.mxu0 0.0
        %848 = vmatpush.msra.mxu0 0.0
        %849 = vmatpush.msra.mxu0 0.0
        %850 = vmatpush.msra.mxu0 0.0
        %851 = vmatpush.msra.mxu0 0.0
        %852 = vmatpush.msra.mxu0 0.0
        %853 = vmatpush.msra.mxu0 0.0
        %854 = vmatpush.msra.mxu0 0.0
        %855 = vmatpush.msra.mxu0 0.0
        %856 = vmatpush.msra.mxu0 0.0
        %857 = vmatpush.msra.mxu0 0.0
        %858 = vmatpush.msra.mxu0 0.0
        %859 = vmatpush.msra.mxu0 0.0
        %860 = vmatpush.msra.mxu0 0.0
        %861 = vmatpush.msra.mxu0 0.0
        %862 = vmatpush.msra.mxu0 %v843
        %863 = vmatmul.f32.gmra.mxu0 %v845
        %v864 = vpop.f32.mrf.mxu0
        %v865 = vadd.f32 0.0, %v864
        %866 = vdwg.mxu0
        %s867 = scalar_lea.vmem [#allocation2], 16
        %v868 = vld [vmem:[%s867] sm:$0xff]
        %869 = vrot.lane.b32.xlu0 %v715, 112
        %v870 = vpop.permute.xlu0 %869
        %v871 = vsel %vm717, %v870, 0
        %873 = vmatpush.msra.mxu0 0.0
        %874 = vmatpush.msra.mxu0 0.0
        %875 = vmatpush.msra.mxu0 0.0
        %876 = vmatpush.msra.mxu0 0.0
        %877 = vmatpush.msra.mxu0 0.0
        %878 = vmatpush.msra.mxu0 0.0
        %879 = vmatpush.msra.mxu0 0.0
        %880 = vmatpush.msra.mxu0 0.0
        %881 = vmatpush.msra.mxu0 0.0
        %882 = vmatpush.msra.mxu0 0.0
        %883 = vmatpush.msra.mxu0 0.0
        %884 = vmatpush.msra.mxu0 0.0
        %885 = vmatpush.msra.mxu0 0.0
        %886 = vmatpush.msra.mxu0 0.0
        %887 = vmatpush.msra.mxu0 0.0
        %888 = vmatpush.msra.mxu0 %v868
        %889 = vmatmul.f32.gmra.mxu0 %v871
        %v890 = vpop.f32.mrf.mxu0
        %v891 = vadd.f32 0.0, %v890
        %892 = vdwg.mxu0
        %v893 = vsel %vm717, %v891, -inf
        %894 = vmax.xlane.f32.xlu0 %v893
        %v895 = vpop.xlane.xlu0 %894
        %v896 = vsub.f32 %v891, %v895
        %v897 = vmul.f32 %v896, 1.442695
        %v898 = vpow.pop %v897
        %v899 = vsel %vm717, %v898, 0.0
        %900 = vadd.xlane.f32.xlu0 %v899
        %v901 = vpop.xlane.xlu0 %900
        %v902 = vrcp.pop %v901
        %v903 = vmul.f32 %v901, %v902
        %v904 = vsub.f32 1.0, %v903
        %v905 = vmul.f32 %v902, %v904
        %v906 = vadd.f32 %v902, %v905
        %vm907 = vweird.f32 %v901
        %vm908 = vweird.f32 %v902
        %vm909 = vmor %vm907, %vm908
        %v910 = vsel %vm909, %v902, %v906
        %v911 = vand.u32 2147483647, %v901
        %vm912 = vcmp.eq.f32.partialorder %v911, 8.507059e+37
        %v913 = vand.u32 %v901, 2147483648
        %v914 = vor.u32 1.1754944e-38, %v913
        %v915 = vsel %vm912, %v914, %v910
        %v916 = vmul.f32 %v898, %v915
        %s917 = scalar_lea.vmem %s461, 16 [#allocation17]
        %918 = vst.msk [vmem:[%s917] sm:$0xff] %vm717, %v916
        %s919 = scalar_lea.vmem [#allocation3], 16
        %v920 = vld [vmem:[%s919] sm:$0xff]
        %v922 = vsel %vm717, %v916, 0
        %924 = vmatpush.msra.mxu0 0.0
        %925 = vmatpush.msra.mxu0 0.0
        %926 = vmatpush.msra.mxu0 0.0
        %927 = vmatpush.msra.mxu0 0.0
        %928 = vmatpush.msra.mxu0 0.0
        %929 = vmatpush.msra.mxu0 0.0
        %930 = vmatpush.msra.mxu0 0.0
        %931 = vmatpush.msra.mxu0 0.0
        %932 = vmatpush.msra.mxu0 0.0
        %933 = vmatpush.msra.mxu0 0.0
        %934 = vmatpush.msra.mxu0 0.0
        %935 = vmatpush.msra.mxu0 0.0
        %936 = vmatpush.msra.mxu0 0.0
        %937 = vmatpush.msra.mxu0 0.0
        %938 = vmatpush.msra.mxu0 0.0
        %939 = vmatpush.msra.mxu0 %v920
        %940 = vmatmul.f32.gmra.mxu0 %v922
        %v941 = vpop.f32.mrf.mxu0
        %v942 = vadd.f32 0.0, %v941
        %943 = vdwg.mxu0
        %s944 = scalar_lea.vmem [#allocation2], 24
        %v945 = vld [vmem:[%s944] sm:$0xff]
        %946 = vrot.lane.b32.xlu0 %v715, 104
        %v947 = vpop.permute.xlu0 %946
        %v948 = vsel %vm717, %v947, 0
        %950 = vmatpush.msra.mxu0 0.0
        %951 = vmatpush.msra.mxu0 0.0
        %952 = vmatpush.msra.mxu0 0.0
        %953 = vmatpush.msra.mxu0 0.0
        %954 = vmatpush.msra.mxu0 0.0
        %955 = vmatpush.msra.mxu0 0.0
        %956 = vmatpush.msra.mxu0 0.0
        %957 = vmatpush.msra.mxu0 0.0
        %958 = vmatpush.msra.mxu0 0.0
        %959 = vmatpush.msra.mxu0 0.0
        %960 = vmatpush.msra.mxu0 0.0
        %961 = vmatpush.msra.mxu0 0.0
        %962 = vmatpush.msra.mxu0 0.0
        %963 = vmatpush.msra.mxu0 0.0
        %964 = vmatpush.msra.mxu0 0.0
        %965 = vmatpush.msra.mxu0 %v945
        %966 = vmatmul.f32.gmra.mxu0 %v948
        %v967 = vpop.f32.mrf.mxu0
        %v968 = vadd.f32 0.0, %v967
        %969 = vdwg.mxu0
        %v970 = vsel %vm717, %v968, -inf
        %971 = vmax.xlane.f32.xlu0 %v970
        %v972 = vpop.xlane.xlu0 %971
        %v973 = vsub.f32 %v968, %v972
        %v974 = vmul.f32 %v973, 1.442695
        %v975 = vpow.pop %v974
        %v976 = vsel %vm717, %v975, 0.0
        %977 = vadd.xlane.f32.xlu0 %v976
        %v978 = vpop.xlane.xlu0 %977
        %v979 = vrcp.pop %v978
        %v980 = vmul.f32 %v978, %v979
        %v981 = vsub.f32 1.0, %v980
        %v982 = vmul.f32 %v979, %v981
        %v983 = vadd.f32 %v979, %v982
        %vm984 = vweird.f32 %v978
        %vm985 = vweird.f32 %v979
        %vm986 = vmor %vm984, %vm985
        %v987 = vsel %vm986, %v979, %v983
        %v988 = vand.u32 2147483647, %v978
        %vm989 = vcmp.eq.f32.partialorder %v988, 8.507059e+37
        %v990 = vand.u32 %v978, 2147483648
        %v991 = vor.u32 1.1754944e-38, %v990
        %v992 = vsel %vm989, %v991, %v987
        %v993 = vmul.f32 %v975, %v992
        %s994 = scalar_lea.vmem %s461, 24 [#allocation17]
        %995 = vst.msk [vmem:[%s994] sm:$0xff] %vm717, %v993
        %s996 = scalar_lea.vmem [#allocation3], 24
        %v997 = vld [vmem:[%s996] sm:$0xff]
        %v999 = vsel %vm717, %v993, 0
        %1001 = vmatpush.msra.mxu0 0.0
        %1002 = vmatpush.msra.mxu0 0.0
        %1003 = vmatpush.msra.mxu0 0.0
        %1004 = vmatpush.msra.mxu0 0.0
        %1005 = vmatpush.msra.mxu0 0.0
        %1006 = vmatpush.msra.mxu0 0.0
        %1007 = vmatpush.msra.mxu0 0.0
        %1008 = vmatpush.msra.mxu0 0.0
        %1009 = vmatpush.msra.mxu0 0.0
        %1010 = vmatpush.msra.mxu0 0.0
        %1011 = vmatpush.msra.mxu0 0.0
        %1012 = vmatpush.msra.mxu0 0.0
        %1013 = vmatpush.msra.mxu0 0.0
        %1014 = vmatpush.msra.mxu0 0.0
        %1015 = vmatpush.msra.mxu0 0.0
        %1016 = vmatpush.msra.mxu0 %v997
        %1017 = vmatmul.f32.gmra.mxu0 %v999
        %v1018 = vpop.f32.mrf.mxu0
        %v1019 = vadd.f32 0.0, %v1018
        %1020 = vdwg.mxu0
        %1022 = vrot.lane.b32.xlu0 %v865, 8
        %v1023 = vpop.permute.xlu0 %1022
        %1026 = vrot.lane.b32.xlu0 %v942, 16
        %v1027 = vpop.permute.xlu0 %1026
        %1030 = vrot.lane.b32.xlu0 %v1019, 24
        %v1031 = vpop.permute.xlu0 %1030
        %v1033 = vsel %vm717, %v788, %v1023
        %vm1034 = vcmask 130048
        %v1035 = vsel %vm1034, %v1033, %v1027
        %vm1036 = vcmask 195584
        %v1037 = vsel %vm1036, %v1035, %v1031
        %v1038 = vld [vmem:[#allocation15] sm:$0xff]
        %v1039 = vld [vmem:[#allocation15 + $0x8] sm:$0xff]
        %v1040 = vld [vmem:[#allocation15 + $0x10] sm:$0xff]
        %v1041 = vld [vmem:[#allocation15 + $0x18] sm:$0xff]
        %v1043 = vsel %vm691, %v1037, 0
        %1045 = vmatpush.msra.mxu0 0.0
        %1046 = vmatpush.msra.mxu0 0.0
        %1047 = vmatpush.msra.mxu0 0.0
        %1048 = vmatpush.msra.mxu0 0.0
        %1049 = vmatpush.msra.mxu0 0.0
        %1050 = vmatpush.msra.mxu0 0.0
        %1051 = vmatpush.msra.mxu0 0.0
        %1052 = vmatpush.msra.mxu0 0.0
        %1053 = vmatpush.msra.mxu0 0.0
        %1054 = vmatpush.msra.mxu0 0.0
        %1055 = vmatpush.msra.mxu0 0.0
        %1056 = vmatpush.msra.mxu0 0.0
        %1057 = vmatpush.msra.mxu0 %v1041
        %1058 = vmatpush.msra.mxu0 %v1040
        %1059 = vmatpush.msra.mxu0 %v1039
        %1060 = vmatpush.msra.mxu0 %v1038
        %1061 = vmatmul.f32.gmra.mxu0 %v1043
        %v1062 = vpop.f32.mrf.mxu0
        %v1063 = vadd.f32 0.0, %v1062
        %1064 = vdwg.mxu0
        %1065 = vst.msk [vmem:[%s454] sm:$0xff] %vm691, %v1063
        %s1066 = sand.u32 %s218, 1
        %s1067 = scalar_lea.sflag [#allocation6], %s1066
        %s1068 = sand.u32 %s218, 1
        %s1069 = smul.addr %s1068, 8
        %s1070 = scalar_lea.vmem [#allocation16], %s1069
        %s1071 = sand.u32 %s246, 1
        %s1072 = scalar_lea.sflag [#allocation18], %s1071
        %s1073 = sand.u32 %s246, 1
        %s1074 = smul.addr %s1073, 32
        %s1075 = scalar_lea.vmem [#allocation17], %s1074
        // Predicated region
        $region81: #{tpu_custom_call.1} parent=47 // pred_check
          %p1076 = pneg %p228
        $region82: #{tpu_custom_call.1} parent=47 // pred_check_branch
          %1078 = sbr.rel (%p1076) target = $region84
        $region83: #{tpu_custom_call.1} parent=47 // pred_region
          %1080 = vsyncadd %s1067, 0
          %s1081 = sadd.s32 %s37, %s36
          %s1082 = smul.addr %s1081, 8
          %s1083 = scalar_lea.hbm %s7, %s1082
          %s1085 = sshll.u32 %s1070, 4
          %s1086 = int_to_ptr.vmem [resolvable:$true] %s1085
          %s1087 = sshll.u32 %s1083, 4
          %s1088 = int_to_ptr.hbm [resolvable:$true] %s1087
          %1090 = dma.vmem_to_hbm [thread:$0]  %s1086, 128, %s1088, %s1067
        $region84: #{tpu_custom_call.1} parent=47 // pred_fallthru
          _
        // Predicated region
        $region85: #{tpu_custom_call.1} parent=47 // pred_check
          %p1091 = pneg %p256
        $region86: #{tpu_custom_call.1} parent=47 // pred_check_branch
          %1093 = sbr.rel (%p1091) target = $region88
        $region87: #{tpu_custom_call.1} parent=47 // pred_region
          %1095 = vsyncadd %s1072, 0
          %s1096 = smul.addr %s36, 4
          %s1097 = sadd.s32 %s37, %s1096
          %s1098 = smul.addr %s1097, 8
          %s1099 = scalar_lea.hbm %s8, %s1098
          %s1100 = sshll.u32 %s1075, 4
          %s1101 = int_to_ptr.vmem [resolvable:$true] %s1100
          %s1102 = sshll.u32 %s1099, 4
          %s1103 = int_to_ptr.hbm [resolvable:$true] %s1102
          %1108 = dma.vmem_to_hbm [thread:$0]  %s1101, 512, %s1103, %s1072, 128, 128, 8
        $region88: #{tpu_custom_call.1} parent=47 // pred_fallthru
          _
      $region48: #{tpu_custom_call.1} parent=5 // pred_fallthru
        _
      %p1109 = scmp.le.s32.totalorder 2, %s27
      // Predicated region
      $region89: #{tpu_custom_call.1} parent=5 // pred_check
        %p1110 = pneg %p1109
      $region90: #{tpu_custom_call.1} parent=5 // pred_check_branch
        %1112 = sbr.rel (%p1110) target = $region92
      $region91: #{tpu_custom_call.1} parent=5 // pred_region
        %s1113 = ssub.s32 %s27, 2
        // Predicated region
        $region93: #{tpu_custom_call.1} parent=91 // pred_check
          %p1114 = pneg %p234
        $region94: #{tpu_custom_call.1} parent=91 // pred_check_branch
          %1116 = sbr.rel (%p1114) target = $region96
        $region95: #{tpu_custom_call.1} parent=91 // pred_region
          %s1117 = sand.u32 %s219, 1
          %s1118 = scalar_lea.sflag [#allocation6], %s1117
          %s1119 = sand.u32 %s219, 1
          %s1120 = smul.addr %s1119, 8
          %s1121 = scalar_lea.vmem [#allocation16], %s1120
          %1123 = dma.done %s1118, 128
        $region96: #{tpu_custom_call.1} parent=91 // pred_fallthru
          _
        // Predicated region
        $region97: #{tpu_custom_call.1} parent=91 // pred_check
          %p1124 = pneg %p262
        $region98: #{tpu_custom_call.1} parent=91 // pred_check_branch
          %1126 = sbr.rel (%p1124) target = $region100
        $region99: #{tpu_custom_call.1} parent=91 // pred_region
          %s1127 = sand.u32 %s247, 1
          %s1128 = scalar_lea.sflag [#allocation18], %s1127
          %s1129 = sand.u32 %s247, 1
          %s1130 = smul.addr %s1129, 32
          %s1131 = scalar_lea.vmem [#allocation17], %s1130
          %1133 = dma.done %s1128, 512
        $region100: #{tpu_custom_call.1} parent=91 // pred_fallthru
          _
      $region92: #{tpu_custom_call.1} parent=5 // pred_fallthru
        _
    $region6: #{tpu_custom_call.1} parent=1 // loop_footer
      %s31 = sadd.s32 1, %s27
    $region7: #{tpu_custom_call.1} parent=1 // loop_footer_branch
      %26 = sbr.rel target = $region3
    $region8: #{tpu_custom_call.1} parent=1 // loop_exit
      _
    %1134 = vsyncpa [#allocation5], 1
    %s1135 = scalar_lea.sflag [#allocation5], 1
    %1136 = vsyncpa %s1135, 1
    %1137 = vsyncpa [#allocation8], 1
    %1138 = vsyncpa [#allocation11], 1
    %1139 = vsyncpa [#allocation14], 1
    %1140 = vsyncpa [#allocation6], 1
    %s1141 = scalar_lea.sflag [#allocation6], 1
    %1142 = vsyncpa %s1141, 1
    %1143 = vsyncpa [#allocation18], 1
    %s1144 = scalar_lea.sflag [#allocation18], 1
    %1145 = vsyncpa %s1144, 1

// kernel: tpu_custom_call.1
$region0: #{tpu_custom_call.1}
  #allocation0 [shape = 'u32[]', space=smem, size = 0x4, offset = 0x4, fixed_abs, tag = 'smem constant byte address 0x4 - core index']
  #allocation1 [shape = 'u32[72,128]{1,0:T(1,128)}', space=vmem, size = 0x9000, scoped, tag = 'internal scratch']
  #allocation2 [shape = 'f32[4,8,8]{2,1,0:T(8,128)}', space=vmem, size = 0x4000, scoped, tag = 'scratch operand']
  #allocation3 [shape = 'f32[4,8,8]{2,1,0:T(8,128)}', space=vmem, size = 0x4000, scoped, tag = 'scratch operand']
  %s0 = inlined_call_operand.hbm [shape: f32[2,8,32], index: 0, kind: input, shape index: {}]
  %s1 = inlined_call_operand.hbm [shape: f32[2,8,32], index: 1, kind: input, shape index: {}]
  %s2 = inlined_call_operand.hbm [shape: f32[2,8,32], index: 2, kind: input, shape index: {}]
  %s3 = inlined_call_operand.hbm [shape: f32[32,32], index: 3, kind: input, shape index: {}]
  %s4 = inlined_call_operand.hbm [shape: f32[32,32], index: 4, kind: input, shape index: {}]
  %s5 = inlined_call_operand.hbm [shape: f32[32,32], index: 5, kind: input, shape index: {}]
  %s6 = inlined_call_operand.hbm [shape: f32[32,32], index: 6, kind: input, shape index: {}]
  %s7 = inlined_call_operand.hbm [shape: f32[2,8,32], index: 7, kind: output, shape index: {0}]
  %s8 = inlined_call_operand.hbm [shape: f32[2,4,8,8], index: 8, kind: output, shape index: {1}]
  %9 = xla_tuple %s7, %s8
  %s10 = sld [smem:[#allocation0]]
  $region101: #{tpu_custom_call.1} parent=0
    _
  %s12 = ssub.s32 1, %s10
  %s13 = scalar_select 0, %s12, %s10
  $region1: #{tpu_custom_call.1} parent=0
    #allocation4 [shape = 'u8[8192]{0}', space=vmem, size = 0x2000, scoped, tag = 'input window, operand 0']
    #allocation5 [shape = 's32[2]{0}', space=sflag, size = 0x8, scoped, tag = 'scoped memory for tpu_custom_call.1']
    #allocation6 [shape = 's32[2]{0}', space=sflag, size = 0x8, scoped, tag = 'scoped memory for tpu_custom_call.1']
    #allocation7 [shape = 'u8[8192]{0}', space=vmem, size = 0x2000, scoped, tag = 'input window, operand 1']
    #allocation8 [shape = 's32[2]{0}', space=sflag, size = 0x8, scoped, tag = 'scoped memory for tpu_custom_call.1']
    #allocation9 [shape = 'u8[8192]{0}', space=vmem, size = 0x2000, scoped, tag = 'input window, operand 2']
    #allocation10 [shape = 'u8[16384]{0}', space=vmem, size = 0x4000, scoped, tag = 'input window, operand 3, single buffered']
    #allocation11 [shape = 's32[1]{0}', space=sflag, size = 0x4, scoped, tag = 'scoped memory for tpu_custom_call.1']
    #allocation12 [shape = 'u8[16384]{0}', space=vmem, size = 0x4000, scoped, tag = 'input window, operand 4, single buffered']
    #allocation13 [shape = 'u8[16384]{0}', space=vmem, size = 0x4000, scoped, tag = 'input window, operand 5, single buffered']
    #allocation14 [shape = 's32[1]{0}', space=sflag, size = 0x4, scoped, tag = 'scoped memory for tpu_custom_call.1']
    #allocation15 [shape = 'u8[16384]{0}', space=vmem, size = 0x4000, scoped, tag = 'input window, operand 6, single buffered']
    #allocation16 [shape = 'u8[8192]{0}', space=vmem, size = 0x2000, scoped, tag = 'output window, operand 0']
    #allocation17 [shape = 'u8[32768]{0}', space=vmem, size = 0x8000, scoped, tag = 'output window, operand 1']
    #allocation18 [shape = 's32[2]{0}', space=sflag, size = 0x8, scoped, tag = 'scoped memory for tpu_custom_call.1']
    %14 = vsyncpa [#allocation5], 0
    %s15 = scalar_lea.sflag [#allocation5], 1
    %16 = vsyncpa %s15, 0
    %17 = vsyncpa [#allocation8], 0
    %s18 = scalar_lea.sflag [#allocation8], 1
    %19 = vsyncpa %s18, 0
    %20 = vsyncpa [#allocation11], 0
    %21 = vsyncpa [#allocation14], 0
    %22 = vsyncpa [#allocation6], 0
    %s23 = scalar_lea.sflag [#allocation6], 1
    %24 = vsyncpa %s23, 0
    %25 = vsyncpa [#allocation18], 0
    %s26 = scalar_lea.sflag [#allocation18], 1
    %27 = vsyncpa %s26, 0
    loop: start=0, step=1, limit=4
    $region2: #{tpu_custom_call.1} parent=1 // loop_pre_header
      _
    $region3: #{tpu_custom_call.1} parent=1 // loop_header
      %s29 = sphi 0, %s33
      %p30 = scmp.ge.s32.totalorder %s29, 4
      %s36 = sphi 0, %s48
      %s37 = sphi 0, %s44
      %s38 = sphi 0, %s36
      %s39 = sphi 0, %s37
      %s40 = sphi 0, %s38
      %s41 = sphi 0, %s39
      %s53 = sphi 0, %s55
      %s56 = sphi 0, %s53
      %s57 = sphi 0, %s56
      %s73 = sphi 0, %s57
      %s79 = sphi 0, %s81
      %s82 = sphi 0, %s79
      %s83 = sphi 0, %s82
      %s99 = sphi 0, %s83
      %s105 = sphi 0, %s107
      %s108 = sphi 0, %s105
      %s109 = sphi 0, %s108
      %s125 = sphi 0, %s109
      %s129 = sphi 0, %s129
      %s131 = sphi 0, %s129
      %s132 = sphi 0, %s131
      %s146 = sphi 0, %s132
      %s150 = sphi 0, %s150
      %s152 = sphi 0, %s150
      %s153 = sphi 0, %s152
      %s167 = sphi 0, %s153
      %s171 = sphi 0, %s171
      %s173 = sphi 0, %s171
      %s174 = sphi 0, %s173
      %s188 = sphi 0, %s174
      %s192 = sphi 0, %s192
      %s194 = sphi 0, %s192
      %s195 = sphi 0, %s194
      %s209 = sphi 0, %s195
      %s217 = sphi 0, %s219
      %s220 = sphi 0, %s217
      %s221 = sphi 0, %s220
      %s237 = sphi 0, %s221
      %s245 = sphi 0, %s247
      %s248 = sphi 0, %s245
      %s249 = sphi 0, %s248
      %s265 = sphi 0, %s249
    $region4: #{tpu_custom_call.1} parent=1 // loop_header_branch
      %32 = sbr.rel (%p30) target = $region8
    $region5: #{tpu_custom_call.1} parent=1 // loop_body
      %s34 = ssub.s32 %s29, 1
      %s35 = ssub.s32 %s29, 2
      %s42 = sadd.s32 1, %s37
      %p43 = scmp.ge.s32.totalorder %s42, 1
      %s44 = scalar_select %p43, 0, %s42
      %s45 = sadd.s32 1, %s36
      %s46 = scalar_select %p43, %s45, %s36
      %p47 = scmp.ge.s32.totalorder %s46, 2
      %s48 = scalar_select %p47, 0, %s46
      %s49 = ssub.s32 %s36, %s48
      %s50 = ssub.s32 %s37, %s44
      %s51 = sor.u32 %s49, %s50
      %p52 = scmp.eq.s32.totalorder %s51, 0
      %s54 = sadd.s32 %s53, 1
      %s55 = scalar_select %p52, %s53, %s54
      %p58 = pneg %p52
      %p59 = scmp.eq.s32.totalorder %s29, 1
      %p60 = por %p58, %p59
      %p61 = scmp.ne.s32.totalorder %s53, %s56
      %p62 = scmp.eq.s32.totalorder %s29, 0
      %p63 = por %p61, %p62
      %p64 = scmp.ne.s32.totalorder %s53, %s56
      %p65 = scmp.eq.s32.totalorder %s34, 1
      %p66 = por %p64, %p65
      %p67 = scmp.ne.s32.totalorder %s56, %s57
      %p68 = scmp.eq.s32.totalorder %s34, 0
      %p69 = por %p67, %p68
      %p70 = scmp.ne.s32.totalorder %s56, %s57
      %p71 = scmp.eq.s32.totalorder %s35, 1
      %p72 = por %p70, %p71
      %p74 = scmp.ne.s32.totalorder %s57, %s73
      %p75 = scmp.eq.s32.totalorder %s35, 0
      %p76 = por %p74, %p75
      %s77 = ssub.s32 %s36, %s48
      %p78 = scmp.eq.s32.totalorder %s77, 0
      %s80 = sadd.s32 %s79, 1
      %s81 = scalar_select %p78, %s79, %s80
      %p84 = pneg %p78
      %p85 = scmp.eq.s32.totalorder %s29, 1
      %p86 = por %p84, %p85
      %p87 = scmp.ne.s32.totalorder %s79, %s82
      %p88 = scmp.eq.s32.totalorder %s29, 0
      %p89 = por %p87, %p88
      %p90 = scmp.ne.s32.totalorder %s79, %s82
      %p91 = scmp.eq.s32.totalorder %s34, 1
      %p92 = por %p90, %p91
      %p93 = scmp.ne.s32.totalorder %s82, %s83
      %p94 = scmp.eq.s32.totalorder %s34, 0
      %p95 = por %p93, %p94
      %p96 = scmp.ne.s32.totalorder %s82, %s83
      %p97 = scmp.eq.s32.totalorder %s35, 1
      %p98 = por %p96, %p97
      %p100 = scmp.ne.s32.totalorder %s83, %s99
      %p101 = scmp.eq.s32.totalorder %s35, 0
      %p102 = por %p100, %p101
      %s103 = ssub.s32 %s36, %s48
      %p104 = scmp.eq.s32.totalorder %s103, 0
      %s106 = sadd.s32 %s105, 1
      %s107 = scalar_select %p104, %s105, %s106
      %p110 = pneg %p104
      %p111 = scmp.eq.s32.totalorder %s29, 1
      %p112 = por %p110, %p111
      %p113 = scmp.ne.s32.totalorder %s105, %s108
      %p114 = scmp.eq.s32.totalorder %s29, 0
      %p115 = por %p113, %p114
      %p116 = scmp.ne.s32.totalorder %s105, %s108
      %p117 = scmp.eq.s32.totalorder %s34, 1
      %p118 = por %p116, %p117
      %p119 = scmp.ne.s32.totalorder %s108, %s109
      %p120 = scmp.eq.s32.totalorder %s34, 0
      %p121 = por %p119, %p120
      %p122 = scmp.ne.s32.totalorder %s108, %s109
      %p123 = scmp.eq.s32.totalorder %s35, 1
      %p124 = por %p122, %p123
      %p126 = scmp.ne.s32.totalorder %s109, %s125
      %p127 = scmp.eq.s32.totalorder %s35, 0
      %p128 = por %p126, %p127
      %s130 = sadd.s32 %s129, 1
      %p133 = scmp.eq.s32.totalorder %s29, 1
      %p134 = scmp.ne.s32.totalorder %s129, %s131
      %p135 = scmp.eq.s32.totalorder %s29, 0
      %p136 = por %p134, %p135
      %p137 = scmp.ne.s32.totalorder %s129, %s131
      %p138 = scmp.eq.s32.totalorder %s34, 1
      %p139 = por %p137, %p138
      %p140 = scmp.ne.s32.totalorder %s131, %s132
      %p141 = scmp.eq.s32.totalorder %s34, 0
      %p142 = por %p140, %p141
      %p143 = scmp.ne.s32.totalorder %s131, %s132
      %p144 = scmp.eq.s32.totalorder %s35, 1
      %p145 = por %p143, %p144
      %p147 = scmp.ne.s32.totalorder %s132, %s146
      %p148 = scmp.eq.s32.totalorder %s35, 0
      %p149 = por %p147, %p148
      %s151 = sadd.s32 %s150, 1
      %p154 = scmp.eq.s32.totalorder %s29, 1
      %p155 = scmp.ne.s32.totalorder %s150, %s152
      %p156 = scmp.eq.s32.totalorder %s29, 0
      %p157 = por %p155, %p156
      %p158 = scmp.ne.s32.totalorder %s150, %s152
      %p159 = scmp.eq.s32.totalorder %s34, 1
      %p160 = por %p158, %p159
      %p161 = scmp.ne.s32.totalorder %s152, %s153
      %p162 = scmp.eq.s32.totalorder %s34, 0
      %p163 = por %p161, %p162
      %p164 = scmp.ne.s32.totalorder %s152, %s153
      %p165 = scmp.eq.s32.totalorder %s35, 1
      %p166 = por %p164, %p165
      %p168 = scmp.ne.s32.totalorder %s153, %s167
      %p169 = scmp.eq.s32.totalorder %s35, 0
      %p170 = por %p168, %p169
      %s172 = sadd.s32 %s171, 1
      %p175 = scmp.eq.s32.totalorder %s29, 1
      %p176 = scmp.ne.s32.totalorder %s171, %s173
      %p177 = scmp.eq.s32.totalorder %s29, 0
      %p178 = por %p176, %p177
      %p179 = scmp.ne.s32.totalorder %s171, %s173
      %p180 = scmp.eq.s32.totalorder %s34, 1
      %p181 = por %p179, %p180
      %p182 = scmp.ne.s32.totalorder %s173, %s174
      %p183 = scmp.eq.s32.totalorder %s34, 0
      %p184 = por %p182, %p183
      %p185 = scmp.ne.s32.totalorder %s173, %s174
      %p186 = scmp.eq.s32.totalorder %s35, 1
      %p187 = por %p185, %p186
      %p189 = scmp.ne.s32.totalorder %s174, %s188
      %p190 = scmp.eq.s32.totalorder %s35, 0
      %p191 = por %p189, %p190
      %s193 = sadd.s32 %s192, 1
      %p196 = scmp.eq.s32.totalorder %s29, 1
      %p197 = scmp.ne.s32.totalorder %s192, %s194
      %p198 = scmp.eq.s32.totalorder %s29, 0
      %p199 = por %p197, %p198
      %p200 = scmp.ne.s32.totalorder %s192, %s194
      %p201 = scmp.eq.s32.totalorder %s34, 1
      %p202 = por %p200, %p201
      %p203 = scmp.ne.s32.totalorder %s194, %s195
      %p204 = scmp.eq.s32.totalorder %s34, 0
      %p205 = por %p203, %p204
      %p206 = scmp.ne.s32.totalorder %s194, %s195
      %p207 = scmp.eq.s32.totalorder %s35, 1
      %p208 = por %p206, %p207
      %p210 = scmp.ne.s32.totalorder %s195, %s209
      %p211 = scmp.eq.s32.totalorder %s35, 0
      %p212 = por %p210, %p211
      %s213 = ssub.s32 %s36, %s48
      %s214 = ssub.s32 %s37, %s44
      %s215 = sor.u32 %s213, %s214
      %p216 = scmp.eq.s32.totalorder %s215, 0
      %s218 = sadd.s32 %s217, 1
      %s219 = scalar_select %p216, %s217, %s218
      %p222 = pneg %p216
      %p223 = scmp.eq.s32.totalorder %s29, 1
      %p224 = por %p222, %p223
      %p225 = scmp.ne.s32.totalorder %s217, %s220
      %p226 = scmp.eq.s32.totalorder %s29, 0
      %p227 = por %p225, %p226
      %p228 = scmp.ne.s32.totalorder %s217, %s220
      %p229 = scmp.eq.s32.totalorder %s34, 1
      %p230 = por %p228, %p229
      %p231 = scmp.ne.s32.totalorder %s220, %s221
      %p232 = scmp.eq.s32.totalorder %s34, 0
      %p233 = por %p231, %p232
      %p234 = scmp.ne.s32.totalorder %s220, %s221
      %p235 = scmp.eq.s32.totalorder %s35, 1
      %p236 = por %p234, %p235
      %p238 = scmp.ne.s32.totalorder %s221, %s237
      %p239 = scmp.eq.s32.totalorder %s35, 0
      %p240 = por %p238, %p239
      %s241 = ssub.s32 %s36, %s48
      %s242 = ssub.s32 %s37, %s44
      %s243 = sor.u32 %s241, %s242
      %p244 = scmp.eq.s32.totalorder %s243, 0
      %s246 = sadd.s32 %s245, 1
      %s247 = scalar_select %p244, %s245, %s246
      %p250 = pneg %p244
      %p251 = scmp.eq.s32.totalorder %s29, 1
      %p252 = por %p250, %p251
      %p253 = scmp.ne.s32.totalorder %s245, %s248
      %p254 = scmp.eq.s32.totalorder %s29, 0
      %p255 = por %p253, %p254
      %p256 = scmp.ne.s32.totalorder %s245, %s248
      %p257 = scmp.eq.s32.totalorder %s34, 1
      %p258 = por %p256, %p257
      %p259 = scmp.ne.s32.totalorder %s248, %s249
      %p260 = scmp.eq.s32.totalorder %s34, 0
      %p261 = por %p259, %p260
      %p262 = scmp.ne.s32.totalorder %s248, %s249
      %p263 = scmp.eq.s32.totalorder %s35, 1
      %p264 = por %p262, %p263
      %p266 = scmp.ne.s32.totalorder %s249, %s265
      %p267 = scmp.eq.s32.totalorder %s35, 0
      %p268 = por %p266, %p267
      %p269 = scmp.le.s32.totalorder 1, %s29
      %p270 = scmp.lt.s32.totalorder %s29, 3
      %p271 = pnand %p269, %p270
      %p272 = pneg %p271
      // Predicated region
      $region9: #{tpu_custom_call.1} parent=5 // pred_check
        _
      $region10: #{tpu_custom_call.1} parent=5 // pred_check_branch
        %274 = sbr.rel (%p271) target = $region12
      $region11: #{tpu_custom_call.1} parent=5 // pred_region
        %s275 = ssub.s32 %s29, 1
        // Predicated region
        $region13: #{tpu_custom_call.1} parent=11 // pred_check
          %p276 = pneg %p142
        $region14: #{tpu_custom_call.1} parent=11 // pred_check_branch
          %278 = sbr.rel (%p276) target = $region16
        $region15: #{tpu_custom_call.1} parent=11 // pred_region
          %280 = vsyncadd [#allocation11], 0
          %s281 = sshll.u32 %s3, 4
          %s282 = int_to_ptr.hbm [resolvable:$true] %s281
          %s283 = sshll.u32 [#allocation10], 4
          %s284 = int_to_ptr.vmem [resolvable:$true] %s283
          %289 = dma.hbm_to_vmem [thread:$0]  %s282, 512, %s284, [#allocation11], 128, 128, 8
        $region16: #{tpu_custom_call.1} parent=11 // pred_fallthru
          _
        // Predicated region
        $region17: #{tpu_custom_call.1} parent=11 // pred_check
          %p290 = pneg %p163
        $region18: #{tpu_custom_call.1} parent=11 // pred_check_branch
          %292 = sbr.rel (%p290) target = $region20
        $region19: #{tpu_custom_call.1} parent=11 // pred_region
          %294 = vsyncadd [#allocation11], 0
          %s295 = sshll.u32 %s4, 4
          %s296 = int_to_ptr.hbm [resolvable:$true] %s295
          %s297 = sshll.u32 [#allocation12], 4
          %s298 = int_to_ptr.vmem [resolvable:$true] %s297
          %303 = dma.hbm_to_vmem [thread:$0]  %s296, 512, %s298, [#allocation11], 128, 128, 8
        $region20: #{tpu_custom_call.1} parent=11 // pred_fallthru
          _
        // Predicated region
        $region21: #{tpu_custom_call.1} parent=11 // pred_check
          %p304 = pneg %p184
        $region22: #{tpu_custom_call.1} parent=11 // pred_check_branch
          %306 = sbr.rel (%p304) target = $region24
        $region23: #{tpu_custom_call.1} parent=11 // pred_region
          %308 = vsyncadd [#allocation14], 0
          %s309 = sshll.u32 %s5, 4
          %s310 = int_to_ptr.hbm [resolvable:$true] %s309
          %s311 = sshll.u32 [#allocation13], 4
          %s312 = int_to_ptr.vmem [resolvable:$true] %s311
          %317 = dma.hbm_to_vmem [thread:$0]  %s310, 512, %s312, [#allocation14], 128, 128, 8
        $region24: #{tpu_custom_call.1} parent=11 // pred_fallthru
          _
        // Predicated region
        $region25: #{tpu_custom_call.1} parent=11 // pred_check
          %p318 = pneg %p205
        $region26: #{tpu_custom_call.1} parent=11 // pred_check_branch
          %320 = sbr.rel (%p318) target = $region28
        $region27: #{tpu_custom_call.1} parent=11 // pred_region
          %322 = vsyncadd [#allocation14], 0
          %s323 = sshll.u32 %s6, 4
          %s324 = int_to_ptr.hbm [resolvable:$true] %s323
          %s325 = sshll.u32 [#allocation15], 4
          %s326 = int_to_ptr.vmem [resolvable:$true] %s325
          %331 = dma.hbm_to_vmem [thread:$0]  %s324, 512, %s326, [#allocation14], 128, 128, 8
        $region28: #{tpu_custom_call.1} parent=11 // pred_fallthru
          _
      $region12: #{tpu_custom_call.1} parent=5 // pred_fallthru
        _
      %p332 = scmp.lt.s32.totalorder %s29, 2
      // Predicated region
      $region29: #{tpu_custom_call.1} parent=5 // pred_check
        %p333 = pneg %p332
      $region30: #{tpu_custom_call.1} parent=5 // pred_check_branch
        %335 = sbr.rel (%p333) target = $region32
      $region31: #{tpu_custom_call.1} parent=5 // pred_region
        // Predicated region
        $region33: #{tpu_custom_call.1} parent=31 // pred_check
          %p336 = pneg %p63
        $region34: #{tpu_custom_call.1} parent=31 // pred_check_branch
          %338 = sbr.rel (%p336) target = $region36
        $region35: #{tpu_custom_call.1} parent=31 // pred_region
          %s339 = sand.u32 %s53, 1
          %s340 = scalar_lea.sflag [#allocation5], %s339
          %s341 = sand.u32 %s53, 1
          %s342 = smul.addr %s341, 8
          %s343 = scalar_lea.vmem [#allocation4], %s342
          %345 = vsyncadd %s340, 0
          %s346 = sadd.s32 %s37, %s36
          %s347 = smul.addr %s346, 8
          %s348 = scalar_lea.hbm %s0, %s347
          %s350 = sshll.u32 %s348, 4
          %s351 = int_to_ptr.hbm [resolvable:$true] %s350
          %s352 = sshll.u32 %s343, 4
          %s353 = int_to_ptr.vmem [resolvable:$true] %s352
          %355 = dma.hbm_to_vmem [thread:$0]  %s351, 128, %s353, %s340
        $region36: #{tpu_custom_call.1} parent=31 // pred_fallthru
          _
        // Predicated region
        $region37: #{tpu_custom_call.1} parent=31 // pred_check
          %p356 = pneg %p89
        $region38: #{tpu_custom_call.1} parent=31 // pred_check_branch
          %358 = sbr.rel (%p356) target = $region40
        $region39: #{tpu_custom_call.1} parent=31 // pred_region
          %s359 = sand.u32 %s29, 1
          %s360 = scalar_lea.sflag [#allocation8], %s359
          %s361 = sand.u32 %s79, 1
          %s362 = smul.addr %s361, 8
          %s363 = scalar_lea.vmem [#allocation7], %s362
          %365 = vsyncadd %s360, 0
          %s366 = smul.addr %s36, 8
          %s367 = scalar_lea.hbm %s1, %s366
          %s369 = sshll.u32 %s367, 4
          %s370 = int_to_ptr.hbm [resolvable:$true] %s369
          %s371 = sshll.u32 %s363, 4
          %s372 = int_to_ptr.vmem [resolvable:$true] %s371
          %374 = dma.hbm_to_vmem [thread:$0]  %s370, 128, %s372, %s360
        $region40: #{tpu_custom_call.1} parent=31 // pred_fallthru
          _
        // Predicated region
        $region41: #{tpu_custom_call.1} parent=31 // pred_check
          %p375 = pneg %p115
        $region42: #{tpu_custom_call.1} parent=31 // pred_check_branch
          %377 = sbr.rel (%p375) target = $region44
        $region43: #{tpu_custom_call.1} parent=31 // pred_region
          %s378 = sand.u32 %s29, 1
          %s379 = scalar_lea.sflag [#allocation8], %s378
          %s380 = sand.u32 %s105, 1
          %s381 = smul.addr %s380, 8
          %s382 = scalar_lea.vmem [#allocation9], %s381
          %384 = vsyncadd %s379, 0
          %s385 = smul.addr %s36, 8
          %s386 = scalar_lea.hbm %s2, %s385
          %s388 = sshll.u32 %s386, 4
          %s389 = int_to_ptr.hbm [resolvable:$true] %s388
          %s390 = sshll.u32 %s382, 4
          %s391 = int_to_ptr.vmem [resolvable:$true] %s390
          %393 = dma.hbm_to_vmem [thread:$0]  %s389, 128, %s391, %s379
        $region44: #{tpu_custom_call.1} parent=31 // pred_fallthru
          _
      $region32: #{tpu_custom_call.1} parent=5 // pred_fallthru
        _
      %p394 = scmp.le.s32.totalorder 1, %s29
      %p395 = scmp.lt.s32.totalorder %s29, 3
      %p396 = pnand %p394, %p395
      %p397 = pneg %p396
      // Predicated region
      $region45: #{tpu_custom_call.1} parent=5 // pred_check
        _
      $region46: #{tpu_custom_call.1} parent=5 // pred_check_branch
        %399 = sbr.rel (%p396) target = $region48
      $region47: #{tpu_custom_call.1} parent=5 // pred_region
        %s400 = ssub.s32 %s29, 1
        %s401 = sand.u32 %s56, 1
        %s402 = scalar_lea.sflag [#allocation5], %s401
        %s403 = sand.u32 %s56, 1
        %s404 = smul.addr %s403, 8
        %s405 = scalar_lea.vmem [#allocation4], %s404
        // Predicated region
        $region49: #{tpu_custom_call.1} parent=47 // pred_check
          %p406 = pneg %p69
        $region50: #{tpu_custom_call.1} parent=47 // pred_check_branch
          %408 = sbr.rel (%p406) target = $region52
        $region51: #{tpu_custom_call.1} parent=47 // pred_region
          %410 = dma.done %s402, 128
        $region52: #{tpu_custom_call.1} parent=47 // pred_fallthru
          _
        %s411 = sand.u32 %s34, 1
        %s412 = scalar_lea.sflag [#allocation8], %s411
        %s413 = sand.u32 %s82, 1
        %s414 = smul.addr %s413, 8
        %s415 = scalar_lea.vmem [#allocation7], %s414
        // Predicated region
        $region53: #{tpu_custom_call.1} parent=47 // pred_check
          %p416 = pneg %p95
        $region54: #{tpu_custom_call.1} parent=47 // pred_check_branch
          %418 = sbr.rel (%p416) target = $region56
        $region55: #{tpu_custom_call.1} parent=47 // pred_region
          %420 = dma.done %s412, 128
        $region56: #{tpu_custom_call.1} parent=47 // pred_fallthru
          _
        %s421 = sand.u32 %s34, 1
        %s422 = scalar_lea.sflag [#allocation8], %s421
        %s423 = sand.u32 %s108, 1
        %s424 = smul.addr %s423, 8
        %s425 = scalar_lea.vmem [#allocation9], %s424
        // Predicated region
        $region57: #{tpu_custom_call.1} parent=47 // pred_check
          %p426 = pneg %p121
        $region58: #{tpu_custom_call.1} parent=47 // pred_check_branch
          %428 = sbr.rel (%p426) target = $region60
        $region59: #{tpu_custom_call.1} parent=47 // pred_region
          %430 = dma.done %s422, 128
        $region60: #{tpu_custom_call.1} parent=47 // pred_fallthru
          _
        // Predicated region
        $region61: #{tpu_custom_call.1} parent=47 // pred_check
          %p431 = pneg %p142
        $region62: #{tpu_custom_call.1} parent=47 // pred_check_branch
          %433 = sbr.rel (%p431) target = $region64
        $region63: #{tpu_custom_call.1} parent=47 // pred_region
          %435 = dma.done [#allocation11], 512
        $region64: #{tpu_custom_call.1} parent=47 // pred_fallthru
          _
        // Predicated region
        $region65: #{tpu_custom_call.1} parent=47 // pred_check
          %p436 = pneg %p163
        $region66: #{tpu_custom_call.1} parent=47 // pred_check_branch
          %438 = sbr.rel (%p436) target = $region68
        $region67: #{tpu_custom_call.1} parent=47 // pred_region
          %440 = dma.done [#allocation11], 512
        $region68: #{tpu_custom_call.1} parent=47 // pred_fallthru
          _
        // Predicated region
        $region69: #{tpu_custom_call.1} parent=47 // pred_check
          %p441 = pneg %p184
        $region70: #{tpu_custom_call.1} parent=47 // pred_check_branch
          %443 = sbr.rel (%p441) target = $region72
        $region71: #{tpu_custom_call.1} parent=47 // pred_region
          %445 = dma.done [#allocation14], 512
        $region72: #{tpu_custom_call.1} parent=47 // pred_fallthru
          _
        // Predicated region
        $region73: #{tpu_custom_call.1} parent=47 // pred_check
          %p446 = pneg %p205
        $region74: #{tpu_custom_call.1} parent=47 // pred_check_branch
          %448 = sbr.rel (%p446) target = $region76
        $region75: #{tpu_custom_call.1} parent=47 // pred_region
          %450 = dma.done [#allocation14], 512
        $region76: #{tpu_custom_call.1} parent=47 // pred_fallthru
          _
        %s451 = sand.u32 %s56, 1
        %s452 = scalar_lea.sflag [#allocation5], %s451
        %s453 = sand.u32 %s56, 1
        %s454 = smul.addr %s453, 8
        %s455 = scalar_lea.vmem [#allocation4], %s454
        %p456 = pneg %p69
        %p457 = pneg %p66
        %s458 = sand.u32 %s34, 1
        %s459 = scalar_lea.sflag [#allocation8], %s458
        %s460 = sand.u32 %s82, 1
        %s461 = smul.addr %s460, 8
        %s462 = scalar_lea.vmem [#allocation7], %s461
        %p463 = pneg %p95
        %p464 = pneg %p92
        %s465 = sand.u32 %s34, 1
        %s466 = scalar_lea.sflag [#allocation8], %s465
        %s467 = sand.u32 %s108, 1
        %s468 = smul.addr %s467, 8
        %s469 = scalar_lea.vmem [#allocation9], %s468
        %p470 = pneg %p121
        %p471 = pneg %p118
        %p472 = pneg %p142
        %p473 = pneg %p139
        %p474 = pneg %p163
        %p475 = pneg %p160
        %p476 = pneg %p184
        %p477 = pneg %p181
        %p478 = pneg %p205
        %p479 = pneg %p202
        %p480 = pneg %p233
        %p481 = pneg %p230
        %s482 = sand.u32 %s220, 1
        %s483 = scalar_lea.sflag [#allocation6], %s482
        %s484 = sand.u32 %s220, 1
        %s485 = smul.addr %s484, 8
        %s486 = scalar_lea.vmem [#allocation16], %s485
        %p487 = pneg %p261
        %p488 = pneg %p258
        %s489 = sand.u32 %s248, 1
        %s490 = scalar_lea.sflag [#allocation18], %s489
        %s491 = sand.u32 %s248, 1
        %s492 = smul.addr %s491, 32
        %s493 = scalar_lea.vmem [#allocation17], %s492
        %p494 = scmp.eq.s32.totalorder %s39, 0
        // Predicated region
        $region77: #{tpu_custom_call.1} parent=47 // pred_check
          %p495 = pneg %p494
        $region78: #{tpu_custom_call.1} parent=47 // pred_check_branch
          %497 = sbr.rel (%p495) target = $region80
        $region79: #{tpu_custom_call.1} parent=47 // pred_region
          %v498 = vld [vmem:[%s415] sm:$0xff]
          %v499 = vld [vmem:[#allocation12] sm:$0xff]
          %v500 = vld [vmem:[#allocation12 + $0x8] sm:$0xff]
          %v501 = vld [vmem:[#allocation12 + $0x10] sm:$0xff]
          %v502 = vld [vmem:[#allocation12 + $0x18] sm:$0xff]
          %vm503 = vcmask 261120
          %v505 = vsel %vm503, %v498, 0
          %507 = vmatpush.msra.mxu0 0.0
          %508 = vmatpush.msra.mxu0 0.0
          %509 = vmatpush.msra.mxu0 0.0
          %510 = vmatpush.msra.mxu0 0.0
          %511 = vmatpush.msra.mxu0 0.0
          %512 = vmatpush.msra.mxu0 0.0
          %513 = vmatpush.msra.mxu0 0.0
          %514 = vmatpush.msra.mxu0 0.0
          %515 = vmatpush.msra.mxu0 0.0
          %516 = vmatpush.msra.mxu0 0.0
          %517 = vmatpush.msra.mxu0 0.0
          %518 = vmatpush.msra.mxu0 0.0
          %519 = vmatpush.msra.mxu0 %v502
          %520 = vmatpush.msra.mxu0 %v501
          %521 = vmatpush.msra.mxu0 %v500
          %522 = vmatpush.msra.mxu0 %v499
          %523 = vmatmul.f32.gmra.mxu0 %v505
          %v524 = vpop.f32.mrf.mxu0
          %v525 = vadd.f32 0.0, %v524
          %526 = vdwg.mxu0
          %v527 = vld [vmem:[%s425] sm:$0xff]
          %v528 = vld [vmem:[#allocation13] sm:$0xff]
          %v529 = vld [vmem:[#allocation13 + $0x8] sm:$0xff]
          %v530 = vld [vmem:[#allocation13 + $0x10] sm:$0xff]
          %v531 = vld [vmem:[#allocation13 + $0x18] sm:$0xff]
          %v533 = vsel %vm503, %v527, 0
          %535 = vmatpush.msra.mxu0 0.0
          %536 = vmatpush.msra.mxu0 0.0
          %537 = vmatpush.msra.mxu0 0.0
          %538 = vmatpush.msra.mxu0 0.0
          %539 = vmatpush.msra.mxu0 0.0
          %540 = vmatpush.msra.mxu0 0.0
          %541 = vmatpush.msra.mxu0 0.0
          %542 = vmatpush.msra.mxu0 0.0
          %543 = vmatpush.msra.mxu0 0.0
          %544 = vmatpush.msra.mxu0 0.0
          %545 = vmatpush.msra.mxu0 0.0
          %546 = vmatpush.msra.mxu0 0.0
          %547 = vmatpush.msra.mxu0 %v531
          %548 = vmatpush.msra.mxu0 %v530
          %549 = vmatpush.msra.mxu0 %v529
          %550 = vmatpush.msra.mxu0 %v528
          %551 = vmatmul.f32.gmra.mxu0 %v533
          %v552 = vpop.f32.mrf.mxu0
          %v553 = vadd.f32 0.0, %v552
          %554 = vdwg.mxu0
          %555 = vxpose.xlu0.b32.start [1/16] %v525, 128
          %556 = vxpose.xlu0.b32.cont [2/16] 0.0, 128
          %557 = vxpose.xlu0.b32.cont [3/16] 0.0, 128
          %558 = vxpose.xlu0.b32.cont [4/16] 0.0, 128
          %559 = vxpose.xlu0.b32.cont [5/16] 0.0, 128
          %560 = vxpose.xlu0.b32.cont [6/16] 0.0, 128
          %561 = vxpose.xlu0.b32.cont [7/16] 0.0, 128
          %562 = vxpose.xlu0.b32.cont [8/16] 0.0, 128
          %563 = vxpose.xlu0.b32.cont [9/16] 0.0, 128
          %564 = vxpose.xlu0.b32.cont [10/16] 0.0, 128
          %565 = vxpose.xlu0.b32.cont [11/16] 0.0, 128
          %566 = vxpose.xlu0.b32.cont [12/16] 0.0, 128
          %567 = vxpose.xlu0.b32.cont [13/16] 0.0, 128
          %568 = vxpose.xlu0.b32.cont [14/16] 0.0, 128
          %569 = vxpose.xlu0.b32.cont [15/16] 0.0, 128
          %570 = vxpose.xlu0.b32.end [16/16] 0.0, 128
          %v571 = vpop.trf.xlu0
          %v572 = vpop.trf.xlu0
          %v573 = vpop.trf.xlu0
          %v574 = vpop.trf.xlu0
          %v575 = vpop.trf.xlu0
          %v576 = vpop.trf.xlu0
          %v577 = vpop.trf.xlu0
          %v578 = vpop.trf.xlu0
          %v579 = vpop.trf.xlu0
          %v580 = vpop.trf.xlu0
          %v581 = vpop.trf.xlu0
          %v582 = vpop.trf.xlu0
          %v583 = vpop.trf.xlu0
          %v584 = vpop.trf.xlu0
          %v585 = vpop.trf.xlu0
          %v586 = vpop.trf.xlu0
          %vm587 = vcmask 64512
          %588 = vst.msk [vmem:[#allocation2] sm:$0xff] %vm587, %v571
          %589 = vst.msk [vmem:[#allocation3] sm:$0xff] %vm587, %v553
          %591 = vrot.lane.b32.xlu0 %v525, 120
          %v592 = vpop.permute.xlu0 %591
          %594 = vxpose.xlu0.b32.start [1/16] %v592, 128
          %595 = vxpose.xlu0.b32.cont [2/16] 0.0, 128
          %596 = vxpose.xlu0.b32.cont [3/16] 0.0, 128
          %597 = vxpose.xlu0.b32.cont [4/16] 0.0, 128
          %598 = vxpose.xlu0.b32.cont [5/16] 0.0, 128
          %599 = vxpose.xlu0.b32.cont [6/16] 0.0, 128
          %600 = vxpose.xlu0.b32.cont [7/16] 0.0, 128
          %601 = vxpose.xlu0.b32.cont [8/16] 0.0, 128
          %602 = vxpose.xlu0.b32.cont [9/16] 0.0, 128
          %603 = vxpose.xlu0.b32.cont [10/16] 0.0, 128
          %604 = vxpose.xlu0.b32.cont [11/16] 0.0, 128
          %605 = vxpose.xlu0.b32.cont [12/16] 0.0, 128
          %606 = vxpose.xlu0.b32.cont [13/16] 0.0, 128
          %607 = vxpose.xlu0.b32.cont [14/16] 0.0, 128
          %608 = vxpose.xlu0.b32.cont [15/16] 0.0, 128
          %609 = vxpose.xlu0.b32.end [16/16] 0.0, 128
          %v610 = vpop.trf.xlu0
          %v611 = vpop.trf.xlu0
          %v612 = vpop.trf.xlu0
          %v613 = vpop.trf.xlu0
          %v614 = vpop.trf.xlu0
          %v615 = vpop.trf.xlu0
          %v616 = vpop.trf.xlu0
          %v617 = vpop.trf.xlu0
          %v618 = vpop.trf.xlu0
          %v619 = vpop.trf.xlu0
          %v620 = vpop.trf.xlu0
          %v621 = vpop.trf.xlu0
          %v622 = vpop.trf.xlu0
          %v623 = vpop.trf.xlu0
          %v624 = vpop.trf.xlu0
          %v625 = vpop.trf.xlu0
          %s626 = scalar_lea.vmem [#allocation2], 8
          %627 = vst.msk [vmem:[%s626] sm:$0xff] %vm587, %v610
          %629 = vrot.lane.b32.xlu0 %v553, 120
          %v630 = vpop.permute.xlu0 %629
          %s632 = scalar_lea.vmem [#allocation3], 8
          %633 = vst.msk [vmem:[%s632] sm:$0xff] %vm587, %v630
          %634 = vrot.lane.b32.xlu0 %v525, 112
          %v635 = vpop.permute.xlu0 %634
          %637 = vxpose.xlu0.b32.start [1/16] %v635, 128
          %638 = vxpose.xlu0.b32.cont [2/16] 0.0, 128
          %639 = vxpose.xlu0.b32.cont [3/16] 0.0, 128
          %640 = vxpose.xlu0.b32.cont [4/16] 0.0, 128
          %641 = vxpose.xlu0.b32.cont [5/16] 0.0, 128
          %642 = vxpose.xlu0.b32.cont [6/16] 0.0, 128
          %643 = vxpose.xlu0.b32.cont [7/16] 0.0, 128
          %644 = vxpose.xlu0.b32.cont [8/16] 0.0, 128
          %645 = vxpose.xlu0.b32.cont [9/16] 0.0, 128
          %646 = vxpose.xlu0.b32.cont [10/16] 0.0, 128
          %647 = vxpose.xlu0.b32.cont [11/16] 0.0, 128
          %648 = vxpose.xlu0.b32.cont [12/16] 0.0, 128
          %649 = vxpose.xlu0.b32.cont [13/16] 0.0, 128
          %650 = vxpose.xlu0.b32.cont [14/16] 0.0, 128
          %651 = vxpose.xlu0.b32.cont [15/16] 0.0, 128
          %652 = vxpose.xlu0.b32.end [16/16] 0.0, 128
          %v653 = vpop.trf.xlu0
          %v654 = vpop.trf.xlu0
          %v655 = vpop.trf.xlu0
          %v656 = vpop.trf.xlu0
          %v657 = vpop.trf.xlu0
          %v658 = vpop.trf.xlu0
          %v659 = vpop.trf.xlu0
          %v660 = vpop.trf.xlu0
          %v661 = vpop.trf.xlu0
          %v662 = vpop.trf.xlu0
          %v663 = vpop.trf.xlu0
          %v664 = vpop.trf.xlu0
          %v665 = vpop.trf.xlu0
          %v666 = vpop.trf.xlu0
          %v667 = vpop.trf.xlu0
          %v668 = vpop.trf.xlu0
          %s669 = scalar_lea.vmem [#allocation2], 16
          %670 = vst.msk [vmem:[%s669] sm:$0xff] %vm587, %v653
          %671 = vrot.lane.b32.xlu0 %v553, 112
          %v672 = vpop.permute.xlu0 %671
          %s674 = scalar_lea.vmem [#allocation3], 16
          %675 = vst.msk [vmem:[%s674] sm:$0xff] %vm587, %v672
          %676 = vrot.lane.b32.xlu0 %v525, 104
          %v677 = vpop.permute.xlu0 %676
          %679 = vxpose.xlu0.b32.start [1/16] %v677, 128
          %680 = vxpose.xlu0.b32.cont [2/16] 0.0, 128
          %681 = vxpose.xlu0.b32.cont [3/16] 0.0, 128
          %682 = vxpose.xlu0.b32.cont [4/16] 0.0, 128
          %683 = vxpose.xlu0.b32.cont [5/16] 0.0, 128
          %684 = vxpose.xlu0.b32.cont [6/16] 0.0, 128
          %685 = vxpose.xlu0.b32.cont [7/16] 0.0, 128
          %686 = vxpose.xlu0.b32.cont [8/16] 0.0, 128
          %687 = vxpose.xlu0.b32.cont [9/16] 0.0, 128
          %688 = vxpose.xlu0.b32.cont [10/16] 0.0, 128
          %689 = vxpose.xlu0.b32.cont [11/16] 0.0, 128
          %690 = vxpose.xlu0.b32.cont [12/16] 0.0, 128
          %691 = vxpose.xlu0.b32.cont [13/16] 0.0, 128
          %692 = vxpose.xlu0.b32.cont [14/16] 0.0, 128
          %693 = vxpose.xlu0.b32.cont [15/16] 0.0, 128
          %694 = vxpose.xlu0.b32.end [16/16] 0.0, 128
          %v695 = vpop.trf.xlu0
          %v696 = vpop.trf.xlu0
          %v697 = vpop.trf.xlu0
          %v698 = vpop.trf.xlu0
          %v699 = vpop.trf.xlu0
          %v700 = vpop.trf.xlu0
          %v701 = vpop.trf.xlu0
          %v702 = vpop.trf.xlu0
          %v703 = vpop.trf.xlu0
          %v704 = vpop.trf.xlu0
          %v705 = vpop.trf.xlu0
          %v706 = vpop.trf.xlu0
          %v707 = vpop.trf.xlu0
          %v708 = vpop.trf.xlu0
          %v709 = vpop.trf.xlu0
          %v710 = vpop.trf.xlu0
          %s711 = scalar_lea.vmem [#allocation2], 24
          %712 = vst.msk [vmem:[%s711] sm:$0xff] %vm587, %v695
          %713 = vrot.lane.b32.xlu0 %v553, 104
          %v714 = vpop.permute.xlu0 %713
          %s716 = scalar_lea.vmem [#allocation3], 24
          %717 = vst.msk [vmem:[%s716] sm:$0xff] %vm587, %v714
        $region80: #{tpu_custom_call.1} parent=47 // pred_fallthru
          _
        %v718 = vld [vmem:[%s405] sm:$0xff]
        %v719 = vld [vmem:[#allocation10] sm:$0xff]
        %v720 = vld [vmem:[#allocation10 + $0x8] sm:$0xff]
        %v721 = vld [vmem:[#allocation10 + $0x10] sm:$0xff]
        %v722 = vld [vmem:[#allocation10 + $0x18] sm:$0xff]
        %vm723 = vcmask 261120
        %v725 = vsel %vm723, %v718, 0
        %727 = vmatpush.msra.mxu0 0.0
        %728 = vmatpush.msra.mxu0 0.0
        %729 = vmatpush.msra.mxu0 0.0
        %730 = vmatpush.msra.mxu0 0.0
        %731 = vmatpush.msra.mxu0 0.0
        %732 = vmatpush.msra.mxu0 0.0
        %733 = vmatpush.msra.mxu0 0.0
        %734 = vmatpush.msra.mxu0 0.0
        %735 = vmatpush.msra.mxu0 0.0
        %736 = vmatpush.msra.mxu0 0.0
        %737 = vmatpush.msra.mxu0 0.0
        %738 = vmatpush.msra.mxu0 0.0
        %739 = vmatpush.msra.mxu0 %v722
        %740 = vmatpush.msra.mxu0 %v721
        %741 = vmatpush.msra.mxu0 %v720
        %742 = vmatpush.msra.mxu0 %v719
        %743 = vmatmul.f32.gmra.mxu0 %v725
        %v744 = vpop.f32.mrf.mxu0
        %v745 = vadd.f32 0.0, %v744
        %746 = vdwg.mxu0
        %v747 = vmul.f32 %v745, 0.35355338
        %v748 = vld [vmem:[#allocation2] sm:$0xff]
        %vm749 = vcmask 64512
        %v751 = vsel %vm749, %v747, 0
        %753 = vmatpush.msra.mxu0 0.0
        %754 = vmatpush.msra.mxu0 0.0
        %755 = vmatpush.msra.mxu0 0.0
        %756 = vmatpush.msra.mxu0 0.0
        %757 = vmatpush.msra.mxu0 0.0
        %758 = vmatpush.msra.mxu0 0.0
        %759 = vmatpush.msra.mxu0 0.0
        %760 = vmatpush.msra.mxu0 0.0
        %761 = vmatpush.msra.mxu0 0.0
        %762 = vmatpush.msra.mxu0 0.0
        %763 = vmatpush.msra.mxu0 0.0
        %764 = vmatpush.msra.mxu0 0.0
        %765 = vmatpush.msra.mxu0 0.0
        %766 = vmatpush.msra.mxu0 0.0
        %767 = vmatpush.msra.mxu0 0.0
        %768 = vmatpush.msra.mxu0 %v748
        %769 = vmatmul.f32.gmra.mxu0 %v751
        %v770 = vpop.f32.mrf.mxu0
        %v771 = vadd.f32 0.0, %v770
        %772 = vdwg.mxu0
        %v773 = vsel %vm749, %v771, -inf
        %774 = vmax.xlane.f32.xlu0 %v773
        %v775 = vpop.xlane.xlu0 %774
        %v776 = vsub.f32 %v771, %v775
        %v777 = vmul.f32 %v776, 1.442695
        %v778 = vpow.pop %v777
        %v779 = vsel %vm749, %v778, 0.0
        %780 = vadd.xlane.f32.xlu0 %v779
        %v781 = vpop.xlane.xlu0 %780
        %v782 = vrcp.pop %v781
        %v783 = vmul.f32 %v781, %v782
        %v784 = vsub.f32 1.0, %v783
        %v785 = vmul.f32 %v782, %v784
        %v786 = vadd.f32 %v782, %v785
        %vm787 = vweird.f32 %v781
        %vm788 = vweird.f32 %v782
        %vm789 = vmor %vm787, %vm788
        %v790 = vsel %vm789, %v782, %v786
        %v791 = vand.u32 2147483647, %v781
        %vm792 = vcmp.eq.f32.partialorder %v791, 8.507059e+37
        %v793 = vand.u32 %v781, 2147483648
        %v794 = vor.u32 1.1754944e-38, %v793
        %v795 = vsel %vm792, %v794, %v790
        %v796 = vmul.f32 %v778, %v795
        %797 = vst.msk [vmem:[%s493] sm:$0xff] %vm749, %v796
        %v798 = vld [vmem:[#allocation3] sm:$0xff]
        %v800 = vsel %vm749, %v796, 0
        %802 = vmatpush.msra.mxu0 0.0
        %803 = vmatpush.msra.mxu0 0.0
        %804 = vmatpush.msra.mxu0 0.0
        %805 = vmatpush.msra.mxu0 0.0
        %806 = vmatpush.msra.mxu0 0.0
        %807 = vmatpush.msra.mxu0 0.0
        %808 = vmatpush.msra.mxu0 0.0
        %809 = vmatpush.msra.mxu0 0.0
        %810 = vmatpush.msra.mxu0 0.0
        %811 = vmatpush.msra.mxu0 0.0
        %812 = vmatpush.msra.mxu0 0.0
        %813 = vmatpush.msra.mxu0 0.0
        %814 = vmatpush.msra.mxu0 0.0
        %815 = vmatpush.msra.mxu0 0.0
        %816 = vmatpush.msra.mxu0 0.0
        %817 = vmatpush.msra.mxu0 %v798
        %818 = vmatmul.f32.gmra.mxu0 %v800
        %v819 = vpop.f32.mrf.mxu0
        %v820 = vadd.f32 0.0, %v819
        %821 = vdwg.mxu0
        %s822 = scalar_lea.vmem [#allocation2], 8
        %v823 = vld [vmem:[%s822] sm:$0xff]
        %824 = vrot.lane.b32.xlu0 %v747, 120
        %v825 = vpop.permute.xlu0 %824
        %v826 = vsel %vm749, %v825, 0
        %828 = vmatpush.msra.mxu0 0.0
        %829 = vmatpush.msra.mxu0 0.0
        %830 = vmatpush.msra.mxu0 0.0
        %831 = vmatpush.msra.mxu0 0.0
        %832 = vmatpush.msra.mxu0 0.0
        %833 = vmatpush.msra.mxu0 0.0
        %834 = vmatpush.msra.mxu0 0.0
        %835 = vmatpush.msra.mxu0 0.0
        %836 = vmatpush.msra.mxu0 0.0
        %837 = vmatpush.msra.mxu0 0.0
        %838 = vmatpush.msra.mxu0 0.0
        %839 = vmatpush.msra.mxu0 0.0
        %840 = vmatpush.msra.mxu0 0.0
        %841 = vmatpush.msra.mxu0 0.0
        %842 = vmatpush.msra.mxu0 0.0
        %843 = vmatpush.msra.mxu0 %v823
        %844 = vmatmul.f32.gmra.mxu0 %v826
        %v845 = vpop.f32.mrf.mxu0
        %v846 = vadd.f32 0.0, %v845
        %847 = vdwg.mxu0
        %v848 = vsel %vm749, %v846, -inf
        %849 = vmax.xlane.f32.xlu0 %v848
        %v850 = vpop.xlane.xlu0 %849
        %v851 = vsub.f32 %v846, %v850
        %v852 = vmul.f32 %v851, 1.442695
        %v853 = vpow.pop %v852
        %v854 = vsel %vm749, %v853, 0.0
        %855 = vadd.xlane.f32.xlu0 %v854
        %v856 = vpop.xlane.xlu0 %855
        %v857 = vrcp.pop %v856
        %v858 = vmul.f32 %v856, %v857
        %v859 = vsub.f32 1.0, %v858
        %v860 = vmul.f32 %v857, %v859
        %v861 = vadd.f32 %v857, %v860
        %vm862 = vweird.f32 %v856
        %vm863 = vweird.f32 %v857
        %vm864 = vmor %vm862, %vm863
        %v865 = vsel %vm864, %v857, %v861
        %v866 = vand.u32 2147483647, %v856
        %vm867 = vcmp.eq.f32.partialorder %v866, 8.507059e+37
        %v868 = vand.u32 %v856, 2147483648
        %v869 = vor.u32 1.1754944e-38, %v868
        %v870 = vsel %vm867, %v869, %v865
        %v871 = vmul.f32 %v853, %v870
        %s872 = scalar_lea.vmem %s493, 8 [#allocation17]
        %873 = vst.msk [vmem:[%s872] sm:$0xff] %vm749, %v871
        %s874 = scalar_lea.vmem [#allocation3], 8
        %v875 = vld [vmem:[%s874] sm:$0xff]
        %v877 = vsel %vm749, %v871, 0
        %879 = vmatpush.msra.mxu0 0.0
        %880 = vmatpush.msra.mxu0 0.0
        %881 = vmatpush.msra.mxu0 0.0
        %882 = vmatpush.msra.mxu0 0.0
        %883 = vmatpush.msra.mxu0 0.0
        %884 = vmatpush.msra.mxu0 0.0
        %885 = vmatpush.msra.mxu0 0.0
        %886 = vmatpush.msra.mxu0 0.0
        %887 = vmatpush.msra.mxu0 0.0
        %888 = vmatpush.msra.mxu0 0.0
        %889 = vmatpush.msra.mxu0 0.0
        %890 = vmatpush.msra.mxu0 0.0
        %891 = vmatpush.msra.mxu0 0.0
        %892 = vmatpush.msra.mxu0 0.0
        %893 = vmatpush.msra.mxu0 0.0
        %894 = vmatpush.msra.mxu0 %v875
        %895 = vmatmul.f32.gmra.mxu0 %v877
        %v896 = vpop.f32.mrf.mxu0
        %v897 = vadd.f32 0.0, %v896
        %898 = vdwg.mxu0
        %s899 = scalar_lea.vmem [#allocation2], 16
        %v900 = vld [vmem:[%s899] sm:$0xff]
        %901 = vrot.lane.b32.xlu0 %v747, 112
        %v902 = vpop.permute.xlu0 %901
        %v903 = vsel %vm749, %v902, 0
        %905 = vmatpush.msra.mxu0 0.0
        %906 = vmatpush.msra.mxu0 0.0
        %907 = vmatpush.msra.mxu0 0.0
        %908 = vmatpush.msra.mxu0 0.0
        %909 = vmatpush.msra.mxu0 0.0
        %910 = vmatpush.msra.mxu0 0.0
        %911 = vmatpush.msra.mxu0 0.0
        %912 = vmatpush.msra.mxu0 0.0
        %913 = vmatpush.msra.mxu0 0.0
        %914 = vmatpush.msra.mxu0 0.0
        %915 = vmatpush.msra.mxu0 0.0
        %916 = vmatpush.msra.mxu0 0.0
        %917 = vmatpush.msra.mxu0 0.0
        %918 = vmatpush.msra.mxu0 0.0
        %919 = vmatpush.msra.mxu0 0.0
        %920 = vmatpush.msra.mxu0 %v900
        %921 = vmatmul.f32.gmra.mxu0 %v903
        %v922 = vpop.f32.mrf.mxu0
        %v923 = vadd.f32 0.0, %v922
        %924 = vdwg.mxu0
        %v925 = vsel %vm749, %v923, -inf
        %926 = vmax.xlane.f32.xlu0 %v925
        %v927 = vpop.xlane.xlu0 %926
        %v928 = vsub.f32 %v923, %v927
        %v929 = vmul.f32 %v928, 1.442695
        %v930 = vpow.pop %v929
        %v931 = vsel %vm749, %v930, 0.0
        %932 = vadd.xlane.f32.xlu0 %v931
        %v933 = vpop.xlane.xlu0 %932
        %v934 = vrcp.pop %v933
        %v935 = vmul.f32 %v933, %v934
        %v936 = vsub.f32 1.0, %v935
        %v937 = vmul.f32 %v934, %v936
        %v938 = vadd.f32 %v934, %v937
        %vm939 = vweird.f32 %v933
        %vm940 = vweird.f32 %v934
        %vm941 = vmor %vm939, %vm940
        %v942 = vsel %vm941, %v934, %v938
        %v943 = vand.u32 2147483647, %v933
        %vm944 = vcmp.eq.f32.partialorder %v943, 8.507059e+37
        %v945 = vand.u32 %v933, 2147483648
        %v946 = vor.u32 1.1754944e-38, %v945
        %v947 = vsel %vm944, %v946, %v942
        %v948 = vmul.f32 %v930, %v947
        %s949 = scalar_lea.vmem %s493, 16 [#allocation17]
        %950 = vst.msk [vmem:[%s949] sm:$0xff] %vm749, %v948
        %s951 = scalar_lea.vmem [#allocation3], 16
        %v952 = vld [vmem:[%s951] sm:$0xff]
        %v954 = vsel %vm749, %v948, 0
        %956 = vmatpush.msra.mxu0 0.0
        %957 = vmatpush.msra.mxu0 0.0
        %958 = vmatpush.msra.mxu0 0.0
        %959 = vmatpush.msra.mxu0 0.0
        %960 = vmatpush.msra.mxu0 0.0
        %961 = vmatpush.msra.mxu0 0.0
        %962 = vmatpush.msra.mxu0 0.0
        %963 = vmatpush.msra.mxu0 0.0
        %964 = vmatpush.msra.mxu0 0.0
        %965 = vmatpush.msra.mxu0 0.0
        %966 = vmatpush.msra.mxu0 0.0
        %967 = vmatpush.msra.mxu0 0.0
        %968 = vmatpush.msra.mxu0 0.0
        %969 = vmatpush.msra.mxu0 0.0
        %970 = vmatpush.msra.mxu0 0.0
        %971 = vmatpush.msra.mxu0 %v952
        %972 = vmatmul.f32.gmra.mxu0 %v954
        %v973 = vpop.f32.mrf.mxu0
        %v974 = vadd.f32 0.0, %v973
        %975 = vdwg.mxu0
        %s976 = scalar_lea.vmem [#allocation2], 24
        %v977 = vld [vmem:[%s976] sm:$0xff]
        %978 = vrot.lane.b32.xlu0 %v747, 104
        %v979 = vpop.permute.xlu0 %978
        %v980 = vsel %vm749, %v979, 0
        %982 = vmatpush.msra.mxu0 0.0
        %983 = vmatpush.msra.mxu0 0.0
        %984 = vmatpush.msra.mxu0 0.0
        %985 = vmatpush.msra.mxu0 0.0
        %986 = vmatpush.msra.mxu0 0.0
        %987 = vmatpush.msra.mxu0 0.0
        %988 = vmatpush.msra.mxu0 0.0
        %989 = vmatpush.msra.mxu0 0.0
        %990 = vmatpush.msra.mxu0 0.0
        %991 = vmatpush.msra.mxu0 0.0
        %992 = vmatpush.msra.mxu0 0.0
        %993 = vmatpush.msra.mxu0 0.0
        %994 = vmatpush.msra.mxu0 0.0
        %995 = vmatpush.msra.mxu0 0.0
        %996 = vmatpush.msra.mxu0 0.0
        %997 = vmatpush.msra.mxu0 %v977
        %998 = vmatmul.f32.gmra.mxu0 %v980
        %v999 = vpop.f32.mrf.mxu0
        %v1000 = vadd.f32 0.0, %v999
        %1001 = vdwg.mxu0
        %v1002 = vsel %vm749, %v1000, -inf
        %1003 = vmax.xlane.f32.xlu0 %v1002
        %v1004 = vpop.xlane.xlu0 %1003
        %v1005 = vsub.f32 %v1000, %v1004
        %v1006 = vmul.f32 %v1005, 1.442695
        %v1007 = vpow.pop %v1006
        %v1008 = vsel %vm749, %v1007, 0.0
        %1009 = vadd.xlane.f32.xlu0 %v1008
        %v1010 = vpop.xlane.xlu0 %1009
        %v1011 = vrcp.pop %v1010
        %v1012 = vmul.f32 %v1010, %v1011
        %v1013 = vsub.f32 1.0, %v1012
        %v1014 = vmul.f32 %v1011, %v1013
        %v1015 = vadd.f32 %v1011, %v1014
        %vm1016 = vweird.f32 %v1010
        %vm1017 = vweird.f32 %v1011
        %vm1018 = vmor %vm1016, %vm1017
        %v1019 = vsel %vm1018, %v1011, %v1015
        %v1020 = vand.u32 2147483647, %v1010
        %vm1021 = vcmp.eq.f32.partialorder %v1020, 8.507059e+37
        %v1022 = vand.u32 %v1010, 2147483648
        %v1023 = vor.u32 1.1754944e-38, %v1022
        %v1024 = vsel %vm1021, %v1023, %v1019
        %v1025 = vmul.f32 %v1007, %v1024
        %s1026 = scalar_lea.vmem %s493, 24 [#allocation17]
        %1027 = vst.msk [vmem:[%s1026] sm:$0xff] %vm749, %v1025
        %s1028 = scalar_lea.vmem [#allocation3], 24
        %v1029 = vld [vmem:[%s1028] sm:$0xff]
        %v1031 = vsel %vm749, %v1025, 0
        %1033 = vmatpush.msra.mxu0 0.0
        %1034 = vmatpush.msra.mxu0 0.0
        %1035 = vmatpush.msra.mxu0 0.0
        %1036 = vmatpush.msra.mxu0 0.0
        %1037 = vmatpush.msra.mxu0 0.0
        %1038 = vmatpush.msra.mxu0 0.0
        %1039 = vmatpush.msra.mxu0 0.0
        %1040 = vmatpush.msra.mxu0 0.0
        %1041 = vmatpush.msra.mxu0 0.0
        %1042 = vmatpush.msra.mxu0 0.0
        %1043 = vmatpush.msra.mxu0 0.0
        %1044 = vmatpush.msra.mxu0 0.0
        %1045 = vmatpush.msra.mxu0 0.0
        %1046 = vmatpush.msra.mxu0 0.0
        %1047 = vmatpush.msra.mxu0 0.0
        %1048 = vmatpush.msra.mxu0 %v1029
        %1049 = vmatmul.f32.gmra.mxu0 %v1031
        %v1050 = vpop.f32.mrf.mxu0
        %v1051 = vadd.f32 0.0, %v1050
        %1052 = vdwg.mxu0
        %1054 = vrot.lane.b32.xlu0 %v897, 8
        %v1055 = vpop.permute.xlu0 %1054
        %1058 = vrot.lane.b32.xlu0 %v974, 16
        %v1059 = vpop.permute.xlu0 %1058
        %1062 = vrot.lane.b32.xlu0 %v1051, 24
        %v1063 = vpop.permute.xlu0 %1062
        %v1065 = vsel %vm749, %v820, %v1055
        %vm1066 = vcmask 130048
        %v1067 = vsel %vm1066, %v1065, %v1059
        %vm1068 = vcmask 195584
        %v1069 = vsel %vm1068, %v1067, %v1063
        %v1070 = vld [vmem:[#allocation15] sm:$0xff]
        %v1071 = vld [vmem:[#allocation15 + $0x8] sm:$0xff]
        %v1072 = vld [vmem:[#allocation15 + $0x10] sm:$0xff]
        %v1073 = vld [vmem:[#allocation15 + $0x18] sm:$0xff]
        %v1075 = vsel %vm723, %v1069, 0
        %1077 = vmatpush.msra.mxu0 0.0
        %1078 = vmatpush.msra.mxu0 0.0
        %1079 = vmatpush.msra.mxu0 0.0
        %1080 = vmatpush.msra.mxu0 0.0
        %1081 = vmatpush.msra.mxu0 0.0
        %1082 = vmatpush.msra.mxu0 0.0
        %1083 = vmatpush.msra.mxu0 0.0
        %1084 = vmatpush.msra.mxu0 0.0
        %1085 = vmatpush.msra.mxu0 0.0
        %1086 = vmatpush.msra.mxu0 0.0
        %1087 = vmatpush.msra.mxu0 0.0
        %1088 = vmatpush.msra.mxu0 0.0
        %1089 = vmatpush.msra.mxu0 %v1073
        %1090 = vmatpush.msra.mxu0 %v1072
        %1091 = vmatpush.msra.mxu0 %v1071
        %1092 = vmatpush.msra.mxu0 %v1070
        %1093 = vmatmul.f32.gmra.mxu0 %v1075
        %v1094 = vpop.f32.mrf.mxu0
        %v1095 = vadd.f32 0.0, %v1094
        %1096 = vdwg.mxu0
        %1097 = vst.msk [vmem:[%s486] sm:$0xff] %vm723, %v1095
        %s1098 = sand.u32 %s220, 1
        %s1099 = scalar_lea.sflag [#allocation6], %s1098
        %s1100 = sand.u32 %s220, 1
        %s1101 = smul.addr %s1100, 8
        %s1102 = scalar_lea.vmem [#allocation16], %s1101
        %s1103 = sand.u32 %s248, 1
        %s1104 = scalar_lea.sflag [#allocation18], %s1103
        %s1105 = sand.u32 %s248, 1
        %s1106 = smul.addr %s1105, 32
        %s1107 = scalar_lea.vmem [#allocation17], %s1106
        // Predicated region
        $region81: #{tpu_custom_call.1} parent=47 // pred_check
          %p1108 = pneg %p230
        $region82: #{tpu_custom_call.1} parent=47 // pred_check_branch
          %1110 = sbr.rel (%p1108) target = $region84
        $region83: #{tpu_custom_call.1} parent=47 // pred_region
          %1112 = vsyncadd %s1099, 0
          %s1113 = sadd.s32 %s39, %s38
          %s1114 = smul.addr %s1113, 8
          %s1115 = scalar_lea.hbm %s7, %s1114
          %s1117 = sshll.u32 %s1102, 4
          %s1118 = int_to_ptr.vmem [resolvable:$true] %s1117
          %s1119 = sshll.u32 %s1115, 4
          %s1120 = int_to_ptr.hbm [resolvable:$true] %s1119
          %1122 = dma.vmem_to_hbm [thread:$0]  %s1118, 128, %s1120, %s1099
        $region84: #{tpu_custom_call.1} parent=47 // pred_fallthru
          _
        // Predicated region
        $region85: #{tpu_custom_call.1} parent=47 // pred_check
          %p1123 = pneg %p258
        $region86: #{tpu_custom_call.1} parent=47 // pred_check_branch
          %1125 = sbr.rel (%p1123) target = $region88
        $region87: #{tpu_custom_call.1} parent=47 // pred_region
          %1127 = vsyncadd %s1104, 0
          %s1128 = smul.addr %s38, 4
          %s1129 = sadd.s32 %s39, %s1128
          %s1130 = smul.addr %s1129, 8
          %s1131 = scalar_lea.hbm %s8, %s1130
          %s1132 = sshll.u32 %s1107, 4
          %s1133 = int_to_ptr.vmem [resolvable:$true] %s1132
          %s1134 = sshll.u32 %s1131, 4
          %s1135 = int_to_ptr.hbm [resolvable:$true] %s1134
          %1140 = dma.vmem_to_hbm [thread:$0]  %s1133, 512, %s1135, %s1104, 128, 128, 8
        $region88: #{tpu_custom_call.1} parent=47 // pred_fallthru
          _
      $region48: #{tpu_custom_call.1} parent=5 // pred_fallthru
        _
      %p1141 = scmp.le.s32.totalorder 2, %s29
      // Predicated region
      $region89: #{tpu_custom_call.1} parent=5 // pred_check
        %p1142 = pneg %p1141
      $region90: #{tpu_custom_call.1} parent=5 // pred_check_branch
        %1144 = sbr.rel (%p1142) target = $region92
      $region91: #{tpu_custom_call.1} parent=5 // pred_region
        %s1145 = ssub.s32 %s29, 2
        // Predicated region
        $region93: #{tpu_custom_call.1} parent=91 // pred_check
          %p1146 = pneg %p236
        $region94: #{tpu_custom_call.1} parent=91 // pred_check_branch
          %1148 = sbr.rel (%p1146) target = $region96
        $region95: #{tpu_custom_call.1} parent=91 // pred_region
          %s1149 = sand.u32 %s221, 1
          %s1150 = scalar_lea.sflag [#allocation6], %s1149
          %s1151 = sand.u32 %s221, 1
          %s1152 = smul.addr %s1151, 8
          %s1153 = scalar_lea.vmem [#allocation16], %s1152
          %1155 = dma.done %s1150, 128
        $region96: #{tpu_custom_call.1} parent=91 // pred_fallthru
          _
        // Predicated region
        $region97: #{tpu_custom_call.1} parent=91 // pred_check
          %p1156 = pneg %p264
        $region98: #{tpu_custom_call.1} parent=91 // pred_check_branch
          %1158 = sbr.rel (%p1156) target = $region100
        $region99: #{tpu_custom_call.1} parent=91 // pred_region
          %s1159 = sand.u32 %s249, 1
          %s1160 = scalar_lea.sflag [#allocation18], %s1159
          %s1161 = sand.u32 %s249, 1
          %s1162 = smul.addr %s1161, 32
          %s1163 = scalar_lea.vmem [#allocation17], %s1162
          %1165 = dma.done %s1160, 512
        $region100: #{tpu_custom_call.1} parent=91 // pred_fallthru
          _
      $region92: #{tpu_custom_call.1} parent=5 // pred_fallthru
        _
    $region6: #{tpu_custom_call.1} parent=1 // loop_footer
      %s33 = sadd.s32 1, %s29
    $region7: #{tpu_custom_call.1} parent=1 // loop_footer_branch
      %28 = sbr.rel target = $region3
    $region8: #{tpu_custom_call.1} parent=1 // loop_exit
      _
    %1166 = vsyncpa [#allocation5], 1
    %s1167 = scalar_lea.sflag [#allocation5], 1
    %1168 = vsyncpa %s1167, 1
    %1169 = vsyncpa [#allocation8], 1
    %s1170 = scalar_lea.sflag [#allocation8], 1
    %1171 = vsyncpa %s1170, 1
    %1172 = vsyncpa [#allocation11], 1
    %1173 = vsyncpa [#allocation14], 1
    %1174 = vsyncpa [#allocation6], 1
    %s1175 = scalar_lea.sflag [#allocation6], 1
    %1176 = vsyncpa %s1175, 1
    %1177 = vsyncpa [#allocation18], 1
    %s1178 = scalar_lea.sflag [#allocation18], 1
    %1179 = vsyncpa %s1178, 1

</llo_original>
